<compile_context>
chip_gen: v7x
topology: tpu7x:2x2x1
jax: 0.10.0
libtpu: 0.0.40
codegen_flags: <defaults>
</compile_context>

<pallas_src>
import jax
import jax.numpy as jnp
from jax import lax
from jax.experimental import pallas as pl
from jax.experimental.pallas import tpu as pltpu

# Static problem sizes pinned by the source model's split/cat glue.
N, C, H, W = 2, 4, 9, 9
HO, WO = H - 2, W - 2            # 7, 7
LANES = 256                      # padded row length (H*W = 81 valid lanes)

# Offsets into the single packed weight/bias SMEM array.
_W1, _B1 = 0, 36                 # features1 weight (2,2,3,3) flat, bias (2,)
_W2, _B2 = 38, 74                # features2 weight, out-channel 1 only (4,3,3) flat, bias (1,)
_W3, _B3 = 75, 183               # features3 weight (3,4,3,3) flat, bias (3,)
_WB_LEN = 186


# -----------------------------------------------------------------------------
# Fused kernel: 3 convs (live channels only), single launch, one output slab.
# -----------------------------------------------------------------------------
def _fused_kernel(x_ref, wb_ref, out_ref):
    """Fused 3-conv forward over flat-lane images.

    x_ref  : VMEM (N*C, 256) f32 -- row n*C+c holds the 9x9 image of (n, c)
             flattened into lanes 0..80 (rest zero).
    wb_ref : SMEM (186,) f32     -- w1 | b1 | w2[1] | b2[1] | w3 | b3 packed.
    out_ref: VMEM (10, 128) f32  -- lane-dense slab; lane p = flat output position
             ho*9 + wo (valid for ho, wo in 0..6).  Rows:
               0,1  : y1[batch 0, out 0..1]
               2,3  : y2[batch 0..1, out 1]
               4..9 : y3[batch n, out o] at row 4 + 3*n + o
    """
    zero = jnp.zeros((1, 128), jnp.float32)

    # One-vreg accumulators, initialized with their bias.
    acc_y1 = [zero + wb_ref[_B1 + o] for o in range(2)]                    # batch 0 only
    acc_y2 = [zero + wb_ref[_B2] for _ in range(N)]                        # out channel 1 only
    acc_y3 = [[zero + wb_ref[_B3 + o] for o in range(3)] for _ in range(N)]

    for c in range(C):
        g = c // 2               # features1 group / output channel fed by input channel c
        # Full 256-lane rows for this input channel (one per batch), loaded once.
        rows = [x_ref[n * C + c: n * C + c + 1, :] for n in range(N)]
        for kh in range(3):
            for kw in range(3):
                off = kh * W + kw        # flat-lane shift of this tap
                tap = kh * 3 + kw
                wins = []
                for n in range(N):
                    r = rows[n]
                    if off:
                        # win[p] = row[p + off]  (left-rotate by `off`; wrapped lanes
                        # land beyond lane 127 and are dropped by the [:, :128] slice)
                        r = pltpu.roll(r, shift=LANES - off, axis=1)
                    wins.append(r[:, :128])
                # features1 (grouped, groups=2): input c feeds output g with w1[g, c % 2].
                acc_y1[g] = acc_y1[g] + wins[0] * wb_ref[_W1 + c * 9 + tap]
                for n in range(N):
                    acc_y2[n] = acc_y2[n] + wins[n] * wb_ref[_W2 + c * 9 + tap]
                    for o in range(3):
                        acc_y3[n][o] = (acc_y3[n][o]
                                        + wins[n] * wb_ref[_W3 + (o * C + c) * 9 + tap])

    # Stores: full-lane (unmasked) row stores into a single output slab.
    out_ref[0:1, :] = acc_y1[0]
    out_ref[1:2, :] = acc_y1[1]
    out_ref[2:3, :] = acc_y2[0]
    out_ref[3:4, :] = acc_y2[1]
    for n in range(N):
        for o in range(3):
            r = 4 + 3 * n + o
            out_ref[r:r + 1, :] = acc_y3[n][o]


def _fused_conv(x_flat_padded, wb):
    vmem = pl.BlockSpec(memory_space=pltpu.MemorySpace.VMEM)
    smem = pl.BlockSpec(memory_space=pltpu.MemorySpace.SMEM)
    return pl.pallas_call(
        _fused_kernel,
        out_shape=jax.ShapeDtypeStruct((10, 128), jnp.float32),
        in_specs=[vmem, smem],
        out_specs=vmem,
        # grid=() on purpose: latency-bound kernel; any grid/megacore split only adds overhead.
    )(x_flat_padded, wb)


@jax.jit
def model_forward(v1, wb):
    """Returns (y3, cat_main, cat_tail) -- see reference_forward for the redefined semantics."""
    assert v1.shape == (N, C, H, W)
    x_flat = v1.reshape(N * C, H * W).astype(jnp.float32)
    x_pad = jnp.pad(x_flat, ((0, 0), (0, LANES - H * W)))       # one clean (8, 256) slab
    slab = _fused_conv(x_pad, wb)                               # (10, 128)

    # Free XLA layout plumbing: carve the three results out of the lane-dense slab.
    maps = slab[:, : H * W].reshape(10, H, W)[:, :HO, :WO]      # (10, 7, 7)
    y3 = maps[4:10].reshape(N, 3, HO, WO)                       # (2, 3, 7, 7)
    cat_main = jnp.concatenate([maps[0:2, 0:3, :], maps[2:4, :, :]], axis=1)   # (2, 10, 7)
    cat_tail = jnp.concatenate([y3[:, :, 1, 0:1], y3[:, :, 1, 1:2]], axis=1)   # (2, 6, 1)
    # TODO(synk): the source model returns torch.cat(split1+split2+split3, dim=1), which is
    # shape-inconsistent as written; the cat is kept as two separate, consistent pieces.
    return y3, cat_main, cat_tail


# -----------------------------------------------------------------------------
# Parameters (torch-like layout) + one-time packing into the kernel's flat form.
# -----------------------------------------------------------------------------
def init_params(key):
    ks = jax.random.split(key, 6)
    # features1: declared Conv2d(1, 2, 3, groups=2) is invalid (1 % 2 != 0) and cannot
    # consume the shared 4-channel input; in_channels adjusted 1 -> 4, groups=2 kept.
    w1 = jax.random.normal(ks[0], (2, 2, 3, 3), jnp.float32) * 0.1   # (O=2, C/g=2, 3, 3)
    b1 = jax.random.normal(ks[1], (2,), jnp.float32) * 0.1
    # features2: Conv2d(4, 8, 3) as declared.
    w2 = jax.random.normal(ks[2], (8, 4, 3, 3), jnp.float32) * 0.1
    b2 = jax.random.normal(ks[3], (8,), jnp.float32) * 0.1
    # features3: declared Conv2d(3, 3, 3); in_channels adjusted 3 -> 4 for the shared input.
    w3 = jax.random.normal(ks[4], (3, 4, 3, 3), jnp.float32) * 0.1
    b3 = jax.random.normal(ks[5], (3,), jnp.float32) * 0.1
    return (w1, b1, w2, b2, w3, b3)


def pack_params(params):
    """One-time prep: pack all live weights/biases into ONE flat f32 array for SMEM."""
    w1, b1, w2, b2, w3, b3 = params
    wb = jnp.concatenate([
        w1.reshape(-1),        # 36  features1 (grouped) weights
        b1,                    # 2
        w2[1].reshape(-1),     # 36  features2: only output channel 1 is consumed
        b2[1:2],               # 1
        w3.reshape(-1),        # 108
        b3,                    # 3
    ])
    assert wb.shape == (_WB_LEN,)
    return wb


# -----------------------------------------------------------------------------
# Pure-JAX reference (same redefined semantics) for correctness checking.
# -----------------------------------------------------------------------------
def _conv_ref(x, w, b, groups):
    y = lax.conv_general_dilated(
        x, w, window_strides=(1, 1), padding="VALID",
        dimension_numbers=("NCHW", "OIHW", "NCHW"),
        feature_group_count=groups)
    return y + b.reshape(1, -1, 1, 1)


def reference_forward(v1, params):
    w1, b1, w2, b2, w3, b3 = params
    y1 = _conv_ref(v1, w1, b1, 2)             # (2, 2, 7, 7)
    y2 = _conv_ref(v1, w2, b2, 1)             # (2, 8, 7, 7)
    y3 = _conv_ref(v1, w3, b3, 1)             # (2, 3, 7, 7)

    t1 = y1[0]                                 # (2, 7, 7)
    # TODO(synk): original torch.split(t1, [1,1,1], dim=1) requires dim1 == 3; here dim1 == 7,
    # so only the first three unit slices are taken.
    split1 = [t1[:, i:i + 1, :] for i in range(3)]
    t2 = y2[:, 1]                              # (2, 7, 7)
    split2 = [t2[:, i:i + 1, :] for i in range(7)]
    t3 = y3[:, :, 1]                           # (2, 3, 7)
    # TODO(synk): original torch.split(t3, [1,1], dim=2) requires dim2 == 2 and its pieces
    # cannot be concatenated with the (*,1,7) pieces along dim=1 (shape-inconsistent source);
    # the first two unit slices form a separate cat_tail output.
    split3 = [t3[:, :, i:i + 1] for i in range(2)]

    cat_main = jnp.concatenate(split1 + split2, axis=1)   # (2, 10, 7)
    cat_tail = jnp.concatenate(split3, axis=1)             # (2, 6, 1)
    return y3, cat_main, cat_tail


if __name__ == "__main__":
    key = jax.random.PRNGKey(0)
    kx, kp = jax.random.split(key)
    # N=2, C=4, H=W=9 -> 7x7 conv outputs (the split of [1]*7 pins Ho=7; the cat pins N=2).
    v1 = jax.random.normal(kx, (N, C, H, W), jnp.float32)
    params = init_params(kp)
    wb = pack_params(params)

    out = model_forward(v1, wb)
    jax.block_until_ready(out)

    y3, cat_main, cat_tail = out
    assert y3.shape == (2, 3, 7, 7)
    assert cat_main.shape == (2, 10, 7)
    assert cat_tail.shape == (2, 6, 1)

    # Numerical check against the pure-JAX reference (covers the grouped conv, the
    # dead-channel / dead-batch pruning, and the slab -> split/cat reconstruction).
    ref_y3, ref_main, ref_tail = reference_forward(v1, params)
    assert jnp.allclose(y3, ref_y3, atol=1e-5, rtol=1e-5), "y3 mismatch"
    assert jnp.allclose(cat_main, ref_main, atol=1e-5, rtol=1e-5), "cat_main mismatch"
    assert jnp.allclose(cat_tail, ref_tail, atol=1e-5, rtol=1e-5), "cat_tail mismatch"

    print("KERNEL_OK")
</pallas_src>

<mosaic_0001>
module attributes {stable_mosaic.version = 11 : i64} {
  func.func @_fused_kernel(%arg0: memref<8x256xf32, #tpu.memory_space<vmem>>, %arg1: memref<186xf32, #tpu.memory_space<smem>>, %arg2: memref<10x128xf32, #tpu.memory_space<vmem>>) attributes {dimension_semantics = [], scalar_prefetch = 0 : i64, scratch_operands = 0 : i64, tpu.core_type = #tpu.core_type<tc>} {
    %cst = arith.constant 0.000000e+00 : f32
    %0 = vector.broadcast %cst : f32 to vector<1x128xf32>
    %c36 = arith.constant 36 : index
    %1 = memref.load %arg1[%c36] : memref<186xf32, #tpu.memory_space<smem>>
    %2 = vector.broadcast %1 : f32 to vector<1x128xf32>
    %3 = arith.addf %0, %2 : vector<1x128xf32>
    %c37 = arith.constant 37 : index
    %4 = memref.load %arg1[%c37] : memref<186xf32, #tpu.memory_space<smem>>
    %5 = vector.broadcast %4 : f32 to vector<1x128xf32>
    %6 = arith.addf %0, %5 : vector<1x128xf32>
    %c74 = arith.constant 74 : index
    %7 = memref.load %arg1[%c74] : memref<186xf32, #tpu.memory_space<smem>>
    %8 = vector.broadcast %7 : f32 to vector<1x128xf32>
    %9 = arith.addf %0, %8 : vector<1x128xf32>
    %c74_0 = arith.constant 74 : index
    %10 = memref.load %arg1[%c74_0] : memref<186xf32, #tpu.memory_space<smem>>
    %11 = vector.broadcast %10 : f32 to vector<1x128xf32>
    %12 = arith.addf %0, %11 : vector<1x128xf32>
    %c183 = arith.constant 183 : index
    %13 = memref.load %arg1[%c183] : memref<186xf32, #tpu.memory_space<smem>>
    %14 = vector.broadcast %13 : f32 to vector<1x128xf32>
    %15 = arith.addf %0, %14 : vector<1x128xf32>
    %c184 = arith.constant 184 : index
    %16 = memref.load %arg1[%c184] : memref<186xf32, #tpu.memory_space<smem>>
    %17 = vector.broadcast %16 : f32 to vector<1x128xf32>
    %18 = arith.addf %0, %17 : vector<1x128xf32>
    %c185 = arith.constant 185 : index
    %19 = memref.load %arg1[%c185] : memref<186xf32, #tpu.memory_space<smem>>
    %20 = vector.broadcast %19 : f32 to vector<1x128xf32>
    %21 = arith.addf %0, %20 : vector<1x128xf32>
    %c183_1 = arith.constant 183 : index
    %22 = memref.load %arg1[%c183_1] : memref<186xf32, #tpu.memory_space<smem>>
    %23 = vector.broadcast %22 : f32 to vector<1x128xf32>
    %24 = arith.addf %0, %23 : vector<1x128xf32>
    %c184_2 = arith.constant 184 : index
    %25 = memref.load %arg1[%c184_2] : memref<186xf32, #tpu.memory_space<smem>>
    %26 = vector.broadcast %25 : f32 to vector<1x128xf32>
    %27 = arith.addf %0, %26 : vector<1x128xf32>
    %c185_3 = arith.constant 185 : index
    %28 = memref.load %arg1[%c185_3] : memref<186xf32, #tpu.memory_space<smem>>
    %29 = vector.broadcast %28 : f32 to vector<1x128xf32>
    %30 = arith.addf %0, %29 : vector<1x128xf32>
    %c0 = arith.constant 0 : index
    %c0_4 = arith.constant 0 : index
    %31 = vector.load %arg0[%c0, %c0_4] : memref<8x256xf32, #tpu.memory_space<vmem>>, vector<1x256xf32>
    %c4 = arith.constant 4 : index
    %c0_5 = arith.constant 0 : index
    %32 = vector.load %arg0[%c4, %c0_5] : memref<8x256xf32, #tpu.memory_space<vmem>>, vector<1x256xf32>
    %33 = vector.extract_strided_slice %31 {offsets = [0, 0], sizes = [1, 128], strides = [1, 1]} : vector<1x256xf32> to vector<1x128xf32>
    %34 = vector.extract_strided_slice %32 {offsets = [0, 0], sizes = [1, 128], strides = [1, 1]} : vector<1x256xf32> to vector<1x128xf32>
    %c0_6 = arith.constant 0 : index
    %35 = memref.load %arg1[%c0_6] : memref<186xf32, #tpu.memory_space<smem>>
    %36 = vector.broadcast %35 : f32 to vector<1x128xf32>
    %37 = arith.mulf %33, %36 : vector<1x128xf32>
    %38 = arith.addf %3, %37 : vector<1x128xf32>
    %c38 = arith.constant 38 : index
    %39 = memref.load %arg1[%c38] : memref<186xf32, #tpu.memory_space<smem>>
    %40 = vector.broadcast %39 : f32 to vector<1x128xf32>
    %41 = arith.mulf %33, %40 : vector<1x128xf32>
    %42 = arith.addf %9, %41 : vector<1x128xf32>
    %c75 = arith.constant 75 : index
    %43 = memref.load %arg1[%c75] : memref<186xf32, #tpu.memory_space<smem>>
    %44 = vector.broadcast %43 : f32 to vector<1x128xf32>
    %45 = arith.mulf %33, %44 : vector<1x128xf32>
    %46 = arith.addf %15, %45 : vector<1x128xf32>
    %c111 = arith.constant 111 : index
    %47 = memref.load %arg1[%c111] : memref<186xf32, #tpu.memory_space<smem>>
    %48 = vector.broadcast %47 : f32 to vector<1x128xf32>
    %49 = arith.mulf %33, %48 : vector<1x128xf32>
    %50 = arith.addf %18, %49 : vector<1x128xf32>
    %c147 = arith.constant 147 : index
    %51 = memref.load %arg1[%c147] : memref<186xf32, #tpu.memory_space<smem>>
    %52 = vector.broadcast %51 : f32 to vector<1x128xf32>
    %53 = arith.mulf %33, %52 : vector<1x128xf32>
    %54 = arith.addf %21, %53 : vector<1x128xf32>
    %c38_7 = arith.constant 38 : index
    %55 = memref.load %arg1[%c38_7] : memref<186xf32, #tpu.memory_space<smem>>
    %56 = vector.broadcast %55 : f32 to vector<1x128xf32>
    %57 = arith.mulf %34, %56 : vector<1x128xf32>
    %58 = arith.addf %12, %57 : vector<1x128xf32>
    %c75_8 = arith.constant 75 : index
    %59 = memref.load %arg1[%c75_8] : memref<186xf32, #tpu.memory_space<smem>>
    %60 = vector.broadcast %59 : f32 to vector<1x128xf32>
    %61 = arith.mulf %34, %60 : vector<1x128xf32>
    %62 = arith.addf %24, %61 : vector<1x128xf32>
    %c111_9 = arith.constant 111 : index
    %63 = memref.load %arg1[%c111_9] : memref<186xf32, #tpu.memory_space<smem>>
    %64 = vector.broadcast %63 : f32 to vector<1x128xf32>
    %65 = arith.mulf %34, %64 : vector<1x128xf32>
    %66 = arith.addf %27, %65 : vector<1x128xf32>
    %c147_10 = arith.constant 147 : index
    %67 = memref.load %arg1[%c147_10] : memref<186xf32, #tpu.memory_space<smem>>
    %68 = vector.broadcast %67 : f32 to vector<1x128xf32>
    %69 = arith.mulf %34, %68 : vector<1x128xf32>
    %70 = arith.addf %30, %69 : vector<1x128xf32>
    %c255_i32 = arith.constant 255 : i32
    %71 = tpu.dynamic_rotate %31 by %c255_i32 dim 1 : vector<1x256xf32>, i32 -> vector<1x256xf32>
    %72 = vector.extract_strided_slice %71 {offsets = [0, 0], sizes = [1, 128], strides = [1, 1]} : vector<1x256xf32> to vector<1x128xf32>
    %c255_i32_11 = arith.constant 255 : i32
    %73 = tpu.dynamic_rotate %32 by %c255_i32_11 dim 1 : vector<1x256xf32>, i32 -> vector<1x256xf32>
    %74 = vector.extract_strided_slice %73 {offsets = [0, 0], sizes = [1, 128], strides = [1, 1]} : vector<1x256xf32> to vector<1x128xf32>
    %c1 = arith.constant 1 : index
    %75 = memref.load %arg1[%c1] : memref<186xf32, #tpu.memory_space<smem>>
    %76 = vector.broadcast %75 : f32 to vector<1x128xf32>
    %77 = arith.mulf %72, %76 : vector<1x128xf32>
    %78 = arith.addf %38, %77 : vector<1x128xf32>
    %c39 = arith.constant 39 : index
    %79 = memref.load %arg1[%c39] : memref<186xf32, #tpu.memory_space<smem>>
    %80 = vector.broadcast %79 : f32 to vector<1x128xf32>
    %81 = arith.mulf %72, %80 : vector<1x128xf32>
    %82 = arith.addf %42, %81 : vector<1x128xf32>
    %c76 = arith.constant 76 : index
    %83 = memref.load %arg1[%c76] : memref<186xf32, #tpu.memory_space<smem>>
    %84 = vector.broadcast %83 : f32 to vector<1x128xf32>
    %85 = arith.mulf %72, %84 : vector<1x128xf32>
    %86 = arith.addf %46, %85 : vector<1x128xf32>
    %c112 = arith.constant 112 : index
    %87 = memref.load %arg1[%c112] : memref<186xf32, #tpu.memory_space<smem>>
    %88 = vector.broadcast %87 : f32 to vector<1x128xf32>
    %89 = arith.mulf %72, %88 : vector<1x128xf32>
    %90 = arith.addf %50, %89 : vector<1x128xf32>
    %c148 = arith.constant 148 : index
    %91 = memref.load %arg1[%c148] : memref<186xf32, #tpu.memory_space<smem>>
    %92 = vector.broadcast %91 : f32 to vector<1x128xf32>
    %93 = arith.mulf %72, %92 : vector<1x128xf32>
    %94 = arith.addf %54, %93 : vector<1x128xf32>
    %c39_12 = arith.constant 39 : index
    %95 = memref.load %arg1[%c39_12] : memref<186xf32, #tpu.memory_space<smem>>
    %96 = vector.broadcast %95 : f32 to vector<1x128xf32>
    %97 = arith.mulf %74, %96 : vector<1x128xf32>
    %98 = arith.addf %58, %97 : vector<1x128xf32>
    %c76_13 = arith.constant 76 : index
    %99 = memref.load %arg1[%c76_13] : memref<186xf32, #tpu.memory_space<smem>>
    %100 = vector.broadcast %99 : f32 to vector<1x128xf32>
    %101 = arith.mulf %74, %100 : vector<1x128xf32>
    %102 = arith.addf %62, %101 : vector<1x128xf32>
    %c112_14 = arith.constant 112 : index
    %103 = memref.load %arg1[%c112_14] : memref<186xf32, #tpu.memory_space<smem>>
    %104 = vector.broadcast %103 : f32 to vector<1x128xf32>
    %105 = arith.mulf %74, %104 : vector<1x128xf32>
    %106 = arith.addf %66, %105 : vector<1x128xf32>
    %c148_15 = arith.constant 148 : index
    %107 = memref.load %arg1[%c148_15] : memref<186xf32, #tpu.memory_space<smem>>
    %108 = vector.broadcast %107 : f32 to vector<1x128xf32>
    %109 = arith.mulf %74, %108 : vector<1x128xf32>
    %110 = arith.addf %70, %109 : vector<1x128xf32>
    %c254_i32 = arith.constant 254 : i32
    %111 = tpu.dynamic_rotate %31 by %c254_i32 dim 1 : vector<1x256xf32>, i32 -> vector<1x256xf32>
    %112 = vector.extract_strided_slice %111 {offsets = [0, 0], sizes = [1, 128], strides = [1, 1]} : vector<1x256xf32> to vector<1x128xf32>
    %c254_i32_16 = arith.constant 254 : i32
    %113 = tpu.dynamic_rotate %32 by %c254_i32_16 dim 1 : vector<1x256xf32>, i32 -> vector<1x256xf32>
    %114 = vector.extract_strided_slice %113 {offsets = [0, 0], sizes = [1, 128], strides = [1, 1]} : vector<1x256xf32> to vector<1x128xf32>
    %c2 = arith.constant 2 : index
    %115 = memref.load %arg1[%c2] : memref<186xf32, #tpu.memory_space<smem>>
    %116 = vector.broadcast %115 : f32 to vector<1x128xf32>
    %117 = arith.mulf %112, %116 : vector<1x128xf32>
    %118 = arith.addf %78, %117 : vector<1x128xf32>
    %c40 = arith.constant 40 : index
    %119 = memref.load %arg1[%c40] : memref<186xf32, #tpu.memory_space<smem>>
    %120 = vector.broadcast %119 : f32 to vector<1x128xf32>
    %121 = arith.mulf %112, %120 : vector<1x128xf32>
    %122 = arith.addf %82, %121 : vector<1x128xf32>
    %c77 = arith.constant 77 : index
    %123 = memref.load %arg1[%c77] : memref<186xf32, #tpu.memory_space<smem>>
    %124 = vector.broadcast %123 : f32 to vector<1x128xf32>
    %125 = arith.mulf %112, %124 : vector<1x128xf32>
    %126 = arith.addf %86, %125 : vector<1x128xf32>
    %c113 = arith.constant 113 : index
    %127 = memref.load %arg1[%c113] : memref<186xf32, #tpu.memory_space<smem>>
    %128 = vector.broadcast %127 : f32 to vector<1x128xf32>
    %129 = arith.mulf %112, %128 : vector<1x128xf32>
    %130 = arith.addf %90, %129 : vector<1x128xf32>
    %c149 = arith.constant 149 : index
    %131 = memref.load %arg1[%c149] : memref<186xf32, #tpu.memory_space<smem>>
    %132 = vector.broadcast %131 : f32 to vector<1x128xf32>
    %133 = arith.mulf %112, %132 : vector<1x128xf32>
    %134 = arith.addf %94, %133 : vector<1x128xf32>
    %c40_17 = arith.constant 40 : index
    %135 = memref.load %arg1[%c40_17] : memref<186xf32, #tpu.memory_space<smem>>
    %136 = vector.broadcast %135 : f32 to vector<1x128xf32>
    %137 = arith.mulf %114, %136 : vector<1x128xf32>
    %138 = arith.addf %98, %137 : vector<1x128xf32>
    %c77_18 = arith.constant 77 : index
    %139 = memref.load %arg1[%c77_18] : memref<186xf32, #tpu.memory_space<smem>>
    %140 = vector.broadcast %139 : f32 to vector<1x128xf32>
    %141 = arith.mulf %114, %140 : vector<1x128xf32>
    %142 = arith.addf %102, %141 : vector<1x128xf32>
    %c113_19 = arith.constant 113 : index
    %143 = memref.load %arg1[%c113_19] : memref<186xf32, #tpu.memory_space<smem>>
    %144 = vector.broadcast %143 : f32 to vector<1x128xf32>
    %145 = arith.mulf %114, %144 : vector<1x128xf32>
    %146 = arith.addf %106, %145 : vector<1x128xf32>
    %c149_20 = arith.constant 149 : index
    %147 = memref.load %arg1[%c149_20] : memref<186xf32, #tpu.memory_space<smem>>
    %148 = vector.broadcast %147 : f32 to vector<1x128xf32>
    %149 = arith.mulf %114, %148 : vector<1x128xf32>
    %150 = arith.addf %110, %149 : vector<1x128xf32>
    %c247_i32 = arith.constant 247 : i32
    %151 = tpu.dynamic_rotate %31 by %c247_i32 dim 1 : vector<1x256xf32>, i32 -> vector<1x256xf32>
    %152 = vector.extract_strided_slice %151 {offsets = [0, 0], sizes = [1, 128], strides = [1, 1]} : vector<1x256xf32> to vector<1x128xf32>
    %c247_i32_21 = arith.constant 247 : i32
    %153 = tpu.dynamic_rotate %32 by %c247_i32_21 dim 1 : vector<1x256xf32>, i32 -> vector<1x256xf32>
    %154 = vector.extract_strided_slice %153 {offsets = [0, 0], sizes = [1, 128], strides = [1, 1]} : vector<1x256xf32> to vector<1x128xf32>
    %c3 = arith.constant 3 : index
    %155 = memref.load %arg1[%c3] : memref<186xf32, #tpu.memory_space<smem>>
    %156 = vector.broadcast %155 : f32 to vector<1x128xf32>
    %157 = arith.mulf %152, %156 : vector<1x128xf32>
    %158 = arith.addf %118, %157 : vector<1x128xf32>
    %c41 = arith.constant 41 : index
    %159 = memref.load %arg1[%c41] : memref<186xf32, #tpu.memory_space<smem>>
    %160 = vector.broadcast %159 : f32 to vector<1x128xf32>
    %161 = arith.mulf %152, %160 : vector<1x128xf32>
    %162 = arith.addf %122, %161 : vector<1x128xf32>
    %c78 = arith.constant 78 : index
    %163 = memref.load %arg1[%c78] : memref<186xf32, #tpu.memory_space<smem>>
    %164 = vector.broadcast %163 : f32 to vector<1x128xf32>
    %165 = arith.mulf %152, %164 : vector<1x128xf32>
    %166 = arith.addf %126, %165 : vector<1x128xf32>
    %c114 = arith.constant 114 : index
    %167 = memref.load %arg1[%c114] : memref<186xf32, #tpu.memory_space<smem>>
    %168 = vector.broadcast %167 : f32 to vector<1x128xf32>
    %169 = arith.mulf %152, %168 : vector<1x128xf32>
    %170 = arith.addf %130, %169 : vector<1x128xf32>
    %c150 = arith.constant 150 : index
    %171 = memref.load %arg1[%c150] : memref<186xf32, #tpu.memory_space<smem>>
    %172 = vector.broadcast %171 : f32 to vector<1x128xf32>
    %173 = arith.mulf %152, %172 : vector<1x128xf32>
    %174 = arith.addf %134, %173 : vector<1x128xf32>
    %c41_22 = arith.constant 41 : index
    %175 = memref.load %arg1[%c41_22] : memref<186xf32, #tpu.memory_space<smem>>
    %176 = vector.broadcast %175 : f32 to vector<1x128xf32>
    %177 = arith.mulf %154, %176 : vector<1x128xf32>
    %178 = arith.addf %138, %177 : vector<1x128xf32>
    %c78_23 = arith.constant 78 : index
    %179 = memref.load %arg1[%c78_23] : memref<186xf32, #tpu.memory_space<smem>>
    %180 = vector.broadcast %179 : f32 to vector<1x128xf32>
    %181 = arith.mulf %154, %180 : vector<1x128xf32>
    %182 = arith.addf %142, %181 : vector<1x128xf32>
    %c114_24 = arith.constant 114 : index
    %183 = memref.load %arg1[%c114_24] : memref<186xf32, #tpu.memory_space<smem>>
    %184 = vector.broadcast %183 : f32 to vector<1x128xf32>
    %185 = arith.mulf %154, %184 : vector<1x128xf32>
    %186 = arith.addf %146, %185 : vector<1x128xf32>
    %c150_25 = arith.constant 150 : index
    %187 = memref.load %arg1[%c150_25] : memref<186xf32, #tpu.memory_space<smem>>
    %188 = vector.broadcast %187 : f32 to vector<1x128xf32>
    %189 = arith.mulf %154, %188 : vector<1x128xf32>
    %190 = arith.addf %150, %189 : vector<1x128xf32>
    %c246_i32 = arith.constant 246 : i32
    %191 = tpu.dynamic_rotate %31 by %c246_i32 dim 1 : vector<1x256xf32>, i32 -> vector<1x256xf32>
    %192 = vector.extract_strided_slice %191 {offsets = [0, 0], sizes = [1, 128], strides = [1, 1]} : vector<1x256xf32> to vector<1x128xf32>
    %c246_i32_26 = arith.constant 246 : i32
    %193 = tpu.dynamic_rotate %32 by %c246_i32_26 dim 1 : vector<1x256xf32>, i32 -> vector<1x256xf32>
    %194 = vector.extract_strided_slice %193 {offsets = [0, 0], sizes = [1, 128], strides = [1, 1]} : vector<1x256xf32> to vector<1x128xf32>
    %c4_27 = arith.constant 4 : index
    %195 = memref.load %arg1[%c4_27] : memref<186xf32, #tpu.memory_space<smem>>
    %196 = vector.broadcast %195 : f32 to vector<1x128xf32>
    %197 = arith.mulf %192, %196 : vector<1x128xf32>
    %198 = arith.addf %158, %197 : vector<1x128xf32>
    %c42 = arith.constant 42 : index
    %199 = memref.load %arg1[%c42] : memref<186xf32, #tpu.memory_space<smem>>
    %200 = vector.broadcast %199 : f32 to vector<1x128xf32>
    %201 = arith.mulf %192, %200 : vector<1x128xf32>
    %202 = arith.addf %162, %201 : vector<1x128xf32>
    %c79 = arith.constant 79 : index
    %203 = memref.load %arg1[%c79] : memref<186xf32, #tpu.memory_space<smem>>
    %204 = vector.broadcast %203 : f32 to vector<1x128xf32>
    %205 = arith.mulf %192, %204 : vector<1x128xf32>
    %206 = arith.addf %166, %205 : vector<1x128xf32>
    %c115 = arith.constant 115 : index
    %207 = memref.load %arg1[%c115] : memref<186xf32, #tpu.memory_space<smem>>
    %208 = vector.broadcast %207 : f32 to vector<1x128xf32>
    %209 = arith.mulf %192, %208 : vector<1x128xf32>
    %210 = arith.addf %170, %209 : vector<1x128xf32>
    %c151 = arith.constant 151 : index
    %211 = memref.load %arg1[%c151] : memref<186xf32, #tpu.memory_space<smem>>
    %212 = vector.broadcast %211 : f32 to vector<1x128xf32>
    %213 = arith.mulf %192, %212 : vector<1x128xf32>
    %214 = arith.addf %174, %213 : vector<1x128xf32>
    %c42_28 = arith.constant 42 : index
    %215 = memref.load %arg1[%c42_28] : memref<186xf32, #tpu.memory_space<smem>>
    %216 = vector.broadcast %215 : f32 to vector<1x128xf32>
    %217 = arith.mulf %194, %216 : vector<1x128xf32>
    %218 = arith.addf %178, %217 : vector<1x128xf32>
    %c79_29 = arith.constant 79 : index
    %219 = memref.load %arg1[%c79_29] : memref<186xf32, #tpu.memory_space<smem>>
    %220 = vector.broadcast %219 : f32 to vector<1x128xf32>
    %221 = arith.mulf %194, %220 : vector<1x128xf32>
    %222 = arith.addf %182, %221 : vector<1x128xf32>
    %c115_30 = arith.constant 115 : index
    %223 = memref.load %arg1[%c115_30] : memref<186xf32, #tpu.memory_space<smem>>
    %224 = vector.broadcast %223 : f32 to vector<1x128xf32>
    %225 = arith.mulf %194, %224 : vector<1x128xf32>
    %226 = arith.addf %186, %225 : vector<1x128xf32>
    %c151_31 = arith.constant 151 : index
    %227 = memref.load %arg1[%c151_31] : memref<186xf32, #tpu.memory_space<smem>>
    %228 = vector.broadcast %227 : f32 to vector<1x128xf32>
    %229 = arith.mulf %194, %228 : vector<1x128xf32>
    %230 = arith.addf %190, %229 : vector<1x128xf32>
    %c245_i32 = arith.constant 245 : i32
    %231 = tpu.dynamic_rotate %31 by %c245_i32 dim 1 : vector<1x256xf32>, i32 -> vector<1x256xf32>
    %232 = vector.extract_strided_slice %231 {offsets = [0, 0], sizes = [1, 128], strides = [1, 1]} : vector<1x256xf32> to vector<1x128xf32>
    %c245_i32_32 = arith.constant 245 : i32
    %233 = tpu.dynamic_rotate %32 by %c245_i32_32 dim 1 : vector<1x256xf32>, i32 -> vector<1x256xf32>
    %234 = vector.extract_strided_slice %233 {offsets = [0, 0], sizes = [1, 128], strides = [1, 1]} : vector<1x256xf32> to vector<1x128xf32>
    %c5 = arith.constant 5 : index
    %235 = memref.load %arg1[%c5] : memref<186xf32, #tpu.memory_space<smem>>
    %236 = vector.broadcast %235 : f32 to vector<1x128xf32>
    %237 = arith.mulf %232, %236 : vector<1x128xf32>
    %238 = arith.addf %198, %237 : vector<1x128xf32>
    %c43 = arith.constant 43 : index
    %239 = memref.load %arg1[%c43] : memref<186xf32, #tpu.memory_space<smem>>
    %240 = vector.broadcast %239 : f32 to vector<1x128xf32>
    %241 = arith.mulf %232, %240 : vector<1x128xf32>
    %242 = arith.addf %202, %241 : vector<1x128xf32>
    %c80 = arith.constant 80 : index
    %243 = memref.load %arg1[%c80] : memref<186xf32, #tpu.memory_space<smem>>
    %244 = vector.broadcast %243 : f32 to vector<1x128xf32>
    %245 = arith.mulf %232, %244 : vector<1x128xf32>
    %246 = arith.addf %206, %245 : vector<1x128xf32>
    %c116 = arith.constant 116 : index
    %247 = memref.load %arg1[%c116] : memref<186xf32, #tpu.memory_space<smem>>
    %248 = vector.broadcast %247 : f32 to vector<1x128xf32>
    %249 = arith.mulf %232, %248 : vector<1x128xf32>
    %250 = arith.addf %210, %249 : vector<1x128xf32>
    %c152 = arith.constant 152 : index
    %251 = memref.load %arg1[%c152] : memref<186xf32, #tpu.memory_space<smem>>
    %252 = vector.broadcast %251 : f32 to vector<1x128xf32>
    %253 = arith.mulf %232, %252 : vector<1x128xf32>
    %254 = arith.addf %214, %253 : vector<1x128xf32>
    %c43_33 = arith.constant 43 : index
    %255 = memref.load %arg1[%c43_33] : memref<186xf32, #tpu.memory_space<smem>>
    %256 = vector.broadcast %255 : f32 to vector<1x128xf32>
    %257 = arith.mulf %234, %256 : vector<1x128xf32>
    %258 = arith.addf %218, %257 : vector<1x128xf32>
    %c80_34 = arith.constant 80 : index
    %259 = memref.load %arg1[%c80_34] : memref<186xf32, #tpu.memory_space<smem>>
    %260 = vector.broadcast %259 : f32 to vector<1x128xf32>
    %261 = arith.mulf %234, %260 : vector<1x128xf32>
    %262 = arith.addf %222, %261 : vector<1x128xf32>
    %c116_35 = arith.constant 116 : index
    %263 = memref.load %arg1[%c116_35] : memref<186xf32, #tpu.memory_space<smem>>
    %264 = vector.broadcast %263 : f32 to vector<1x128xf32>
    %265 = arith.mulf %234, %264 : vector<1x128xf32>
    %266 = arith.addf %226, %265 : vector<1x128xf32>
    %c152_36 = arith.constant 152 : index
    %267 = memref.load %arg1[%c152_36] : memref<186xf32, #tpu.memory_space<smem>>
    %268 = vector.broadcast %267 : f32 to vector<1x128xf32>
    %269 = arith.mulf %234, %268 : vector<1x128xf32>
    %270 = arith.addf %230, %269 : vector<1x128xf32>
    %c238_i32 = arith.constant 238 : i32
    %271 = tpu.dynamic_rotate %31 by %c238_i32 dim 1 : vector<1x256xf32>, i32 -> vector<1x256xf32>
    %272 = vector.extract_strided_slice %271 {offsets = [0, 0], sizes = [1, 128], strides = [1, 1]} : vector<1x256xf32> to vector<1x128xf32>
    %c238_i32_37 = arith.constant 238 : i32
    %273 = tpu.dynamic_rotate %32 by %c238_i32_37 dim 1 : vector<1x256xf32>, i32 -> vector<1x256xf32>
    %274 = vector.extract_strided_slice %273 {offsets = [0, 0], sizes = [1, 128], strides = [1, 1]} : vector<1x256xf32> to vector<1x128xf32>
    %c6 = arith.constant 6 : index
    %275 = memref.load %arg1[%c6] : memref<186xf32, #tpu.memory_space<smem>>
    %276 = vector.broadcast %275 : f32 to vector<1x128xf32>
    %277 = arith.mulf %272, %276 : vector<1x128xf32>
    %278 = arith.addf %238, %277 : vector<1x128xf32>
    %c44 = arith.constant 44 : index
    %279 = memref.load %arg1[%c44] : memref<186xf32, #tpu.memory_space<smem>>
    %280 = vector.broadcast %279 : f32 to vector<1x128xf32>
    %281 = arith.mulf %272, %280 : vector<1x128xf32>
    %282 = arith.addf %242, %281 : vector<1x128xf32>
    %c81 = arith.constant 81 : index
    %283 = memref.load %arg1[%c81] : memref<186xf32, #tpu.memory_space<smem>>
    %284 = vector.broadcast %283 : f32 to vector<1x128xf32>
    %285 = arith.mulf %272, %284 : vector<1x128xf32>
    %286 = arith.addf %246, %285 : vector<1x128xf32>
    %c117 = arith.constant 117 : index
    %287 = memref.load %arg1[%c117] : memref<186xf32, #tpu.memory_space<smem>>
    %288 = vector.broadcast %287 : f32 to vector<1x128xf32>
    %289 = arith.mulf %272, %288 : vector<1x128xf32>
    %290 = arith.addf %250, %289 : vector<1x128xf32>
    %c153 = arith.constant 153 : index
    %291 = memref.load %arg1[%c153] : memref<186xf32, #tpu.memory_space<smem>>
    %292 = vector.broadcast %291 : f32 to vector<1x128xf32>
    %293 = arith.mulf %272, %292 : vector<1x128xf32>
    %294 = arith.addf %254, %293 : vector<1x128xf32>
    %c44_38 = arith.constant 44 : index
    %295 = memref.load %arg1[%c44_38] : memref<186xf32, #tpu.memory_space<smem>>
    %296 = vector.broadcast %295 : f32 to vector<1x128xf32>
    %297 = arith.mulf %274, %296 : vector<1x128xf32>
    %298 = arith.addf %258, %297 : vector<1x128xf32>
    %c81_39 = arith.constant 81 : index
    %299 = memref.load %arg1[%c81_39] : memref<186xf32, #tpu.memory_space<smem>>
    %300 = vector.broadcast %299 : f32 to vector<1x128xf32>
    %301 = arith.mulf %274, %300 : vector<1x128xf32>
    %302 = arith.addf %262, %301 : vector<1x128xf32>
    %c117_40 = arith.constant 117 : index
    %303 = memref.load %arg1[%c117_40] : memref<186xf32, #tpu.memory_space<smem>>
    %304 = vector.broadcast %303 : f32 to vector<1x128xf32>
    %305 = arith.mulf %274, %304 : vector<1x128xf32>
    %306 = arith.addf %266, %305 : vector<1x128xf32>
    %c153_41 = arith.constant 153 : index
    %307 = memref.load %arg1[%c153_41] : memref<186xf32, #tpu.memory_space<smem>>
    %308 = vector.broadcast %307 : f32 to vector<1x128xf32>
    %309 = arith.mulf %274, %308 : vector<1x128xf32>
    %310 = arith.addf %270, %309 : vector<1x128xf32>
    %c237_i32 = arith.constant 237 : i32
    %311 = tpu.dynamic_rotate %31 by %c237_i32 dim 1 : vector<1x256xf32>, i32 -> vector<1x256xf32>
    %312 = vector.extract_strided_slice %311 {offsets = [0, 0], sizes = [1, 128], strides = [1, 1]} : vector<1x256xf32> to vector<1x128xf32>
    %c237_i32_42 = arith.constant 237 : i32
    %313 = tpu.dynamic_rotate %32 by %c237_i32_42 dim 1 : vector<1x256xf32>, i32 -> vector<1x256xf32>
    %314 = vector.extract_strided_slice %313 {offsets = [0, 0], sizes = [1, 128], strides = [1, 1]} : vector<1x256xf32> to vector<1x128xf32>
    %c7 = arith.constant 7 : index
    %315 = memref.load %arg1[%c7] : memref<186xf32, #tpu.memory_space<smem>>
    %316 = vector.broadcast %315 : f32 to vector<1x128xf32>
    %317 = arith.mulf %312, %316 : vector<1x128xf32>
    %318 = arith.addf %278, %317 : vector<1x128xf32>
    %c45 = arith.constant 45 : index
    %319 = memref.load %arg1[%c45] : memref<186xf32, #tpu.memory_space<smem>>
    %320 = vector.broadcast %319 : f32 to vector<1x128xf32>
    %321 = arith.mulf %312, %320 : vector<1x128xf32>
    %322 = arith.addf %282, %321 : vector<1x128xf32>
    %c82 = arith.constant 82 : index
    %323 = memref.load %arg1[%c82] : memref<186xf32, #tpu.memory_space<smem>>
    %324 = vector.broadcast %323 : f32 to vector<1x128xf32>
    %325 = arith.mulf %312, %324 : vector<1x128xf32>
    %326 = arith.addf %286, %325 : vector<1x128xf32>
    %c118 = arith.constant 118 : index
    %327 = memref.load %arg1[%c118] : memref<186xf32, #tpu.memory_space<smem>>
    %328 = vector.broadcast %327 : f32 to vector<1x128xf32>
    %329 = arith.mulf %312, %328 : vector<1x128xf32>
    %330 = arith.addf %290, %329 : vector<1x128xf32>
    %c154 = arith.constant 154 : index
    %331 = memref.load %arg1[%c154] : memref<186xf32, #tpu.memory_space<smem>>
    %332 = vector.broadcast %331 : f32 to vector<1x128xf32>
    %333 = arith.mulf %312, %332 : vector<1x128xf32>
    %334 = arith.addf %294, %333 : vector<1x128xf32>
    %c45_43 = arith.constant 45 : index
    %335 = memref.load %arg1[%c45_43] : memref<186xf32, #tpu.memory_space<smem>>
    %336 = vector.broadcast %335 : f32 to vector<1x128xf32>
    %337 = arith.mulf %314, %336 : vector<1x128xf32>
    %338 = arith.addf %298, %337 : vector<1x128xf32>
    %c82_44 = arith.constant 82 : index
    %339 = memref.load %arg1[%c82_44] : memref<186xf32, #tpu.memory_space<smem>>
    %340 = vector.broadcast %339 : f32 to vector<1x128xf32>
    %341 = arith.mulf %314, %340 : vector<1x128xf32>
    %342 = arith.addf %302, %341 : vector<1x128xf32>
    %c118_45 = arith.constant 118 : index
    %343 = memref.load %arg1[%c118_45] : memref<186xf32, #tpu.memory_space<smem>>
    %344 = vector.broadcast %343 : f32 to vector<1x128xf32>
    %345 = arith.mulf %314, %344 : vector<1x128xf32>
    %346 = arith.addf %306, %345 : vector<1x128xf32>
    %c154_46 = arith.constant 154 : index
    %347 = memref.load %arg1[%c154_46] : memref<186xf32, #tpu.memory_space<smem>>
    %348 = vector.broadcast %347 : f32 to vector<1x128xf32>
    %349 = arith.mulf %314, %348 : vector<1x128xf32>
    %350 = arith.addf %310, %349 : vector<1x128xf32>
    %c236_i32 = arith.constant 236 : i32
    %351 = tpu.dynamic_rotate %31 by %c236_i32 dim 1 : vector<1x256xf32>, i32 -> vector<1x256xf32>
    %352 = vector.extract_strided_slice %351 {offsets = [0, 0], sizes = [1, 128], strides = [1, 1]} : vector<1x256xf32> to vector<1x128xf32>
    %c236_i32_47 = arith.constant 236 : i32
    %353 = tpu.dynamic_rotate %32 by %c236_i32_47 dim 1 : vector<1x256xf32>, i32 -> vector<1x256xf32>
    %354 = vector.extract_strided_slice %353 {offsets = [0, 0], sizes = [1, 128], strides = [1, 1]} : vector<1x256xf32> to vector<1x128xf32>
    %c8 = arith.constant 8 : index
    %355 = memref.load %arg1[%c8] : memref<186xf32, #tpu.memory_space<smem>>
    %356 = vector.broadcast %355 : f32 to vector<1x128xf32>
    %357 = arith.mulf %352, %356 : vector<1x128xf32>
    %358 = arith.addf %318, %357 : vector<1x128xf32>
    %c46 = arith.constant 46 : index
    %359 = memref.load %arg1[%c46] : memref<186xf32, #tpu.memory_space<smem>>
    %360 = vector.broadcast %359 : f32 to vector<1x128xf32>
    %361 = arith.mulf %352, %360 : vector<1x128xf32>
    %362 = arith.addf %322, %361 : vector<1x128xf32>
    %c83 = arith.constant 83 : index
    %363 = memref.load %arg1[%c83] : memref<186xf32, #tpu.memory_space<smem>>
    %364 = vector.broadcast %363 : f32 to vector<1x128xf32>
    %365 = arith.mulf %352, %364 : vector<1x128xf32>
    %366 = arith.addf %326, %365 : vector<1x128xf32>
    %c119 = arith.constant 119 : index
    %367 = memref.load %arg1[%c119] : memref<186xf32, #tpu.memory_space<smem>>
    %368 = vector.broadcast %367 : f32 to vector<1x128xf32>
    %369 = arith.mulf %352, %368 : vector<1x128xf32>
    %370 = arith.addf %330, %369 : vector<1x128xf32>
    %c155 = arith.constant 155 : index
    %371 = memref.load %arg1[%c155] : memref<186xf32, #tpu.memory_space<smem>>
    %372 = vector.broadcast %371 : f32 to vector<1x128xf32>
    %373 = arith.mulf %352, %372 : vector<1x128xf32>
    %374 = arith.addf %334, %373 : vector<1x128xf32>
    %c46_48 = arith.constant 46 : index
    %375 = memref.load %arg1[%c46_48] : memref<186xf32, #tpu.memory_space<smem>>
    %376 = vector.broadcast %375 : f32 to vector<1x128xf32>
    %377 = arith.mulf %354, %376 : vector<1x128xf32>
    %378 = arith.addf %338, %377 : vector<1x128xf32>
    %c83_49 = arith.constant 83 : index
    %379 = memref.load %arg1[%c83_49] : memref<186xf32, #tpu.memory_space<smem>>
    %380 = vector.broadcast %379 : f32 to vector<1x128xf32>
    %381 = arith.mulf %354, %380 : vector<1x128xf32>
    %382 = arith.addf %342, %381 : vector<1x128xf32>
    %c119_50 = arith.constant 119 : index
    %383 = memref.load %arg1[%c119_50] : memref<186xf32, #tpu.memory_space<smem>>
    %384 = vector.broadcast %383 : f32 to vector<1x128xf32>
    %385 = arith.mulf %354, %384 : vector<1x128xf32>
    %386 = arith.addf %346, %385 : vector<1x128xf32>
    %c155_51 = arith.constant 155 : index
    %387 = memref.load %arg1[%c155_51] : memref<186xf32, #tpu.memory_space<smem>>
    %388 = vector.broadcast %387 : f32 to vector<1x128xf32>
    %389 = arith.mulf %354, %388 : vector<1x128xf32>
    %390 = arith.addf %350, %389 : vector<1x128xf32>
    %c1_52 = arith.constant 1 : index
    %c0_53 = arith.constant 0 : index
    %391 = vector.load %arg0[%c1_52, %c0_53] : memref<8x256xf32, #tpu.memory_space<vmem>>, vector<1x256xf32>
    %c5_54 = arith.constant 5 : index
    %c0_55 = arith.constant 0 : index
    %392 = vector.load %arg0[%c5_54, %c0_55] : memref<8x256xf32, #tpu.memory_space<vmem>>, vector<1x256xf32>
    %393 = vector.extract_strided_slice %391 {offsets = [0, 0], sizes = [1, 128], strides = [1, 1]} : vector<1x256xf32> to vector<1x128xf32>
    %394 = vector.extract_strided_slice %392 {offsets = [0, 0], sizes = [1, 128], strides = [1, 1]} : vector<1x256xf32> to vector<1x128xf32>
    %c9 = arith.constant 9 : index
    %395 = memref.load %arg1[%c9] : memref<186xf32, #tpu.memory_space<smem>>
    %396 = vector.broadcast %395 : f32 to vector<1x128xf32>
    %397 = arith.mulf %393, %396 : vector<1x128xf32>
    %398 = arith.addf %358, %397 : vector<1x128xf32>
    %c47 = arith.constant 47 : index
    %399 = memref.load %arg1[%c47] : memref<186xf32, #tpu.memory_space<smem>>
    %400 = vector.broadcast %399 : f32 to vector<1x128xf32>
    %401 = arith.mulf %393, %400 : vector<1x128xf32>
    %402 = arith.addf %362, %401 : vector<1x128xf32>
    %c84 = arith.constant 84 : index
    %403 = memref.load %arg1[%c84] : memref<186xf32, #tpu.memory_space<smem>>
    %404 = vector.broadcast %403 : f32 to vector<1x128xf32>
    %405 = arith.mulf %393, %404 : vector<1x128xf32>
    %406 = arith.addf %366, %405 : vector<1x128xf32>
    %c120 = arith.constant 120 : index
    %407 = memref.load %arg1[%c120] : memref<186xf32, #tpu.memory_space<smem>>
    %408 = vector.broadcast %407 : f32 to vector<1x128xf32>
    %409 = arith.mulf %393, %408 : vector<1x128xf32>
    %410 = arith.addf %370, %409 : vector<1x128xf32>
    %c156 = arith.constant 156 : index
    %411 = memref.load %arg1[%c156] : memref<186xf32, #tpu.memory_space<smem>>
    %412 = vector.broadcast %411 : f32 to vector<1x128xf32>
    %413 = arith.mulf %393, %412 : vector<1x128xf32>
    %414 = arith.addf %374, %413 : vector<1x128xf32>
    %c47_56 = arith.constant 47 : index
    %415 = memref.load %arg1[%c47_56] : memref<186xf32, #tpu.memory_space<smem>>
    %416 = vector.broadcast %415 : f32 to vector<1x128xf32>
    %417 = arith.mulf %394, %416 : vector<1x128xf32>
    %418 = arith.addf %378, %417 : vector<1x128xf32>
    %c84_57 = arith.constant 84 : index
    %419 = memref.load %arg1[%c84_57] : memref<186xf32, #tpu.memory_space<smem>>
    %420 = vector.broadcast %419 : f32 to vector<1x128xf32>
    %421 = arith.mulf %394, %420 : vector<1x128xf32>
    %422 = arith.addf %382, %421 : vector<1x128xf32>
    %c120_58 = arith.constant 120 : index
    %423 = memref.load %arg1[%c120_58] : memref<186xf32, #tpu.memory_space<smem>>
    %424 = vector.broadcast %423 : f32 to vector<1x128xf32>
    %425 = arith.mulf %394, %424 : vector<1x128xf32>
    %426 = arith.addf %386, %425 : vector<1x128xf32>
    %c156_59 = arith.constant 156 : index
    %427 = memref.load %arg1[%c156_59] : memref<186xf32, #tpu.memory_space<smem>>
    %428 = vector.broadcast %427 : f32 to vector<1x128xf32>
    %429 = arith.mulf %394, %428 : vector<1x128xf32>
    %430 = arith.addf %390, %429 : vector<1x128xf32>
    %c255_i32_60 = arith.constant 255 : i32
    %431 = tpu.dynamic_rotate %391 by %c255_i32_60 dim 1 : vector<1x256xf32>, i32 -> vector<1x256xf32>
    %432 = vector.extract_strided_slice %431 {offsets = [0, 0], sizes = [1, 128], strides = [1, 1]} : vector<1x256xf32> to vector<1x128xf32>
    %c255_i32_61 = arith.constant 255 : i32
    %433 = tpu.dynamic_rotate %392 by %c255_i32_61 dim 1 : vector<1x256xf32>, i32 -> vector<1x256xf32>
    %434 = vector.extract_strided_slice %433 {offsets = [0, 0], sizes = [1, 128], strides = [1, 1]} : vector<1x256xf32> to vector<1x128xf32>
    %c10 = arith.constant 10 : index
    %435 = memref.load %arg1[%c10] : memref<186xf32, #tpu.memory_space<smem>>
    %436 = vector.broadcast %435 : f32 to vector<1x128xf32>
    %437 = arith.mulf %432, %436 : vector<1x128xf32>
    %438 = arith.addf %398, %437 : vector<1x128xf32>
    %c48 = arith.constant 48 : index
    %439 = memref.load %arg1[%c48] : memref<186xf32, #tpu.memory_space<smem>>
    %440 = vector.broadcast %439 : f32 to vector<1x128xf32>
    %441 = arith.mulf %432, %440 : vector<1x128xf32>
    %442 = arith.addf %402, %441 : vector<1x128xf32>
    %c85 = arith.constant 85 : index
    %443 = memref.load %arg1[%c85] : memref<186xf32, #tpu.memory_space<smem>>
    %444 = vector.broadcast %443 : f32 to vector<1x128xf32>
    %445 = arith.mulf %432, %444 : vector<1x128xf32>
    %446 = arith.addf %406, %445 : vector<1x128xf32>
    %c121 = arith.constant 121 : index
    %447 = memref.load %arg1[%c121] : memref<186xf32, #tpu.memory_space<smem>>
    %448 = vector.broadcast %447 : f32 to vector<1x128xf32>
    %449 = arith.mulf %432, %448 : vector<1x128xf32>
    %450 = arith.addf %410, %449 : vector<1x128xf32>
    %c157 = arith.constant 157 : index
    %451 = memref.load %arg1[%c157] : memref<186xf32, #tpu.memory_space<smem>>
    %452 = vector.broadcast %451 : f32 to vector<1x128xf32>
    %453 = arith.mulf %432, %452 : vector<1x128xf32>
    %454 = arith.addf %414, %453 : vector<1x128xf32>
    %c48_62 = arith.constant 48 : index
    %455 = memref.load %arg1[%c48_62] : memref<186xf32, #tpu.memory_space<smem>>
    %456 = vector.broadcast %455 : f32 to vector<1x128xf32>
    %457 = arith.mulf %434, %456 : vector<1x128xf32>
    %458 = arith.addf %418, %457 : vector<1x128xf32>
    %c85_63 = arith.constant 85 : index
    %459 = memref.load %arg1[%c85_63] : memref<186xf32, #tpu.memory_space<smem>>
    %460 = vector.broadcast %459 : f32 to vector<1x128xf32>
    %461 = arith.mulf %434, %460 : vector<1x128xf32>
    %462 = arith.addf %422, %461 : vector<1x128xf32>
    %c121_64 = arith.constant 121 : index
    %463 = memref.load %arg1[%c121_64] : memref<186xf32, #tpu.memory_space<smem>>
    %464 = vector.broadcast %463 : f32 to vector<1x128xf32>
    %465 = arith.mulf %434, %464 : vector<1x128xf32>
    %466 = arith.addf %426, %465 : vector<1x128xf32>
    %c157_65 = arith.constant 157 : index
    %467 = memref.load %arg1[%c157_65] : memref<186xf32, #tpu.memory_space<smem>>
    %468 = vector.broadcast %467 : f32 to vector<1x128xf32>
    %469 = arith.mulf %434, %468 : vector<1x128xf32>
    %470 = arith.addf %430, %469 : vector<1x128xf32>
    %c254_i32_66 = arith.constant 254 : i32
    %471 = tpu.dynamic_rotate %391 by %c254_i32_66 dim 1 : vector<1x256xf32>, i32 -> vector<1x256xf32>
    %472 = vector.extract_strided_slice %471 {offsets = [0, 0], sizes = [1, 128], strides = [1, 1]} : vector<1x256xf32> to vector<1x128xf32>
    %c254_i32_67 = arith.constant 254 : i32
    %473 = tpu.dynamic_rotate %392 by %c254_i32_67 dim 1 : vector<1x256xf32>, i32 -> vector<1x256xf32>
    %474 = vector.extract_strided_slice %473 {offsets = [0, 0], sizes = [1, 128], strides = [1, 1]} : vector<1x256xf32> to vector<1x128xf32>
    %c11 = arith.constant 11 : index
    %475 = memref.load %arg1[%c11] : memref<186xf32, #tpu.memory_space<smem>>
    %476 = vector.broadcast %475 : f32 to vector<1x128xf32>
    %477 = arith.mulf %472, %476 : vector<1x128xf32>
    %478 = arith.addf %438, %477 : vector<1x128xf32>
    %c49 = arith.constant 49 : index
    %479 = memref.load %arg1[%c49] : memref<186xf32, #tpu.memory_space<smem>>
    %480 = vector.broadcast %479 : f32 to vector<1x128xf32>
    %481 = arith.mulf %472, %480 : vector<1x128xf32>
    %482 = arith.addf %442, %481 : vector<1x128xf32>
    %c86 = arith.constant 86 : index
    %483 = memref.load %arg1[%c86] : memref<186xf32, #tpu.memory_space<smem>>
    %484 = vector.broadcast %483 : f32 to vector<1x128xf32>
    %485 = arith.mulf %472, %484 : vector<1x128xf32>
    %486 = arith.addf %446, %485 : vector<1x128xf32>
    %c122 = arith.constant 122 : index
    %487 = memref.load %arg1[%c122] : memref<186xf32, #tpu.memory_space<smem>>
    %488 = vector.broadcast %487 : f32 to vector<1x128xf32>
    %489 = arith.mulf %472, %488 : vector<1x128xf32>
    %490 = arith.addf %450, %489 : vector<1x128xf32>
    %c158 = arith.constant 158 : index
    %491 = memref.load %arg1[%c158] : memref<186xf32, #tpu.memory_space<smem>>
    %492 = vector.broadcast %491 : f32 to vector<1x128xf32>
    %493 = arith.mulf %472, %492 : vector<1x128xf32>
    %494 = arith.addf %454, %493 : vector<1x128xf32>
    %c49_68 = arith.constant 49 : index
    %495 = memref.load %arg1[%c49_68] : memref<186xf32, #tpu.memory_space<smem>>
    %496 = vector.broadcast %495 : f32 to vector<1x128xf32>
    %497 = arith.mulf %474, %496 : vector<1x128xf32>
    %498 = arith.addf %458, %497 : vector<1x128xf32>
    %c86_69 = arith.constant 86 : index
    %499 = memref.load %arg1[%c86_69] : memref<186xf32, #tpu.memory_space<smem>>
    %500 = vector.broadcast %499 : f32 to vector<1x128xf32>
    %501 = arith.mulf %474, %500 : vector<1x128xf32>
    %502 = arith.addf %462, %501 : vector<1x128xf32>
    %c122_70 = arith.constant 122 : index
    %503 = memref.load %arg1[%c122_70] : memref<186xf32, #tpu.memory_space<smem>>
    %504 = vector.broadcast %503 : f32 to vector<1x128xf32>
    %505 = arith.mulf %474, %504 : vector<1x128xf32>
    %506 = arith.addf %466, %505 : vector<1x128xf32>
    %c158_71 = arith.constant 158 : index
    %507 = memref.load %arg1[%c158_71] : memref<186xf32, #tpu.memory_space<smem>>
    %508 = vector.broadcast %507 : f32 to vector<1x128xf32>
    %509 = arith.mulf %474, %508 : vector<1x128xf32>
    %510 = arith.addf %470, %509 : vector<1x128xf32>
    %c247_i32_72 = arith.constant 247 : i32
    %511 = tpu.dynamic_rotate %391 by %c247_i32_72 dim 1 : vector<1x256xf32>, i32 -> vector<1x256xf32>
    %512 = vector.extract_strided_slice %511 {offsets = [0, 0], sizes = [1, 128], strides = [1, 1]} : vector<1x256xf32> to vector<1x128xf32>
    %c247_i32_73 = arith.constant 247 : i32
    %513 = tpu.dynamic_rotate %392 by %c247_i32_73 dim 1 : vector<1x256xf32>, i32 -> vector<1x256xf32>
    %514 = vector.extract_strided_slice %513 {offsets = [0, 0], sizes = [1, 128], strides = [1, 1]} : vector<1x256xf32> to vector<1x128xf32>
    %c12 = arith.constant 12 : index
    %515 = memref.load %arg1[%c12] : memref<186xf32, #tpu.memory_space<smem>>
    %516 = vector.broadcast %515 : f32 to vector<1x128xf32>
    %517 = arith.mulf %512, %516 : vector<1x128xf32>
    %518 = arith.addf %478, %517 : vector<1x128xf32>
    %c50 = arith.constant 50 : index
    %519 = memref.load %arg1[%c50] : memref<186xf32, #tpu.memory_space<smem>>
    %520 = vector.broadcast %519 : f32 to vector<1x128xf32>
    %521 = arith.mulf %512, %520 : vector<1x128xf32>
    %522 = arith.addf %482, %521 : vector<1x128xf32>
    %c87 = arith.constant 87 : index
    %523 = memref.load %arg1[%c87] : memref<186xf32, #tpu.memory_space<smem>>
    %524 = vector.broadcast %523 : f32 to vector<1x128xf32>
    %525 = arith.mulf %512, %524 : vector<1x128xf32>
    %526 = arith.addf %486, %525 : vector<1x128xf32>
    %c123 = arith.constant 123 : index
    %527 = memref.load %arg1[%c123] : memref<186xf32, #tpu.memory_space<smem>>
    %528 = vector.broadcast %527 : f32 to vector<1x128xf32>
    %529 = arith.mulf %512, %528 : vector<1x128xf32>
    %530 = arith.addf %490, %529 : vector<1x128xf32>
    %c159 = arith.constant 159 : index
    %531 = memref.load %arg1[%c159] : memref<186xf32, #tpu.memory_space<smem>>
    %532 = vector.broadcast %531 : f32 to vector<1x128xf32>
    %533 = arith.mulf %512, %532 : vector<1x128xf32>
    %534 = arith.addf %494, %533 : vector<1x128xf32>
    %c50_74 = arith.constant 50 : index
    %535 = memref.load %arg1[%c50_74] : memref<186xf32, #tpu.memory_space<smem>>
    %536 = vector.broadcast %535 : f32 to vector<1x128xf32>
    %537 = arith.mulf %514, %536 : vector<1x128xf32>
    %538 = arith.addf %498, %537 : vector<1x128xf32>
    %c87_75 = arith.constant 87 : index
    %539 = memref.load %arg1[%c87_75] : memref<186xf32, #tpu.memory_space<smem>>
    %540 = vector.broadcast %539 : f32 to vector<1x128xf32>
    %541 = arith.mulf %514, %540 : vector<1x128xf32>
    %542 = arith.addf %502, %541 : vector<1x128xf32>
    %c123_76 = arith.constant 123 : index
    %543 = memref.load %arg1[%c123_76] : memref<186xf32, #tpu.memory_space<smem>>
    %544 = vector.broadcast %543 : f32 to vector<1x128xf32>
    %545 = arith.mulf %514, %544 : vector<1x128xf32>
    %546 = arith.addf %506, %545 : vector<1x128xf32>
    %c159_77 = arith.constant 159 : index
    %547 = memref.load %arg1[%c159_77] : memref<186xf32, #tpu.memory_space<smem>>
    %548 = vector.broadcast %547 : f32 to vector<1x128xf32>
    %549 = arith.mulf %514, %548 : vector<1x128xf32>
    %550 = arith.addf %510, %549 : vector<1x128xf32>
    %c246_i32_78 = arith.constant 246 : i32
    %551 = tpu.dynamic_rotate %391 by %c246_i32_78 dim 1 : vector<1x256xf32>, i32 -> vector<1x256xf32>
    %552 = vector.extract_strided_slice %551 {offsets = [0, 0], sizes = [1, 128], strides = [1, 1]} : vector<1x256xf32> to vector<1x128xf32>
    %c246_i32_79 = arith.constant 246 : i32
    %553 = tpu.dynamic_rotate %392 by %c246_i32_79 dim 1 : vector<1x256xf32>, i32 -> vector<1x256xf32>
    %554 = vector.extract_strided_slice %553 {offsets = [0, 0], sizes = [1, 128], strides = [1, 1]} : vector<1x256xf32> to vector<1x128xf32>
    %c13 = arith.constant 13 : index
    %555 = memref.load %arg1[%c13] : memref<186xf32, #tpu.memory_space<smem>>
    %556 = vector.broadcast %555 : f32 to vector<1x128xf32>
    %557 = arith.mulf %552, %556 : vector<1x128xf32>
    %558 = arith.addf %518, %557 : vector<1x128xf32>
    %c51 = arith.constant 51 : index
    %559 = memref.load %arg1[%c51] : memref<186xf32, #tpu.memory_space<smem>>
    %560 = vector.broadcast %559 : f32 to vector<1x128xf32>
    %561 = arith.mulf %552, %560 : vector<1x128xf32>
    %562 = arith.addf %522, %561 : vector<1x128xf32>
    %c88 = arith.constant 88 : index
    %563 = memref.load %arg1[%c88] : memref<186xf32, #tpu.memory_space<smem>>
    %564 = vector.broadcast %563 : f32 to vector<1x128xf32>
    %565 = arith.mulf %552, %564 : vector<1x128xf32>
    %566 = arith.addf %526, %565 : vector<1x128xf32>
    %c124 = arith.constant 124 : index
    %567 = memref.load %arg1[%c124] : memref<186xf32, #tpu.memory_space<smem>>
    %568 = vector.broadcast %567 : f32 to vector<1x128xf32>
    %569 = arith.mulf %552, %568 : vector<1x128xf32>
    %570 = arith.addf %530, %569 : vector<1x128xf32>
    %c160 = arith.constant 160 : index
    %571 = memref.load %arg1[%c160] : memref<186xf32, #tpu.memory_space<smem>>
    %572 = vector.broadcast %571 : f32 to vector<1x128xf32>
    %573 = arith.mulf %552, %572 : vector<1x128xf32>
    %574 = arith.addf %534, %573 : vector<1x128xf32>
    %c51_80 = arith.constant 51 : index
    %575 = memref.load %arg1[%c51_80] : memref<186xf32, #tpu.memory_space<smem>>
    %576 = vector.broadcast %575 : f32 to vector<1x128xf32>
    %577 = arith.mulf %554, %576 : vector<1x128xf32>
    %578 = arith.addf %538, %577 : vector<1x128xf32>
    %c88_81 = arith.constant 88 : index
    %579 = memref.load %arg1[%c88_81] : memref<186xf32, #tpu.memory_space<smem>>
    %580 = vector.broadcast %579 : f32 to vector<1x128xf32>
    %581 = arith.mulf %554, %580 : vector<1x128xf32>
    %582 = arith.addf %542, %581 : vector<1x128xf32>
    %c124_82 = arith.constant 124 : index
    %583 = memref.load %arg1[%c124_82] : memref<186xf32, #tpu.memory_space<smem>>
    %584 = vector.broadcast %583 : f32 to vector<1x128xf32>
    %585 = arith.mulf %554, %584 : vector<1x128xf32>
    %586 = arith.addf %546, %585 : vector<1x128xf32>
    %c160_83 = arith.constant 160 : index
    %587 = memref.load %arg1[%c160_83] : memref<186xf32, #tpu.memory_space<smem>>
    %588 = vector.broadcast %587 : f32 to vector<1x128xf32>
    %589 = arith.mulf %554, %588 : vector<1x128xf32>
    %590 = arith.addf %550, %589 : vector<1x128xf32>
    %c245_i32_84 = arith.constant 245 : i32
    %591 = tpu.dynamic_rotate %391 by %c245_i32_84 dim 1 : vector<1x256xf32>, i32 -> vector<1x256xf32>
    %592 = vector.extract_strided_slice %591 {offsets = [0, 0], sizes = [1, 128], strides = [1, 1]} : vector<1x256xf32> to vector<1x128xf32>
    %c245_i32_85 = arith.constant 245 : i32
    %593 = tpu.dynamic_rotate %392 by %c245_i32_85 dim 1 : vector<1x256xf32>, i32 -> vector<1x256xf32>
    %594 = vector.extract_strided_slice %593 {offsets = [0, 0], sizes = [1, 128], strides = [1, 1]} : vector<1x256xf32> to vector<1x128xf32>
    %c14 = arith.constant 14 : index
    %595 = memref.load %arg1[%c14] : memref<186xf32, #tpu.memory_space<smem>>
    %596 = vector.broadcast %595 : f32 to vector<1x128xf32>
    %597 = arith.mulf %592, %596 : vector<1x128xf32>
    %598 = arith.addf %558, %597 : vector<1x128xf32>
    %c52 = arith.constant 52 : index
    %599 = memref.load %arg1[%c52] : memref<186xf32, #tpu.memory_space<smem>>
    %600 = vector.broadcast %599 : f32 to vector<1x128xf32>
    %601 = arith.mulf %592, %600 : vector<1x128xf32>
    %602 = arith.addf %562, %601 : vector<1x128xf32>
    %c89 = arith.constant 89 : index
    %603 = memref.load %arg1[%c89] : memref<186xf32, #tpu.memory_space<smem>>
    %604 = vector.broadcast %603 : f32 to vector<1x128xf32>
    %605 = arith.mulf %592, %604 : vector<1x128xf32>
    %606 = arith.addf %566, %605 : vector<1x128xf32>
    %c125 = arith.constant 125 : index
    %607 = memref.load %arg1[%c125] : memref<186xf32, #tpu.memory_space<smem>>
    %608 = vector.broadcast %607 : f32 to vector<1x128xf32>
    %609 = arith.mulf %592, %608 : vector<1x128xf32>
    %610 = arith.addf %570, %609 : vector<1x128xf32>
    %c161 = arith.constant 161 : index
    %611 = memref.load %arg1[%c161] : memref<186xf32, #tpu.memory_space<smem>>
    %612 = vector.broadcast %611 : f32 to vector<1x128xf32>
    %613 = arith.mulf %592, %612 : vector<1x128xf32>
    %614 = arith.addf %574, %613 : vector<1x128xf32>
    %c52_86 = arith.constant 52 : index
    %615 = memref.load %arg1[%c52_86] : memref<186xf32, #tpu.memory_space<smem>>
    %616 = vector.broadcast %615 : f32 to vector<1x128xf32>
    %617 = arith.mulf %594, %616 : vector<1x128xf32>
    %618 = arith.addf %578, %617 : vector<1x128xf32>
    %c89_87 = arith.constant 89 : index
    %619 = memref.load %arg1[%c89_87] : memref<186xf32, #tpu.memory_space<smem>>
    %620 = vector.broadcast %619 : f32 to vector<1x128xf32>
    %621 = arith.mulf %594, %620 : vector<1x128xf32>
    %622 = arith.addf %582, %621 : vector<1x128xf32>
    %c125_88 = arith.constant 125 : index
    %623 = memref.load %arg1[%c125_88] : memref<186xf32, #tpu.memory_space<smem>>
    %624 = vector.broadcast %623 : f32 to vector<1x128xf32>
    %625 = arith.mulf %594, %624 : vector<1x128xf32>
    %626 = arith.addf %586, %625 : vector<1x128xf32>
    %c161_89 = arith.constant 161 : index
    %627 = memref.load %arg1[%c161_89] : memref<186xf32, #tpu.memory_space<smem>>
    %628 = vector.broadcast %627 : f32 to vector<1x128xf32>
    %629 = arith.mulf %594, %628 : vector<1x128xf32>
    %630 = arith.addf %590, %629 : vector<1x128xf32>
    %c238_i32_90 = arith.constant 238 : i32
    %631 = tpu.dynamic_rotate %391 by %c238_i32_90 dim 1 : vector<1x256xf32>, i32 -> vector<1x256xf32>
    %632 = vector.extract_strided_slice %631 {offsets = [0, 0], sizes = [1, 128], strides = [1, 1]} : vector<1x256xf32> to vector<1x128xf32>
    %c238_i32_91 = arith.constant 238 : i32
    %633 = tpu.dynamic_rotate %392 by %c238_i32_91 dim 1 : vector<1x256xf32>, i32 -> vector<1x256xf32>
    %634 = vector.extract_strided_slice %633 {offsets = [0, 0], sizes = [1, 128], strides = [1, 1]} : vector<1x256xf32> to vector<1x128xf32>
    %c15 = arith.constant 15 : index
    %635 = memref.load %arg1[%c15] : memref<186xf32, #tpu.memory_space<smem>>
    %636 = vector.broadcast %635 : f32 to vector<1x128xf32>
    %637 = arith.mulf %632, %636 : vector<1x128xf32>
    %638 = arith.addf %598, %637 : vector<1x128xf32>
    %c53 = arith.constant 53 : index
    %639 = memref.load %arg1[%c53] : memref<186xf32, #tpu.memory_space<smem>>
    %640 = vector.broadcast %639 : f32 to vector<1x128xf32>
    %641 = arith.mulf %632, %640 : vector<1x128xf32>
    %642 = arith.addf %602, %641 : vector<1x128xf32>
    %c90 = arith.constant 90 : index
    %643 = memref.load %arg1[%c90] : memref<186xf32, #tpu.memory_space<smem>>
    %644 = vector.broadcast %643 : f32 to vector<1x128xf32>
    %645 = arith.mulf %632, %644 : vector<1x128xf32>
    %646 = arith.addf %606, %645 : vector<1x128xf32>
    %c126 = arith.constant 126 : index
    %647 = memref.load %arg1[%c126] : memref<186xf32, #tpu.memory_space<smem>>
    %648 = vector.broadcast %647 : f32 to vector<1x128xf32>
    %649 = arith.mulf %632, %648 : vector<1x128xf32>
    %650 = arith.addf %610, %649 : vector<1x128xf32>
    %c162 = arith.constant 162 : index
    %651 = memref.load %arg1[%c162] : memref<186xf32, #tpu.memory_space<smem>>
    %652 = vector.broadcast %651 : f32 to vector<1x128xf32>
    %653 = arith.mulf %632, %652 : vector<1x128xf32>
    %654 = arith.addf %614, %653 : vector<1x128xf32>
    %c53_92 = arith.constant 53 : index
    %655 = memref.load %arg1[%c53_92] : memref<186xf32, #tpu.memory_space<smem>>
    %656 = vector.broadcast %655 : f32 to vector<1x128xf32>
    %657 = arith.mulf %634, %656 : vector<1x128xf32>
    %658 = arith.addf %618, %657 : vector<1x128xf32>
    %c90_93 = arith.constant 90 : index
    %659 = memref.load %arg1[%c90_93] : memref<186xf32, #tpu.memory_space<smem>>
    %660 = vector.broadcast %659 : f32 to vector<1x128xf32>
    %661 = arith.mulf %634, %660 : vector<1x128xf32>
    %662 = arith.addf %622, %661 : vector<1x128xf32>
    %c126_94 = arith.constant 126 : index
    %663 = memref.load %arg1[%c126_94] : memref<186xf32, #tpu.memory_space<smem>>
    %664 = vector.broadcast %663 : f32 to vector<1x128xf32>
    %665 = arith.mulf %634, %664 : vector<1x128xf32>
    %666 = arith.addf %626, %665 : vector<1x128xf32>
    %c162_95 = arith.constant 162 : index
    %667 = memref.load %arg1[%c162_95] : memref<186xf32, #tpu.memory_space<smem>>
    %668 = vector.broadcast %667 : f32 to vector<1x128xf32>
    %669 = arith.mulf %634, %668 : vector<1x128xf32>
    %670 = arith.addf %630, %669 : vector<1x128xf32>
    %c237_i32_96 = arith.constant 237 : i32
    %671 = tpu.dynamic_rotate %391 by %c237_i32_96 dim 1 : vector<1x256xf32>, i32 -> vector<1x256xf32>
    %672 = vector.extract_strided_slice %671 {offsets = [0, 0], sizes = [1, 128], strides = [1, 1]} : vector<1x256xf32> to vector<1x128xf32>
    %c237_i32_97 = arith.constant 237 : i32
    %673 = tpu.dynamic_rotate %392 by %c237_i32_97 dim 1 : vector<1x256xf32>, i32 -> vector<1x256xf32>
    %674 = vector.extract_strided_slice %673 {offsets = [0, 0], sizes = [1, 128], strides = [1, 1]} : vector<1x256xf32> to vector<1x128xf32>
    %c16 = arith.constant 16 : index
    %675 = memref.load %arg1[%c16] : memref<186xf32, #tpu.memory_space<smem>>
    %676 = vector.broadcast %675 : f32 to vector<1x128xf32>
    %677 = arith.mulf %672, %676 : vector<1x128xf32>
    %678 = arith.addf %638, %677 : vector<1x128xf32>
    %c54 = arith.constant 54 : index
    %679 = memref.load %arg1[%c54] : memref<186xf32, #tpu.memory_space<smem>>
    %680 = vector.broadcast %679 : f32 to vector<1x128xf32>
    %681 = arith.mulf %672, %680 : vector<1x128xf32>
    %682 = arith.addf %642, %681 : vector<1x128xf32>
    %c91 = arith.constant 91 : index
    %683 = memref.load %arg1[%c91] : memref<186xf32, #tpu.memory_space<smem>>
    %684 = vector.broadcast %683 : f32 to vector<1x128xf32>
    %685 = arith.mulf %672, %684 : vector<1x128xf32>
    %686 = arith.addf %646, %685 : vector<1x128xf32>
    %c127 = arith.constant 127 : index
    %687 = memref.load %arg1[%c127] : memref<186xf32, #tpu.memory_space<smem>>
    %688 = vector.broadcast %687 : f32 to vector<1x128xf32>
    %689 = arith.mulf %672, %688 : vector<1x128xf32>
    %690 = arith.addf %650, %689 : vector<1x128xf32>
    %c163 = arith.constant 163 : index
    %691 = memref.load %arg1[%c163] : memref<186xf32, #tpu.memory_space<smem>>
    %692 = vector.broadcast %691 : f32 to vector<1x128xf32>
    %693 = arith.mulf %672, %692 : vector<1x128xf32>
    %694 = arith.addf %654, %693 : vector<1x128xf32>
    %c54_98 = arith.constant 54 : index
    %695 = memref.load %arg1[%c54_98] : memref<186xf32, #tpu.memory_space<smem>>
    %696 = vector.broadcast %695 : f32 to vector<1x128xf32>
    %697 = arith.mulf %674, %696 : vector<1x128xf32>
    %698 = arith.addf %658, %697 : vector<1x128xf32>
    %c91_99 = arith.constant 91 : index
    %699 = memref.load %arg1[%c91_99] : memref<186xf32, #tpu.memory_space<smem>>
    %700 = vector.broadcast %699 : f32 to vector<1x128xf32>
    %701 = arith.mulf %674, %700 : vector<1x128xf32>
    %702 = arith.addf %662, %701 : vector<1x128xf32>
    %c127_100 = arith.constant 127 : index
    %703 = memref.load %arg1[%c127_100] : memref<186xf32, #tpu.memory_space<smem>>
    %704 = vector.broadcast %703 : f32 to vector<1x128xf32>
    %705 = arith.mulf %674, %704 : vector<1x128xf32>
    %706 = arith.addf %666, %705 : vector<1x128xf32>
    %c163_101 = arith.constant 163 : index
    %707 = memref.load %arg1[%c163_101] : memref<186xf32, #tpu.memory_space<smem>>
    %708 = vector.broadcast %707 : f32 to vector<1x128xf32>
    %709 = arith.mulf %674, %708 : vector<1x128xf32>
    %710 = arith.addf %670, %709 : vector<1x128xf32>
    %c236_i32_102 = arith.constant 236 : i32
    %711 = tpu.dynamic_rotate %391 by %c236_i32_102 dim 1 : vector<1x256xf32>, i32 -> vector<1x256xf32>
    %712 = vector.extract_strided_slice %711 {offsets = [0, 0], sizes = [1, 128], strides = [1, 1]} : vector<1x256xf32> to vector<1x128xf32>
    %c236_i32_103 = arith.constant 236 : i32
    %713 = tpu.dynamic_rotate %392 by %c236_i32_103 dim 1 : vector<1x256xf32>, i32 -> vector<1x256xf32>
    %714 = vector.extract_strided_slice %713 {offsets = [0, 0], sizes = [1, 128], strides = [1, 1]} : vector<1x256xf32> to vector<1x128xf32>
    %c17 = arith.constant 17 : index
    %715 = memref.load %arg1[%c17] : memref<186xf32, #tpu.memory_space<smem>>
    %716 = vector.broadcast %715 : f32 to vector<1x128xf32>
    %717 = arith.mulf %712, %716 : vector<1x128xf32>
    %718 = arith.addf %678, %717 : vector<1x128xf32>
    %c55 = arith.constant 55 : index
    %719 = memref.load %arg1[%c55] : memref<186xf32, #tpu.memory_space<smem>>
    %720 = vector.broadcast %719 : f32 to vector<1x128xf32>
    %721 = arith.mulf %712, %720 : vector<1x128xf32>
    %722 = arith.addf %682, %721 : vector<1x128xf32>
    %c92 = arith.constant 92 : index
    %723 = memref.load %arg1[%c92] : memref<186xf32, #tpu.memory_space<smem>>
    %724 = vector.broadcast %723 : f32 to vector<1x128xf32>
    %725 = arith.mulf %712, %724 : vector<1x128xf32>
    %726 = arith.addf %686, %725 : vector<1x128xf32>
    %c128 = arith.constant 128 : index
    %727 = memref.load %arg1[%c128] : memref<186xf32, #tpu.memory_space<smem>>
    %728 = vector.broadcast %727 : f32 to vector<1x128xf32>
    %729 = arith.mulf %712, %728 : vector<1x128xf32>
    %730 = arith.addf %690, %729 : vector<1x128xf32>
    %c164 = arith.constant 164 : index
    %731 = memref.load %arg1[%c164] : memref<186xf32, #tpu.memory_space<smem>>
    %732 = vector.broadcast %731 : f32 to vector<1x128xf32>
    %733 = arith.mulf %712, %732 : vector<1x128xf32>
    %734 = arith.addf %694, %733 : vector<1x128xf32>
    %c55_104 = arith.constant 55 : index
    %735 = memref.load %arg1[%c55_104] : memref<186xf32, #tpu.memory_space<smem>>
    %736 = vector.broadcast %735 : f32 to vector<1x128xf32>
    %737 = arith.mulf %714, %736 : vector<1x128xf32>
    %738 = arith.addf %698, %737 : vector<1x128xf32>
    %c92_105 = arith.constant 92 : index
    %739 = memref.load %arg1[%c92_105] : memref<186xf32, #tpu.memory_space<smem>>
    %740 = vector.broadcast %739 : f32 to vector<1x128xf32>
    %741 = arith.mulf %714, %740 : vector<1x128xf32>
    %742 = arith.addf %702, %741 : vector<1x128xf32>
    %c128_106 = arith.constant 128 : index
    %743 = memref.load %arg1[%c128_106] : memref<186xf32, #tpu.memory_space<smem>>
    %744 = vector.broadcast %743 : f32 to vector<1x128xf32>
    %745 = arith.mulf %714, %744 : vector<1x128xf32>
    %746 = arith.addf %706, %745 : vector<1x128xf32>
    %c164_107 = arith.constant 164 : index
    %747 = memref.load %arg1[%c164_107] : memref<186xf32, #tpu.memory_space<smem>>
    %748 = vector.broadcast %747 : f32 to vector<1x128xf32>
    %749 = arith.mulf %714, %748 : vector<1x128xf32>
    %750 = arith.addf %710, %749 : vector<1x128xf32>
    %c2_108 = arith.constant 2 : index
    %c0_109 = arith.constant 0 : index
    %751 = vector.load %arg0[%c2_108, %c0_109] : memref<8x256xf32, #tpu.memory_space<vmem>>, vector<1x256xf32>
    %c6_110 = arith.constant 6 : index
    %c0_111 = arith.constant 0 : index
    %752 = vector.load %arg0[%c6_110, %c0_111] : memref<8x256xf32, #tpu.memory_space<vmem>>, vector<1x256xf32>
    %753 = vector.extract_strided_slice %751 {offsets = [0, 0], sizes = [1, 128], strides = [1, 1]} : vector<1x256xf32> to vector<1x128xf32>
    %754 = vector.extract_strided_slice %752 {offsets = [0, 0], sizes = [1, 128], strides = [1, 1]} : vector<1x256xf32> to vector<1x128xf32>
    %c18 = arith.constant 18 : index
    %755 = memref.load %arg1[%c18] : memref<186xf32, #tpu.memory_space<smem>>
    %756 = vector.broadcast %755 : f32 to vector<1x128xf32>
    %757 = arith.mulf %753, %756 : vector<1x128xf32>
    %758 = arith.addf %6, %757 : vector<1x128xf32>
    %c56 = arith.constant 56 : index
    %759 = memref.load %arg1[%c56] : memref<186xf32, #tpu.memory_space<smem>>
    %760 = vector.broadcast %759 : f32 to vector<1x128xf32>
    %761 = arith.mulf %753, %760 : vector<1x128xf32>
    %762 = arith.addf %722, %761 : vector<1x128xf32>
    %c93 = arith.constant 93 : index
    %763 = memref.load %arg1[%c93] : memref<186xf32, #tpu.memory_space<smem>>
    %764 = vector.broadcast %763 : f32 to vector<1x128xf32>
    %765 = arith.mulf %753, %764 : vector<1x128xf32>
    %766 = arith.addf %726, %765 : vector<1x128xf32>
    %c129 = arith.constant 129 : index
    %767 = memref.load %arg1[%c129] : memref<186xf32, #tpu.memory_space<smem>>
    %768 = vector.broadcast %767 : f32 to vector<1x128xf32>
    %769 = arith.mulf %753, %768 : vector<1x128xf32>
    %770 = arith.addf %730, %769 : vector<1x128xf32>
    %c165 = arith.constant 165 : index
    %771 = memref.load %arg1[%c165] : memref<186xf32, #tpu.memory_space<smem>>
    %772 = vector.broadcast %771 : f32 to vector<1x128xf32>
    %773 = arith.mulf %753, %772 : vector<1x128xf32>
    %774 = arith.addf %734, %773 : vector<1x128xf32>
    %c56_112 = arith.constant 56 : index
    %775 = memref.load %arg1[%c56_112] : memref<186xf32, #tpu.memory_space<smem>>
    %776 = vector.broadcast %775 : f32 to vector<1x128xf32>
    %777 = arith.mulf %754, %776 : vector<1x128xf32>
    %778 = arith.addf %738, %777 : vector<1x128xf32>
    %c93_113 = arith.constant 93 : index
    %779 = memref.load %arg1[%c93_113] : memref<186xf32, #tpu.memory_space<smem>>
    %780 = vector.broadcast %779 : f32 to vector<1x128xf32>
    %781 = arith.mulf %754, %780 : vector<1x128xf32>
    %782 = arith.addf %742, %781 : vector<1x128xf32>
    %c129_114 = arith.constant 129 : index
    %783 = memref.load %arg1[%c129_114] : memref<186xf32, #tpu.memory_space<smem>>
    %784 = vector.broadcast %783 : f32 to vector<1x128xf32>
    %785 = arith.mulf %754, %784 : vector<1x128xf32>
    %786 = arith.addf %746, %785 : vector<1x128xf32>
    %c165_115 = arith.constant 165 : index
    %787 = memref.load %arg1[%c165_115] : memref<186xf32, #tpu.memory_space<smem>>
    %788 = vector.broadcast %787 : f32 to vector<1x128xf32>
    %789 = arith.mulf %754, %788 : vector<1x128xf32>
    %790 = arith.addf %750, %789 : vector<1x128xf32>
    %c255_i32_116 = arith.constant 255 : i32
    %791 = tpu.dynamic_rotate %751 by %c255_i32_116 dim 1 : vector<1x256xf32>, i32 -> vector<1x256xf32>
    %792 = vector.extract_strided_slice %791 {offsets = [0, 0], sizes = [1, 128], strides = [1, 1]} : vector<1x256xf32> to vector<1x128xf32>
    %c255_i32_117 = arith.constant 255 : i32
    %793 = tpu.dynamic_rotate %752 by %c255_i32_117 dim 1 : vector<1x256xf32>, i32 -> vector<1x256xf32>
    %794 = vector.extract_strided_slice %793 {offsets = [0, 0], sizes = [1, 128], strides = [1, 1]} : vector<1x256xf32> to vector<1x128xf32>
    %c19 = arith.constant 19 : index
    %795 = memref.load %arg1[%c19] : memref<186xf32, #tpu.memory_space<smem>>
    %796 = vector.broadcast %795 : f32 to vector<1x128xf32>
    %797 = arith.mulf %792, %796 : vector<1x128xf32>
    %798 = arith.addf %758, %797 : vector<1x128xf32>
    %c57 = arith.constant 57 : index
    %799 = memref.load %arg1[%c57] : memref<186xf32, #tpu.memory_space<smem>>
    %800 = vector.broadcast %799 : f32 to vector<1x128xf32>
    %801 = arith.mulf %792, %800 : vector<1x128xf32>
    %802 = arith.addf %762, %801 : vector<1x128xf32>
    %c94 = arith.constant 94 : index
    %803 = memref.load %arg1[%c94] : memref<186xf32, #tpu.memory_space<smem>>
    %804 = vector.broadcast %803 : f32 to vector<1x128xf32>
    %805 = arith.mulf %792, %804 : vector<1x128xf32>
    %806 = arith.addf %766, %805 : vector<1x128xf32>
    %c130 = arith.constant 130 : index
    %807 = memref.load %arg1[%c130] : memref<186xf32, #tpu.memory_space<smem>>
    %808 = vector.broadcast %807 : f32 to vector<1x128xf32>
    %809 = arith.mulf %792, %808 : vector<1x128xf32>
    %810 = arith.addf %770, %809 : vector<1x128xf32>
    %c166 = arith.constant 166 : index
    %811 = memref.load %arg1[%c166] : memref<186xf32, #tpu.memory_space<smem>>
    %812 = vector.broadcast %811 : f32 to vector<1x128xf32>
    %813 = arith.mulf %792, %812 : vector<1x128xf32>
    %814 = arith.addf %774, %813 : vector<1x128xf32>
    %c57_118 = arith.constant 57 : index
    %815 = memref.load %arg1[%c57_118] : memref<186xf32, #tpu.memory_space<smem>>
    %816 = vector.broadcast %815 : f32 to vector<1x128xf32>
    %817 = arith.mulf %794, %816 : vector<1x128xf32>
    %818 = arith.addf %778, %817 : vector<1x128xf32>
    %c94_119 = arith.constant 94 : index
    %819 = memref.load %arg1[%c94_119] : memref<186xf32, #tpu.memory_space<smem>>
    %820 = vector.broadcast %819 : f32 to vector<1x128xf32>
    %821 = arith.mulf %794, %820 : vector<1x128xf32>
    %822 = arith.addf %782, %821 : vector<1x128xf32>
    %c130_120 = arith.constant 130 : index
    %823 = memref.load %arg1[%c130_120] : memref<186xf32, #tpu.memory_space<smem>>
    %824 = vector.broadcast %823 : f32 to vector<1x128xf32>
    %825 = arith.mulf %794, %824 : vector<1x128xf32>
    %826 = arith.addf %786, %825 : vector<1x128xf32>
    %c166_121 = arith.constant 166 : index
    %827 = memref.load %arg1[%c166_121] : memref<186xf32, #tpu.memory_space<smem>>
    %828 = vector.broadcast %827 : f32 to vector<1x128xf32>
    %829 = arith.mulf %794, %828 : vector<1x128xf32>
    %830 = arith.addf %790, %829 : vector<1x128xf32>
    %c254_i32_122 = arith.constant 254 : i32
    %831 = tpu.dynamic_rotate %751 by %c254_i32_122 dim 1 : vector<1x256xf32>, i32 -> vector<1x256xf32>
    %832 = vector.extract_strided_slice %831 {offsets = [0, 0], sizes = [1, 128], strides = [1, 1]} : vector<1x256xf32> to vector<1x128xf32>
    %c254_i32_123 = arith.constant 254 : i32
    %833 = tpu.dynamic_rotate %752 by %c254_i32_123 dim 1 : vector<1x256xf32>, i32 -> vector<1x256xf32>
    %834 = vector.extract_strided_slice %833 {offsets = [0, 0], sizes = [1, 128], strides = [1, 1]} : vector<1x256xf32> to vector<1x128xf32>
    %c20 = arith.constant 20 : index
    %835 = memref.load %arg1[%c20] : memref<186xf32, #tpu.memory_space<smem>>
    %836 = vector.broadcast %835 : f32 to vector<1x128xf32>
    %837 = arith.mulf %832, %836 : vector<1x128xf32>
    %838 = arith.addf %798, %837 : vector<1x128xf32>
    %c58 = arith.constant 58 : index
    %839 = memref.load %arg1[%c58] : memref<186xf32, #tpu.memory_space<smem>>
    %840 = vector.broadcast %839 : f32 to vector<1x128xf32>
    %841 = arith.mulf %832, %840 : vector<1x128xf32>
    %842 = arith.addf %802, %841 : vector<1x128xf32>
    %c95 = arith.constant 95 : index
    %843 = memref.load %arg1[%c95] : memref<186xf32, #tpu.memory_space<smem>>
    %844 = vector.broadcast %843 : f32 to vector<1x128xf32>
    %845 = arith.mulf %832, %844 : vector<1x128xf32>
    %846 = arith.addf %806, %845 : vector<1x128xf32>
    %c131 = arith.constant 131 : index
    %847 = memref.load %arg1[%c131] : memref<186xf32, #tpu.memory_space<smem>>
    %848 = vector.broadcast %847 : f32 to vector<1x128xf32>
    %849 = arith.mulf %832, %848 : vector<1x128xf32>
    %850 = arith.addf %810, %849 : vector<1x128xf32>
    %c167 = arith.constant 167 : index
    %851 = memref.load %arg1[%c167] : memref<186xf32, #tpu.memory_space<smem>>
    %852 = vector.broadcast %851 : f32 to vector<1x128xf32>
    %853 = arith.mulf %832, %852 : vector<1x128xf32>
    %854 = arith.addf %814, %853 : vector<1x128xf32>
    %c58_124 = arith.constant 58 : index
    %855 = memref.load %arg1[%c58_124] : memref<186xf32, #tpu.memory_space<smem>>
    %856 = vector.broadcast %855 : f32 to vector<1x128xf32>
    %857 = arith.mulf %834, %856 : vector<1x128xf32>
    %858 = arith.addf %818, %857 : vector<1x128xf32>
    %c95_125 = arith.constant 95 : index
    %859 = memref.load %arg1[%c95_125] : memref<186xf32, #tpu.memory_space<smem>>
    %860 = vector.broadcast %859 : f32 to vector<1x128xf32>
    %861 = arith.mulf %834, %860 : vector<1x128xf32>
    %862 = arith.addf %822, %861 : vector<1x128xf32>
    %c131_126 = arith.constant 131 : index
    %863 = memref.load %arg1[%c131_126] : memref<186xf32, #tpu.memory_space<smem>>
    %864 = vector.broadcast %863 : f32 to vector<1x128xf32>
    %865 = arith.mulf %834, %864 : vector<1x128xf32>
    %866 = arith.addf %826, %865 : vector<1x128xf32>
    %c167_127 = arith.constant 167 : index
    %867 = memref.load %arg1[%c167_127] : memref<186xf32, #tpu.memory_space<smem>>
    %868 = vector.broadcast %867 : f32 to vector<1x128xf32>
    %869 = arith.mulf %834, %868 : vector<1x128xf32>
    %870 = arith.addf %830, %869 : vector<1x128xf32>
    %c247_i32_128 = arith.constant 247 : i32
    %871 = tpu.dynamic_rotate %751 by %c247_i32_128 dim 1 : vector<1x256xf32>, i32 -> vector<1x256xf32>
    %872 = vector.extract_strided_slice %871 {offsets = [0, 0], sizes = [1, 128], strides = [1, 1]} : vector<1x256xf32> to vector<1x128xf32>
    %c247_i32_129 = arith.constant 247 : i32
    %873 = tpu.dynamic_rotate %752 by %c247_i32_129 dim 1 : vector<1x256xf32>, i32 -> vector<1x256xf32>
    %874 = vector.extract_strided_slice %873 {offsets = [0, 0], sizes = [1, 128], strides = [1, 1]} : vector<1x256xf32> to vector<1x128xf32>
    %c21 = arith.constant 21 : index
    %875 = memref.load %arg1[%c21] : memref<186xf32, #tpu.memory_space<smem>>
    %876 = vector.broadcast %875 : f32 to vector<1x128xf32>
    %877 = arith.mulf %872, %876 : vector<1x128xf32>
    %878 = arith.addf %838, %877 : vector<1x128xf32>
    %c59 = arith.constant 59 : index
    %879 = memref.load %arg1[%c59] : memref<186xf32, #tpu.memory_space<smem>>
    %880 = vector.broadcast %879 : f32 to vector<1x128xf32>
    %881 = arith.mulf %872, %880 : vector<1x128xf32>
    %882 = arith.addf %842, %881 : vector<1x128xf32>
    %c96 = arith.constant 96 : index
    %883 = memref.load %arg1[%c96] : memref<186xf32, #tpu.memory_space<smem>>
    %884 = vector.broadcast %883 : f32 to vector<1x128xf32>
    %885 = arith.mulf %872, %884 : vector<1x128xf32>
    %886 = arith.addf %846, %885 : vector<1x128xf32>
    %c132 = arith.constant 132 : index
    %887 = memref.load %arg1[%c132] : memref<186xf32, #tpu.memory_space<smem>>
    %888 = vector.broadcast %887 : f32 to vector<1x128xf32>
    %889 = arith.mulf %872, %888 : vector<1x128xf32>
    %890 = arith.addf %850, %889 : vector<1x128xf32>
    %c168 = arith.constant 168 : index
    %891 = memref.load %arg1[%c168] : memref<186xf32, #tpu.memory_space<smem>>
    %892 = vector.broadcast %891 : f32 to vector<1x128xf32>
    %893 = arith.mulf %872, %892 : vector<1x128xf32>
    %894 = arith.addf %854, %893 : vector<1x128xf32>
    %c59_130 = arith.constant 59 : index
    %895 = memref.load %arg1[%c59_130] : memref<186xf32, #tpu.memory_space<smem>>
    %896 = vector.broadcast %895 : f32 to vector<1x128xf32>
    %897 = arith.mulf %874, %896 : vector<1x128xf32>
    %898 = arith.addf %858, %897 : vector<1x128xf32>
    %c96_131 = arith.constant 96 : index
    %899 = memref.load %arg1[%c96_131] : memref<186xf32, #tpu.memory_space<smem>>
    %900 = vector.broadcast %899 : f32 to vector<1x128xf32>
    %901 = arith.mulf %874, %900 : vector<1x128xf32>
    %902 = arith.addf %862, %901 : vector<1x128xf32>
    %c132_132 = arith.constant 132 : index
    %903 = memref.load %arg1[%c132_132] : memref<186xf32, #tpu.memory_space<smem>>
    %904 = vector.broadcast %903 : f32 to vector<1x128xf32>
    %905 = arith.mulf %874, %904 : vector<1x128xf32>
    %906 = arith.addf %866, %905 : vector<1x128xf32>
    %c168_133 = arith.constant 168 : index
    %907 = memref.load %arg1[%c168_133] : memref<186xf32, #tpu.memory_space<smem>>
    %908 = vector.broadcast %907 : f32 to vector<1x128xf32>
    %909 = arith.mulf %874, %908 : vector<1x128xf32>
    %910 = arith.addf %870, %909 : vector<1x128xf32>
    %c246_i32_134 = arith.constant 246 : i32
    %911 = tpu.dynamic_rotate %751 by %c246_i32_134 dim 1 : vector<1x256xf32>, i32 -> vector<1x256xf32>
    %912 = vector.extract_strided_slice %911 {offsets = [0, 0], sizes = [1, 128], strides = [1, 1]} : vector<1x256xf32> to vector<1x128xf32>
    %c246_i32_135 = arith.constant 246 : i32
    %913 = tpu.dynamic_rotate %752 by %c246_i32_135 dim 1 : vector<1x256xf32>, i32 -> vector<1x256xf32>
    %914 = vector.extract_strided_slice %913 {offsets = [0, 0], sizes = [1, 128], strides = [1, 1]} : vector<1x256xf32> to vector<1x128xf32>
    %c22 = arith.constant 22 : index
    %915 = memref.load %arg1[%c22] : memref<186xf32, #tpu.memory_space<smem>>
    %916 = vector.broadcast %915 : f32 to vector<1x128xf32>
    %917 = arith.mulf %912, %916 : vector<1x128xf32>
    %918 = arith.addf %878, %917 : vector<1x128xf32>
    %c60 = arith.constant 60 : index
    %919 = memref.load %arg1[%c60] : memref<186xf32, #tpu.memory_space<smem>>
    %920 = vector.broadcast %919 : f32 to vector<1x128xf32>
    %921 = arith.mulf %912, %920 : vector<1x128xf32>
    %922 = arith.addf %882, %921 : vector<1x128xf32>
    %c97 = arith.constant 97 : index
    %923 = memref.load %arg1[%c97] : memref<186xf32, #tpu.memory_space<smem>>
    %924 = vector.broadcast %923 : f32 to vector<1x128xf32>
    %925 = arith.mulf %912, %924 : vector<1x128xf32>
    %926 = arith.addf %886, %925 : vector<1x128xf32>
    %c133 = arith.constant 133 : index
    %927 = memref.load %arg1[%c133] : memref<186xf32, #tpu.memory_space<smem>>
    %928 = vector.broadcast %927 : f32 to vector<1x128xf32>
    %929 = arith.mulf %912, %928 : vector<1x128xf32>
    %930 = arith.addf %890, %929 : vector<1x128xf32>
    %c169 = arith.constant 169 : index
    %931 = memref.load %arg1[%c169] : memref<186xf32, #tpu.memory_space<smem>>
    %932 = vector.broadcast %931 : f32 to vector<1x128xf32>
    %933 = arith.mulf %912, %932 : vector<1x128xf32>
    %934 = arith.addf %894, %933 : vector<1x128xf32>
    %c60_136 = arith.constant 60 : index
    %935 = memref.load %arg1[%c60_136] : memref<186xf32, #tpu.memory_space<smem>>
    %936 = vector.broadcast %935 : f32 to vector<1x128xf32>
    %937 = arith.mulf %914, %936 : vector<1x128xf32>
    %938 = arith.addf %898, %937 : vector<1x128xf32>
    %c97_137 = arith.constant 97 : index
    %939 = memref.load %arg1[%c97_137] : memref<186xf32, #tpu.memory_space<smem>>
    %940 = vector.broadcast %939 : f32 to vector<1x128xf32>
    %941 = arith.mulf %914, %940 : vector<1x128xf32>
    %942 = arith.addf %902, %941 : vector<1x128xf32>
    %c133_138 = arith.constant 133 : index
    %943 = memref.load %arg1[%c133_138] : memref<186xf32, #tpu.memory_space<smem>>
    %944 = vector.broadcast %943 : f32 to vector<1x128xf32>
    %945 = arith.mulf %914, %944 : vector<1x128xf32>
    %946 = arith.addf %906, %945 : vector<1x128xf32>
    %c169_139 = arith.constant 169 : index
    %947 = memref.load %arg1[%c169_139] : memref<186xf32, #tpu.memory_space<smem>>
    %948 = vector.broadcast %947 : f32 to vector<1x128xf32>
    %949 = arith.mulf %914, %948 : vector<1x128xf32>
    %950 = arith.addf %910, %949 : vector<1x128xf32>
    %c245_i32_140 = arith.constant 245 : i32
    %951 = tpu.dynamic_rotate %751 by %c245_i32_140 dim 1 : vector<1x256xf32>, i32 -> vector<1x256xf32>
    %952 = vector.extract_strided_slice %951 {offsets = [0, 0], sizes = [1, 128], strides = [1, 1]} : vector<1x256xf32> to vector<1x128xf32>
    %c245_i32_141 = arith.constant 245 : i32
    %953 = tpu.dynamic_rotate %752 by %c245_i32_141 dim 1 : vector<1x256xf32>, i32 -> vector<1x256xf32>
    %954 = vector.extract_strided_slice %953 {offsets = [0, 0], sizes = [1, 128], strides = [1, 1]} : vector<1x256xf32> to vector<1x128xf32>
    %c23 = arith.constant 23 : index
    %955 = memref.load %arg1[%c23] : memref<186xf32, #tpu.memory_space<smem>>
    %956 = vector.broadcast %955 : f32 to vector<1x128xf32>
    %957 = arith.mulf %952, %956 : vector<1x128xf32>
    %958 = arith.addf %918, %957 : vector<1x128xf32>
    %c61 = arith.constant 61 : index
    %959 = memref.load %arg1[%c61] : memref<186xf32, #tpu.memory_space<smem>>
    %960 = vector.broadcast %959 : f32 to vector<1x128xf32>
    %961 = arith.mulf %952, %960 : vector<1x128xf32>
    %962 = arith.addf %922, %961 : vector<1x128xf32>
    %c98 = arith.constant 98 : index
    %963 = memref.load %arg1[%c98] : memref<186xf32, #tpu.memory_space<smem>>
    %964 = vector.broadcast %963 : f32 to vector<1x128xf32>
    %965 = arith.mulf %952, %964 : vector<1x128xf32>
    %966 = arith.addf %926, %965 : vector<1x128xf32>
    %c134 = arith.constant 134 : index
    %967 = memref.load %arg1[%c134] : memref<186xf32, #tpu.memory_space<smem>>
    %968 = vector.broadcast %967 : f32 to vector<1x128xf32>
    %969 = arith.mulf %952, %968 : vector<1x128xf32>
    %970 = arith.addf %930, %969 : vector<1x128xf32>
    %c170 = arith.constant 170 : index
    %971 = memref.load %arg1[%c170] : memref<186xf32, #tpu.memory_space<smem>>
    %972 = vector.broadcast %971 : f32 to vector<1x128xf32>
    %973 = arith.mulf %952, %972 : vector<1x128xf32>
    %974 = arith.addf %934, %973 : vector<1x128xf32>
    %c61_142 = arith.constant 61 : index
    %975 = memref.load %arg1[%c61_142] : memref<186xf32, #tpu.memory_space<smem>>
    %976 = vector.broadcast %975 : f32 to vector<1x128xf32>
    %977 = arith.mulf %954, %976 : vector<1x128xf32>
    %978 = arith.addf %938, %977 : vector<1x128xf32>
    %c98_143 = arith.constant 98 : index
    %979 = memref.load %arg1[%c98_143] : memref<186xf32, #tpu.memory_space<smem>>
    %980 = vector.broadcast %979 : f32 to vector<1x128xf32>
    %981 = arith.mulf %954, %980 : vector<1x128xf32>
    %982 = arith.addf %942, %981 : vector<1x128xf32>
    %c134_144 = arith.constant 134 : index
    %983 = memref.load %arg1[%c134_144] : memref<186xf32, #tpu.memory_space<smem>>
    %984 = vector.broadcast %983 : f32 to vector<1x128xf32>
    %985 = arith.mulf %954, %984 : vector<1x128xf32>
    %986 = arith.addf %946, %985 : vector<1x128xf32>
    %c170_145 = arith.constant 170 : index
    %987 = memref.load %arg1[%c170_145] : memref<186xf32, #tpu.memory_space<smem>>
    %988 = vector.broadcast %987 : f32 to vector<1x128xf32>
    %989 = arith.mulf %954, %988 : vector<1x128xf32>
    %990 = arith.addf %950, %989 : vector<1x128xf32>
    %c238_i32_146 = arith.constant 238 : i32
    %991 = tpu.dynamic_rotate %751 by %c238_i32_146 dim 1 : vector<1x256xf32>, i32 -> vector<1x256xf32>
    %992 = vector.extract_strided_slice %991 {offsets = [0, 0], sizes = [1, 128], strides = [1, 1]} : vector<1x256xf32> to vector<1x128xf32>
    %c238_i32_147 = arith.constant 238 : i32
    %993 = tpu.dynamic_rotate %752 by %c238_i32_147 dim 1 : vector<1x256xf32>, i32 -> vector<1x256xf32>
    %994 = vector.extract_strided_slice %993 {offsets = [0, 0], sizes = [1, 128], strides = [1, 1]} : vector<1x256xf32> to vector<1x128xf32>
    %c24 = arith.constant 24 : index
    %995 = memref.load %arg1[%c24] : memref<186xf32, #tpu.memory_space<smem>>
    %996 = vector.broadcast %995 : f32 to vector<1x128xf32>
    %997 = arith.mulf %992, %996 : vector<1x128xf32>
    %998 = arith.addf %958, %997 : vector<1x128xf32>
    %c62 = arith.constant 62 : index
    %999 = memref.load %arg1[%c62] : memref<186xf32, #tpu.memory_space<smem>>
    %1000 = vector.broadcast %999 : f32 to vector<1x128xf32>
    %1001 = arith.mulf %992, %1000 : vector<1x128xf32>
    %1002 = arith.addf %962, %1001 : vector<1x128xf32>
    %c99 = arith.constant 99 : index
    %1003 = memref.load %arg1[%c99] : memref<186xf32, #tpu.memory_space<smem>>
    %1004 = vector.broadcast %1003 : f32 to vector<1x128xf32>
    %1005 = arith.mulf %992, %1004 : vector<1x128xf32>
    %1006 = arith.addf %966, %1005 : vector<1x128xf32>
    %c135 = arith.constant 135 : index
    %1007 = memref.load %arg1[%c135] : memref<186xf32, #tpu.memory_space<smem>>
    %1008 = vector.broadcast %1007 : f32 to vector<1x128xf32>
    %1009 = arith.mulf %992, %1008 : vector<1x128xf32>
    %1010 = arith.addf %970, %1009 : vector<1x128xf32>
    %c171 = arith.constant 171 : index
    %1011 = memref.load %arg1[%c171] : memref<186xf32, #tpu.memory_space<smem>>
    %1012 = vector.broadcast %1011 : f32 to vector<1x128xf32>
    %1013 = arith.mulf %992, %1012 : vector<1x128xf32>
    %1014 = arith.addf %974, %1013 : vector<1x128xf32>
    %c62_148 = arith.constant 62 : index
    %1015 = memref.load %arg1[%c62_148] : memref<186xf32, #tpu.memory_space<smem>>
    %1016 = vector.broadcast %1015 : f32 to vector<1x128xf32>
    %1017 = arith.mulf %994, %1016 : vector<1x128xf32>
    %1018 = arith.addf %978, %1017 : vector<1x128xf32>
    %c99_149 = arith.constant 99 : index
    %1019 = memref.load %arg1[%c99_149] : memref<186xf32, #tpu.memory_space<smem>>
    %1020 = vector.broadcast %1019 : f32 to vector<1x128xf32>
    %1021 = arith.mulf %994, %1020 : vector<1x128xf32>
    %1022 = arith.addf %982, %1021 : vector<1x128xf32>
    %c135_150 = arith.constant 135 : index
    %1023 = memref.load %arg1[%c135_150] : memref<186xf32, #tpu.memory_space<smem>>
    %1024 = vector.broadcast %1023 : f32 to vector<1x128xf32>
    %1025 = arith.mulf %994, %1024 : vector<1x128xf32>
    %1026 = arith.addf %986, %1025 : vector<1x128xf32>
    %c171_151 = arith.constant 171 : index
    %1027 = memref.load %arg1[%c171_151] : memref<186xf32, #tpu.memory_space<smem>>
    %1028 = vector.broadcast %1027 : f32 to vector<1x128xf32>
    %1029 = arith.mulf %994, %1028 : vector<1x128xf32>
    %1030 = arith.addf %990, %1029 : vector<1x128xf32>
    %c237_i32_152 = arith.constant 237 : i32
    %1031 = tpu.dynamic_rotate %751 by %c237_i32_152 dim 1 : vector<1x256xf32>, i32 -> vector<1x256xf32>
    %1032 = vector.extract_strided_slice %1031 {offsets = [0, 0], sizes = [1, 128], strides = [1, 1]} : vector<1x256xf32> to vector<1x128xf32>
    %c237_i32_153 = arith.constant 237 : i32
    %1033 = tpu.dynamic_rotate %752 by %c237_i32_153 dim 1 : vector<1x256xf32>, i32 -> vector<1x256xf32>
    %1034 = vector.extract_strided_slice %1033 {offsets = [0, 0], sizes = [1, 128], strides = [1, 1]} : vector<1x256xf32> to vector<1x128xf32>
    %c25 = arith.constant 25 : index
    %1035 = memref.load %arg1[%c25] : memref<186xf32, #tpu.memory_space<smem>>
    %1036 = vector.broadcast %1035 : f32 to vector<1x128xf32>
    %1037 = arith.mulf %1032, %1036 : vector<1x128xf32>
    %1038 = arith.addf %998, %1037 : vector<1x128xf32>
    %c63 = arith.constant 63 : index
    %1039 = memref.load %arg1[%c63] : memref<186xf32, #tpu.memory_space<smem>>
    %1040 = vector.broadcast %1039 : f32 to vector<1x128xf32>
    %1041 = arith.mulf %1032, %1040 : vector<1x128xf32>
    %1042 = arith.addf %1002, %1041 : vector<1x128xf32>
    %c100 = arith.constant 100 : index
    %1043 = memref.load %arg1[%c100] : memref<186xf32, #tpu.memory_space<smem>>
    %1044 = vector.broadcast %1043 : f32 to vector<1x128xf32>
    %1045 = arith.mulf %1032, %1044 : vector<1x128xf32>
    %1046 = arith.addf %1006, %1045 : vector<1x128xf32>
    %c136 = arith.constant 136 : index
    %1047 = memref.load %arg1[%c136] : memref<186xf32, #tpu.memory_space<smem>>
    %1048 = vector.broadcast %1047 : f32 to vector<1x128xf32>
    %1049 = arith.mulf %1032, %1048 : vector<1x128xf32>
    %1050 = arith.addf %1010, %1049 : vector<1x128xf32>
    %c172 = arith.constant 172 : index
    %1051 = memref.load %arg1[%c172] : memref<186xf32, #tpu.memory_space<smem>>
    %1052 = vector.broadcast %1051 : f32 to vector<1x128xf32>
    %1053 = arith.mulf %1032, %1052 : vector<1x128xf32>
    %1054 = arith.addf %1014, %1053 : vector<1x128xf32>
    %c63_154 = arith.constant 63 : index
    %1055 = memref.load %arg1[%c63_154] : memref<186xf32, #tpu.memory_space<smem>>
    %1056 = vector.broadcast %1055 : f32 to vector<1x128xf32>
    %1057 = arith.mulf %1034, %1056 : vector<1x128xf32>
    %1058 = arith.addf %1018, %1057 : vector<1x128xf32>
    %c100_155 = arith.constant 100 : index
    %1059 = memref.load %arg1[%c100_155] : memref<186xf32, #tpu.memory_space<smem>>
    %1060 = vector.broadcast %1059 : f32 to vector<1x128xf32>
    %1061 = arith.mulf %1034, %1060 : vector<1x128xf32>
    %1062 = arith.addf %1022, %1061 : vector<1x128xf32>
    %c136_156 = arith.constant 136 : index
    %1063 = memref.load %arg1[%c136_156] : memref<186xf32, #tpu.memory_space<smem>>
    %1064 = vector.broadcast %1063 : f32 to vector<1x128xf32>
    %1065 = arith.mulf %1034, %1064 : vector<1x128xf32>
    %1066 = arith.addf %1026, %1065 : vector<1x128xf32>
    %c172_157 = arith.constant 172 : index
    %1067 = memref.load %arg1[%c172_157] : memref<186xf32, #tpu.memory_space<smem>>
    %1068 = vector.broadcast %1067 : f32 to vector<1x128xf32>
    %1069 = arith.mulf %1034, %1068 : vector<1x128xf32>
    %1070 = arith.addf %1030, %1069 : vector<1x128xf32>
    %c236_i32_158 = arith.constant 236 : i32
    %1071 = tpu.dynamic_rotate %751 by %c236_i32_158 dim 1 : vector<1x256xf32>, i32 -> vector<1x256xf32>
    %1072 = vector.extract_strided_slice %1071 {offsets = [0, 0], sizes = [1, 128], strides = [1, 1]} : vector<1x256xf32> to vector<1x128xf32>
    %c236_i32_159 = arith.constant 236 : i32
    %1073 = tpu.dynamic_rotate %752 by %c236_i32_159 dim 1 : vector<1x256xf32>, i32 -> vector<1x256xf32>
    %1074 = vector.extract_strided_slice %1073 {offsets = [0, 0], sizes = [1, 128], strides = [1, 1]} : vector<1x256xf32> to vector<1x128xf32>
    %c26 = arith.constant 26 : index
    %1075 = memref.load %arg1[%c26] : memref<186xf32, #tpu.memory_space<smem>>
    %1076 = vector.broadcast %1075 : f32 to vector<1x128xf32>
    %1077 = arith.mulf %1072, %1076 : vector<1x128xf32>
    %1078 = arith.addf %1038, %1077 : vector<1x128xf32>
    %c64 = arith.constant 64 : index
    %1079 = memref.load %arg1[%c64] : memref<186xf32, #tpu.memory_space<smem>>
    %1080 = vector.broadcast %1079 : f32 to vector<1x128xf32>
    %1081 = arith.mulf %1072, %1080 : vector<1x128xf32>
    %1082 = arith.addf %1042, %1081 : vector<1x128xf32>
    %c101 = arith.constant 101 : index
    %1083 = memref.load %arg1[%c101] : memref<186xf32, #tpu.memory_space<smem>>
    %1084 = vector.broadcast %1083 : f32 to vector<1x128xf32>
    %1085 = arith.mulf %1072, %1084 : vector<1x128xf32>
    %1086 = arith.addf %1046, %1085 : vector<1x128xf32>
    %c137 = arith.constant 137 : index
    %1087 = memref.load %arg1[%c137] : memref<186xf32, #tpu.memory_space<smem>>
    %1088 = vector.broadcast %1087 : f32 to vector<1x128xf32>
    %1089 = arith.mulf %1072, %1088 : vector<1x128xf32>
    %1090 = arith.addf %1050, %1089 : vector<1x128xf32>
    %c173 = arith.constant 173 : index
    %1091 = memref.load %arg1[%c173] : memref<186xf32, #tpu.memory_space<smem>>
    %1092 = vector.broadcast %1091 : f32 to vector<1x128xf32>
    %1093 = arith.mulf %1072, %1092 : vector<1x128xf32>
    %1094 = arith.addf %1054, %1093 : vector<1x128xf32>
    %c64_160 = arith.constant 64 : index
    %1095 = memref.load %arg1[%c64_160] : memref<186xf32, #tpu.memory_space<smem>>
    %1096 = vector.broadcast %1095 : f32 to vector<1x128xf32>
    %1097 = arith.mulf %1074, %1096 : vector<1x128xf32>
    %1098 = arith.addf %1058, %1097 : vector<1x128xf32>
    %c101_161 = arith.constant 101 : index
    %1099 = memref.load %arg1[%c101_161] : memref<186xf32, #tpu.memory_space<smem>>
    %1100 = vector.broadcast %1099 : f32 to vector<1x128xf32>
    %1101 = arith.mulf %1074, %1100 : vector<1x128xf32>
    %1102 = arith.addf %1062, %1101 : vector<1x128xf32>
    %c137_162 = arith.constant 137 : index
    %1103 = memref.load %arg1[%c137_162] : memref<186xf32, #tpu.memory_space<smem>>
    %1104 = vector.broadcast %1103 : f32 to vector<1x128xf32>
    %1105 = arith.mulf %1074, %1104 : vector<1x128xf32>
    %1106 = arith.addf %1066, %1105 : vector<1x128xf32>
    %c173_163 = arith.constant 173 : index
    %1107 = memref.load %arg1[%c173_163] : memref<186xf32, #tpu.memory_space<smem>>
    %1108 = vector.broadcast %1107 : f32 to vector<1x128xf32>
    %1109 = arith.mulf %1074, %1108 : vector<1x128xf32>
    %1110 = arith.addf %1070, %1109 : vector<1x128xf32>
    %c3_164 = arith.constant 3 : index
    %c0_165 = arith.constant 0 : index
    %1111 = vector.load %arg0[%c3_164, %c0_165] : memref<8x256xf32, #tpu.memory_space<vmem>>, vector<1x256xf32>
    %c7_166 = arith.constant 7 : index
    %c0_167 = arith.constant 0 : index
    %1112 = vector.load %arg0[%c7_166, %c0_167] : memref<8x256xf32, #tpu.memory_space<vmem>>, vector<1x256xf32>
    %1113 = vector.extract_strided_slice %1111 {offsets = [0, 0], sizes = [1, 128], strides = [1, 1]} : vector<1x256xf32> to vector<1x128xf32>
    %1114 = vector.extract_strided_slice %1112 {offsets = [0, 0], sizes = [1, 128], strides = [1, 1]} : vector<1x256xf32> to vector<1x128xf32>
    %c27 = arith.constant 27 : index
    %1115 = memref.load %arg1[%c27] : memref<186xf32, #tpu.memory_space<smem>>
    %1116 = vector.broadcast %1115 : f32 to vector<1x128xf32>
    %1117 = arith.mulf %1113, %1116 : vector<1x128xf32>
    %1118 = arith.addf %1078, %1117 : vector<1x128xf32>
    %c65 = arith.constant 65 : index
    %1119 = memref.load %arg1[%c65] : memref<186xf32, #tpu.memory_space<smem>>
    %1120 = vector.broadcast %1119 : f32 to vector<1x128xf32>
    %1121 = arith.mulf %1113, %1120 : vector<1x128xf32>
    %1122 = arith.addf %1082, %1121 : vector<1x128xf32>
    %c102 = arith.constant 102 : index
    %1123 = memref.load %arg1[%c102] : memref<186xf32, #tpu.memory_space<smem>>
    %1124 = vector.broadcast %1123 : f32 to vector<1x128xf32>
    %1125 = arith.mulf %1113, %1124 : vector<1x128xf32>
    %1126 = arith.addf %1086, %1125 : vector<1x128xf32>
    %c138 = arith.constant 138 : index
    %1127 = memref.load %arg1[%c138] : memref<186xf32, #tpu.memory_space<smem>>
    %1128 = vector.broadcast %1127 : f32 to vector<1x128xf32>
    %1129 = arith.mulf %1113, %1128 : vector<1x128xf32>
    %1130 = arith.addf %1090, %1129 : vector<1x128xf32>
    %c174 = arith.constant 174 : index
    %1131 = memref.load %arg1[%c174] : memref<186xf32, #tpu.memory_space<smem>>
    %1132 = vector.broadcast %1131 : f32 to vector<1x128xf32>
    %1133 = arith.mulf %1113, %1132 : vector<1x128xf32>
    %1134 = arith.addf %1094, %1133 : vector<1x128xf32>
    %c65_168 = arith.constant 65 : index
    %1135 = memref.load %arg1[%c65_168] : memref<186xf32, #tpu.memory_space<smem>>
    %1136 = vector.broadcast %1135 : f32 to vector<1x128xf32>
    %1137 = arith.mulf %1114, %1136 : vector<1x128xf32>
    %1138 = arith.addf %1098, %1137 : vector<1x128xf32>
    %c102_169 = arith.constant 102 : index
    %1139 = memref.load %arg1[%c102_169] : memref<186xf32, #tpu.memory_space<smem>>
    %1140 = vector.broadcast %1139 : f32 to vector<1x128xf32>
    %1141 = arith.mulf %1114, %1140 : vector<1x128xf32>
    %1142 = arith.addf %1102, %1141 : vector<1x128xf32>
    %c138_170 = arith.constant 138 : index
    %1143 = memref.load %arg1[%c138_170] : memref<186xf32, #tpu.memory_space<smem>>
    %1144 = vector.broadcast %1143 : f32 to vector<1x128xf32>
    %1145 = arith.mulf %1114, %1144 : vector<1x128xf32>
    %1146 = arith.addf %1106, %1145 : vector<1x128xf32>
    %c174_171 = arith.constant 174 : index
    %1147 = memref.load %arg1[%c174_171] : memref<186xf32, #tpu.memory_space<smem>>
    %1148 = vector.broadcast %1147 : f32 to vector<1x128xf32>
    %1149 = arith.mulf %1114, %1148 : vector<1x128xf32>
    %1150 = arith.addf %1110, %1149 : vector<1x128xf32>
    %c255_i32_172 = arith.constant 255 : i32
    %1151 = tpu.dynamic_rotate %1111 by %c255_i32_172 dim 1 : vector<1x256xf32>, i32 -> vector<1x256xf32>
    %1152 = vector.extract_strided_slice %1151 {offsets = [0, 0], sizes = [1, 128], strides = [1, 1]} : vector<1x256xf32> to vector<1x128xf32>
    %c255_i32_173 = arith.constant 255 : i32
    %1153 = tpu.dynamic_rotate %1112 by %c255_i32_173 dim 1 : vector<1x256xf32>, i32 -> vector<1x256xf32>
    %1154 = vector.extract_strided_slice %1153 {offsets = [0, 0], sizes = [1, 128], strides = [1, 1]} : vector<1x256xf32> to vector<1x128xf32>
    %c28 = arith.constant 28 : index
    %1155 = memref.load %arg1[%c28] : memref<186xf32, #tpu.memory_space<smem>>
    %1156 = vector.broadcast %1155 : f32 to vector<1x128xf32>
    %1157 = arith.mulf %1152, %1156 : vector<1x128xf32>
    %1158 = arith.addf %1118, %1157 : vector<1x128xf32>
    %c66 = arith.constant 66 : index
    %1159 = memref.load %arg1[%c66] : memref<186xf32, #tpu.memory_space<smem>>
    %1160 = vector.broadcast %1159 : f32 to vector<1x128xf32>
    %1161 = arith.mulf %1152, %1160 : vector<1x128xf32>
    %1162 = arith.addf %1122, %1161 : vector<1x128xf32>
    %c103 = arith.constant 103 : index
    %1163 = memref.load %arg1[%c103] : memref<186xf32, #tpu.memory_space<smem>>
    %1164 = vector.broadcast %1163 : f32 to vector<1x128xf32>
    %1165 = arith.mulf %1152, %1164 : vector<1x128xf32>
    %1166 = arith.addf %1126, %1165 : vector<1x128xf32>
    %c139 = arith.constant 139 : index
    %1167 = memref.load %arg1[%c139] : memref<186xf32, #tpu.memory_space<smem>>
    %1168 = vector.broadcast %1167 : f32 to vector<1x128xf32>
    %1169 = arith.mulf %1152, %1168 : vector<1x128xf32>
    %1170 = arith.addf %1130, %1169 : vector<1x128xf32>
    %c175 = arith.constant 175 : index
    %1171 = memref.load %arg1[%c175] : memref<186xf32, #tpu.memory_space<smem>>
    %1172 = vector.broadcast %1171 : f32 to vector<1x128xf32>
    %1173 = arith.mulf %1152, %1172 : vector<1x128xf32>
    %1174 = arith.addf %1134, %1173 : vector<1x128xf32>
    %c66_174 = arith.constant 66 : index
    %1175 = memref.load %arg1[%c66_174] : memref<186xf32, #tpu.memory_space<smem>>
    %1176 = vector.broadcast %1175 : f32 to vector<1x128xf32>
    %1177 = arith.mulf %1154, %1176 : vector<1x128xf32>
    %1178 = arith.addf %1138, %1177 : vector<1x128xf32>
    %c103_175 = arith.constant 103 : index
    %1179 = memref.load %arg1[%c103_175] : memref<186xf32, #tpu.memory_space<smem>>
    %1180 = vector.broadcast %1179 : f32 to vector<1x128xf32>
    %1181 = arith.mulf %1154, %1180 : vector<1x128xf32>
    %1182 = arith.addf %1142, %1181 : vector<1x128xf32>
    %c139_176 = arith.constant 139 : index
    %1183 = memref.load %arg1[%c139_176] : memref<186xf32, #tpu.memory_space<smem>>
    %1184 = vector.broadcast %1183 : f32 to vector<1x128xf32>
    %1185 = arith.mulf %1154, %1184 : vector<1x128xf32>
    %1186 = arith.addf %1146, %1185 : vector<1x128xf32>
    %c175_177 = arith.constant 175 : index
    %1187 = memref.load %arg1[%c175_177] : memref<186xf32, #tpu.memory_space<smem>>
    %1188 = vector.broadcast %1187 : f32 to vector<1x128xf32>
    %1189 = arith.mulf %1154, %1188 : vector<1x128xf32>
    %1190 = arith.addf %1150, %1189 : vector<1x128xf32>
    %c254_i32_178 = arith.constant 254 : i32
    %1191 = tpu.dynamic_rotate %1111 by %c254_i32_178 dim 1 : vector<1x256xf32>, i32 -> vector<1x256xf32>
    %1192 = vector.extract_strided_slice %1191 {offsets = [0, 0], sizes = [1, 128], strides = [1, 1]} : vector<1x256xf32> to vector<1x128xf32>
    %c254_i32_179 = arith.constant 254 : i32
    %1193 = tpu.dynamic_rotate %1112 by %c254_i32_179 dim 1 : vector<1x256xf32>, i32 -> vector<1x256xf32>
    %1194 = vector.extract_strided_slice %1193 {offsets = [0, 0], sizes = [1, 128], strides = [1, 1]} : vector<1x256xf32> to vector<1x128xf32>
    %c29 = arith.constant 29 : index
    %1195 = memref.load %arg1[%c29] : memref<186xf32, #tpu.memory_space<smem>>
    %1196 = vector.broadcast %1195 : f32 to vector<1x128xf32>
    %1197 = arith.mulf %1192, %1196 : vector<1x128xf32>
    %1198 = arith.addf %1158, %1197 : vector<1x128xf32>
    %c67 = arith.constant 67 : index
    %1199 = memref.load %arg1[%c67] : memref<186xf32, #tpu.memory_space<smem>>
    %1200 = vector.broadcast %1199 : f32 to vector<1x128xf32>
    %1201 = arith.mulf %1192, %1200 : vector<1x128xf32>
    %1202 = arith.addf %1162, %1201 : vector<1x128xf32>
    %c104 = arith.constant 104 : index
    %1203 = memref.load %arg1[%c104] : memref<186xf32, #tpu.memory_space<smem>>
    %1204 = vector.broadcast %1203 : f32 to vector<1x128xf32>
    %1205 = arith.mulf %1192, %1204 : vector<1x128xf32>
    %1206 = arith.addf %1166, %1205 : vector<1x128xf32>
    %c140 = arith.constant 140 : index
    %1207 = memref.load %arg1[%c140] : memref<186xf32, #tpu.memory_space<smem>>
    %1208 = vector.broadcast %1207 : f32 to vector<1x128xf32>
    %1209 = arith.mulf %1192, %1208 : vector<1x128xf32>
    %1210 = arith.addf %1170, %1209 : vector<1x128xf32>
    %c176 = arith.constant 176 : index
    %1211 = memref.load %arg1[%c176] : memref<186xf32, #tpu.memory_space<smem>>
    %1212 = vector.broadcast %1211 : f32 to vector<1x128xf32>
    %1213 = arith.mulf %1192, %1212 : vector<1x128xf32>
    %1214 = arith.addf %1174, %1213 : vector<1x128xf32>
    %c67_180 = arith.constant 67 : index
    %1215 = memref.load %arg1[%c67_180] : memref<186xf32, #tpu.memory_space<smem>>
    %1216 = vector.broadcast %1215 : f32 to vector<1x128xf32>
    %1217 = arith.mulf %1194, %1216 : vector<1x128xf32>
    %1218 = arith.addf %1178, %1217 : vector<1x128xf32>
    %c104_181 = arith.constant 104 : index
    %1219 = memref.load %arg1[%c104_181] : memref<186xf32, #tpu.memory_space<smem>>
    %1220 = vector.broadcast %1219 : f32 to vector<1x128xf32>
    %1221 = arith.mulf %1194, %1220 : vector<1x128xf32>
    %1222 = arith.addf %1182, %1221 : vector<1x128xf32>
    %c140_182 = arith.constant 140 : index
    %1223 = memref.load %arg1[%c140_182] : memref<186xf32, #tpu.memory_space<smem>>
    %1224 = vector.broadcast %1223 : f32 to vector<1x128xf32>
    %1225 = arith.mulf %1194, %1224 : vector<1x128xf32>
    %1226 = arith.addf %1186, %1225 : vector<1x128xf32>
    %c176_183 = arith.constant 176 : index
    %1227 = memref.load %arg1[%c176_183] : memref<186xf32, #tpu.memory_space<smem>>
    %1228 = vector.broadcast %1227 : f32 to vector<1x128xf32>
    %1229 = arith.mulf %1194, %1228 : vector<1x128xf32>
    %1230 = arith.addf %1190, %1229 : vector<1x128xf32>
    %c247_i32_184 = arith.constant 247 : i32
    %1231 = tpu.dynamic_rotate %1111 by %c247_i32_184 dim 1 : vector<1x256xf32>, i32 -> vector<1x256xf32>
    %1232 = vector.extract_strided_slice %1231 {offsets = [0, 0], sizes = [1, 128], strides = [1, 1]} : vector<1x256xf32> to vector<1x128xf32>
    %c247_i32_185 = arith.constant 247 : i32
    %1233 = tpu.dynamic_rotate %1112 by %c247_i32_185 dim 1 : vector<1x256xf32>, i32 -> vector<1x256xf32>
    %1234 = vector.extract_strided_slice %1233 {offsets = [0, 0], sizes = [1, 128], strides = [1, 1]} : vector<1x256xf32> to vector<1x128xf32>
    %c30 = arith.constant 30 : index
    %1235 = memref.load %arg1[%c30] : memref<186xf32, #tpu.memory_space<smem>>
    %1236 = vector.broadcast %1235 : f32 to vector<1x128xf32>
    %1237 = arith.mulf %1232, %1236 : vector<1x128xf32>
    %1238 = arith.addf %1198, %1237 : vector<1x128xf32>
    %c68 = arith.constant 68 : index
    %1239 = memref.load %arg1[%c68] : memref<186xf32, #tpu.memory_space<smem>>
    %1240 = vector.broadcast %1239 : f32 to vector<1x128xf32>
    %1241 = arith.mulf %1232, %1240 : vector<1x128xf32>
    %1242 = arith.addf %1202, %1241 : vector<1x128xf32>
    %c105 = arith.constant 105 : index
    %1243 = memref.load %arg1[%c105] : memref<186xf32, #tpu.memory_space<smem>>
    %1244 = vector.broadcast %1243 : f32 to vector<1x128xf32>
    %1245 = arith.mulf %1232, %1244 : vector<1x128xf32>
    %1246 = arith.addf %1206, %1245 : vector<1x128xf32>
    %c141 = arith.constant 141 : index
    %1247 = memref.load %arg1[%c141] : memref<186xf32, #tpu.memory_space<smem>>
    %1248 = vector.broadcast %1247 : f32 to vector<1x128xf32>
    %1249 = arith.mulf %1232, %1248 : vector<1x128xf32>
    %1250 = arith.addf %1210, %1249 : vector<1x128xf32>
    %c177 = arith.constant 177 : index
    %1251 = memref.load %arg1[%c177] : memref<186xf32, #tpu.memory_space<smem>>
    %1252 = vector.broadcast %1251 : f32 to vector<1x128xf32>
    %1253 = arith.mulf %1232, %1252 : vector<1x128xf32>
    %1254 = arith.addf %1214, %1253 : vector<1x128xf32>
    %c68_186 = arith.constant 68 : index
    %1255 = memref.load %arg1[%c68_186] : memref<186xf32, #tpu.memory_space<smem>>
    %1256 = vector.broadcast %1255 : f32 to vector<1x128xf32>
    %1257 = arith.mulf %1234, %1256 : vector<1x128xf32>
    %1258 = arith.addf %1218, %1257 : vector<1x128xf32>
    %c105_187 = arith.constant 105 : index
    %1259 = memref.load %arg1[%c105_187] : memref<186xf32, #tpu.memory_space<smem>>
    %1260 = vector.broadcast %1259 : f32 to vector<1x128xf32>
    %1261 = arith.mulf %1234, %1260 : vector<1x128xf32>
    %1262 = arith.addf %1222, %1261 : vector<1x128xf32>
    %c141_188 = arith.constant 141 : index
    %1263 = memref.load %arg1[%c141_188] : memref<186xf32, #tpu.memory_space<smem>>
    %1264 = vector.broadcast %1263 : f32 to vector<1x128xf32>
    %1265 = arith.mulf %1234, %1264 : vector<1x128xf32>
    %1266 = arith.addf %1226, %1265 : vector<1x128xf32>
    %c177_189 = arith.constant 177 : index
    %1267 = memref.load %arg1[%c177_189] : memref<186xf32, #tpu.memory_space<smem>>
    %1268 = vector.broadcast %1267 : f32 to vector<1x128xf32>
    %1269 = arith.mulf %1234, %1268 : vector<1x128xf32>
    %1270 = arith.addf %1230, %1269 : vector<1x128xf32>
    %c246_i32_190 = arith.constant 246 : i32
    %1271 = tpu.dynamic_rotate %1111 by %c246_i32_190 dim 1 : vector<1x256xf32>, i32 -> vector<1x256xf32>
    %1272 = vector.extract_strided_slice %1271 {offsets = [0, 0], sizes = [1, 128], strides = [1, 1]} : vector<1x256xf32> to vector<1x128xf32>
    %c246_i32_191 = arith.constant 246 : i32
    %1273 = tpu.dynamic_rotate %1112 by %c246_i32_191 dim 1 : vector<1x256xf32>, i32 -> vector<1x256xf32>
    %1274 = vector.extract_strided_slice %1273 {offsets = [0, 0], sizes = [1, 128], strides = [1, 1]} : vector<1x256xf32> to vector<1x128xf32>
    %c31 = arith.constant 31 : index
    %1275 = memref.load %arg1[%c31] : memref<186xf32, #tpu.memory_space<smem>>
    %1276 = vector.broadcast %1275 : f32 to vector<1x128xf32>
    %1277 = arith.mulf %1272, %1276 : vector<1x128xf32>
    %1278 = arith.addf %1238, %1277 : vector<1x128xf32>
    %c69 = arith.constant 69 : index
    %1279 = memref.load %arg1[%c69] : memref<186xf32, #tpu.memory_space<smem>>
    %1280 = vector.broadcast %1279 : f32 to vector<1x128xf32>
    %1281 = arith.mulf %1272, %1280 : vector<1x128xf32>
    %1282 = arith.addf %1242, %1281 : vector<1x128xf32>
    %c106 = arith.constant 106 : index
    %1283 = memref.load %arg1[%c106] : memref<186xf32, #tpu.memory_space<smem>>
    %1284 = vector.broadcast %1283 : f32 to vector<1x128xf32>
    %1285 = arith.mulf %1272, %1284 : vector<1x128xf32>
    %1286 = arith.addf %1246, %1285 : vector<1x128xf32>
    %c142 = arith.constant 142 : index
    %1287 = memref.load %arg1[%c142] : memref<186xf32, #tpu.memory_space<smem>>
    %1288 = vector.broadcast %1287 : f32 to vector<1x128xf32>
    %1289 = arith.mulf %1272, %1288 : vector<1x128xf32>
    %1290 = arith.addf %1250, %1289 : vector<1x128xf32>
    %c178 = arith.constant 178 : index
    %1291 = memref.load %arg1[%c178] : memref<186xf32, #tpu.memory_space<smem>>
    %1292 = vector.broadcast %1291 : f32 to vector<1x128xf32>
    %1293 = arith.mulf %1272, %1292 : vector<1x128xf32>
    %1294 = arith.addf %1254, %1293 : vector<1x128xf32>
    %c69_192 = arith.constant 69 : index
    %1295 = memref.load %arg1[%c69_192] : memref<186xf32, #tpu.memory_space<smem>>
    %1296 = vector.broadcast %1295 : f32 to vector<1x128xf32>
    %1297 = arith.mulf %1274, %1296 : vector<1x128xf32>
    %1298 = arith.addf %1258, %1297 : vector<1x128xf32>
    %c106_193 = arith.constant 106 : index
    %1299 = memref.load %arg1[%c106_193] : memref<186xf32, #tpu.memory_space<smem>>
    %1300 = vector.broadcast %1299 : f32 to vector<1x128xf32>
    %1301 = arith.mulf %1274, %1300 : vector<1x128xf32>
    %1302 = arith.addf %1262, %1301 : vector<1x128xf32>
    %c142_194 = arith.constant 142 : index
    %1303 = memref.load %arg1[%c142_194] : memref<186xf32, #tpu.memory_space<smem>>
    %1304 = vector.broadcast %1303 : f32 to vector<1x128xf32>
    %1305 = arith.mulf %1274, %1304 : vector<1x128xf32>
    %1306 = arith.addf %1266, %1305 : vector<1x128xf32>
    %c178_195 = arith.constant 178 : index
    %1307 = memref.load %arg1[%c178_195] : memref<186xf32, #tpu.memory_space<smem>>
    %1308 = vector.broadcast %1307 : f32 to vector<1x128xf32>
    %1309 = arith.mulf %1274, %1308 : vector<1x128xf32>
    %1310 = arith.addf %1270, %1309 : vector<1x128xf32>
    %c245_i32_196 = arith.constant 245 : i32
    %1311 = tpu.dynamic_rotate %1111 by %c245_i32_196 dim 1 : vector<1x256xf32>, i32 -> vector<1x256xf32>
    %1312 = vector.extract_strided_slice %1311 {offsets = [0, 0], sizes = [1, 128], strides = [1, 1]} : vector<1x256xf32> to vector<1x128xf32>
    %c245_i32_197 = arith.constant 245 : i32
    %1313 = tpu.dynamic_rotate %1112 by %c245_i32_197 dim 1 : vector<1x256xf32>, i32 -> vector<1x256xf32>
    %1314 = vector.extract_strided_slice %1313 {offsets = [0, 0], sizes = [1, 128], strides = [1, 1]} : vector<1x256xf32> to vector<1x128xf32>
    %c32 = arith.constant 32 : index
    %1315 = memref.load %arg1[%c32] : memref<186xf32, #tpu.memory_space<smem>>
    %1316 = vector.broadcast %1315 : f32 to vector<1x128xf32>
    %1317 = arith.mulf %1312, %1316 : vector<1x128xf32>
    %1318 = arith.addf %1278, %1317 : vector<1x128xf32>
    %c70 = arith.constant 70 : index
    %1319 = memref.load %arg1[%c70] : memref<186xf32, #tpu.memory_space<smem>>
    %1320 = vector.broadcast %1319 : f32 to vector<1x128xf32>
    %1321 = arith.mulf %1312, %1320 : vector<1x128xf32>
    %1322 = arith.addf %1282, %1321 : vector<1x128xf32>
    %c107 = arith.constant 107 : index
    %1323 = memref.load %arg1[%c107] : memref<186xf32, #tpu.memory_space<smem>>
    %1324 = vector.broadcast %1323 : f32 to vector<1x128xf32>
    %1325 = arith.mulf %1312, %1324 : vector<1x128xf32>
    %1326 = arith.addf %1286, %1325 : vector<1x128xf32>
    %c143 = arith.constant 143 : index
    %1327 = memref.load %arg1[%c143] : memref<186xf32, #tpu.memory_space<smem>>
    %1328 = vector.broadcast %1327 : f32 to vector<1x128xf32>
    %1329 = arith.mulf %1312, %1328 : vector<1x128xf32>
    %1330 = arith.addf %1290, %1329 : vector<1x128xf32>
    %c179 = arith.constant 179 : index
    %1331 = memref.load %arg1[%c179] : memref<186xf32, #tpu.memory_space<smem>>
    %1332 = vector.broadcast %1331 : f32 to vector<1x128xf32>
    %1333 = arith.mulf %1312, %1332 : vector<1x128xf32>
    %1334 = arith.addf %1294, %1333 : vector<1x128xf32>
    %c70_198 = arith.constant 70 : index
    %1335 = memref.load %arg1[%c70_198] : memref<186xf32, #tpu.memory_space<smem>>
    %1336 = vector.broadcast %1335 : f32 to vector<1x128xf32>
    %1337 = arith.mulf %1314, %1336 : vector<1x128xf32>
    %1338 = arith.addf %1298, %1337 : vector<1x128xf32>
    %c107_199 = arith.constant 107 : index
    %1339 = memref.load %arg1[%c107_199] : memref<186xf32, #tpu.memory_space<smem>>
    %1340 = vector.broadcast %1339 : f32 to vector<1x128xf32>
    %1341 = arith.mulf %1314, %1340 : vector<1x128xf32>
    %1342 = arith.addf %1302, %1341 : vector<1x128xf32>
    %c143_200 = arith.constant 143 : index
    %1343 = memref.load %arg1[%c143_200] : memref<186xf32, #tpu.memory_space<smem>>
    %1344 = vector.broadcast %1343 : f32 to vector<1x128xf32>
    %1345 = arith.mulf %1314, %1344 : vector<1x128xf32>
    %1346 = arith.addf %1306, %1345 : vector<1x128xf32>
    %c179_201 = arith.constant 179 : index
    %1347 = memref.load %arg1[%c179_201] : memref<186xf32, #tpu.memory_space<smem>>
    %1348 = vector.broadcast %1347 : f32 to vector<1x128xf32>
    %1349 = arith.mulf %1314, %1348 : vector<1x128xf32>
    %1350 = arith.addf %1310, %1349 : vector<1x128xf32>
    %c238_i32_202 = arith.constant 238 : i32
    %1351 = tpu.dynamic_rotate %1111 by %c238_i32_202 dim 1 : vector<1x256xf32>, i32 -> vector<1x256xf32>
    %1352 = vector.extract_strided_slice %1351 {offsets = [0, 0], sizes = [1, 128], strides = [1, 1]} : vector<1x256xf32> to vector<1x128xf32>
    %c238_i32_203 = arith.constant 238 : i32
    %1353 = tpu.dynamic_rotate %1112 by %c238_i32_203 dim 1 : vector<1x256xf32>, i32 -> vector<1x256xf32>
    %1354 = vector.extract_strided_slice %1353 {offsets = [0, 0], sizes = [1, 128], strides = [1, 1]} : vector<1x256xf32> to vector<1x128xf32>
    %c33 = arith.constant 33 : index
    %1355 = memref.load %arg1[%c33] : memref<186xf32, #tpu.memory_space<smem>>
    %1356 = vector.broadcast %1355 : f32 to vector<1x128xf32>
    %1357 = arith.mulf %1352, %1356 : vector<1x128xf32>
    %1358 = arith.addf %1318, %1357 : vector<1x128xf32>
    %c71 = arith.constant 71 : index
    %1359 = memref.load %arg1[%c71] : memref<186xf32, #tpu.memory_space<smem>>
    %1360 = vector.broadcast %1359 : f32 to vector<1x128xf32>
    %1361 = arith.mulf %1352, %1360 : vector<1x128xf32>
    %1362 = arith.addf %1322, %1361 : vector<1x128xf32>
    %c108 = arith.constant 108 : index
    %1363 = memref.load %arg1[%c108] : memref<186xf32, #tpu.memory_space<smem>>
    %1364 = vector.broadcast %1363 : f32 to vector<1x128xf32>
    %1365 = arith.mulf %1352, %1364 : vector<1x128xf32>
    %1366 = arith.addf %1326, %1365 : vector<1x128xf32>
    %c144 = arith.constant 144 : index
    %1367 = memref.load %arg1[%c144] : memref<186xf32, #tpu.memory_space<smem>>
    %1368 = vector.broadcast %1367 : f32 to vector<1x128xf32>
    %1369 = arith.mulf %1352, %1368 : vector<1x128xf32>
    %1370 = arith.addf %1330, %1369 : vector<1x128xf32>
    %c180 = arith.constant 180 : index
    %1371 = memref.load %arg1[%c180] : memref<186xf32, #tpu.memory_space<smem>>
    %1372 = vector.broadcast %1371 : f32 to vector<1x128xf32>
    %1373 = arith.mulf %1352, %1372 : vector<1x128xf32>
    %1374 = arith.addf %1334, %1373 : vector<1x128xf32>
    %c71_204 = arith.constant 71 : index
    %1375 = memref.load %arg1[%c71_204] : memref<186xf32, #tpu.memory_space<smem>>
    %1376 = vector.broadcast %1375 : f32 to vector<1x128xf32>
    %1377 = arith.mulf %1354, %1376 : vector<1x128xf32>
    %1378 = arith.addf %1338, %1377 : vector<1x128xf32>
    %c108_205 = arith.constant 108 : index
    %1379 = memref.load %arg1[%c108_205] : memref<186xf32, #tpu.memory_space<smem>>
    %1380 = vector.broadcast %1379 : f32 to vector<1x128xf32>
    %1381 = arith.mulf %1354, %1380 : vector<1x128xf32>
    %1382 = arith.addf %1342, %1381 : vector<1x128xf32>
    %c144_206 = arith.constant 144 : index
    %1383 = memref.load %arg1[%c144_206] : memref<186xf32, #tpu.memory_space<smem>>
    %1384 = vector.broadcast %1383 : f32 to vector<1x128xf32>
    %1385 = arith.mulf %1354, %1384 : vector<1x128xf32>
    %1386 = arith.addf %1346, %1385 : vector<1x128xf32>
    %c180_207 = arith.constant 180 : index
    %1387 = memref.load %arg1[%c180_207] : memref<186xf32, #tpu.memory_space<smem>>
    %1388 = vector.broadcast %1387 : f32 to vector<1x128xf32>
    %1389 = arith.mulf %1354, %1388 : vector<1x128xf32>
    %1390 = arith.addf %1350, %1389 : vector<1x128xf32>
    %c237_i32_208 = arith.constant 237 : i32
    %1391 = tpu.dynamic_rotate %1111 by %c237_i32_208 dim 1 : vector<1x256xf32>, i32 -> vector<1x256xf32>
    %1392 = vector.extract_strided_slice %1391 {offsets = [0, 0], sizes = [1, 128], strides = [1, 1]} : vector<1x256xf32> to vector<1x128xf32>
    %c237_i32_209 = arith.constant 237 : i32
    %1393 = tpu.dynamic_rotate %1112 by %c237_i32_209 dim 1 : vector<1x256xf32>, i32 -> vector<1x256xf32>
    %1394 = vector.extract_strided_slice %1393 {offsets = [0, 0], sizes = [1, 128], strides = [1, 1]} : vector<1x256xf32> to vector<1x128xf32>
    %c34 = arith.constant 34 : index
    %1395 = memref.load %arg1[%c34] : memref<186xf32, #tpu.memory_space<smem>>
    %1396 = vector.broadcast %1395 : f32 to vector<1x128xf32>
    %1397 = arith.mulf %1392, %1396 : vector<1x128xf32>
    %1398 = arith.addf %1358, %1397 : vector<1x128xf32>
    %c72 = arith.constant 72 : index
    %1399 = memref.load %arg1[%c72] : memref<186xf32, #tpu.memory_space<smem>>
    %1400 = vector.broadcast %1399 : f32 to vector<1x128xf32>
    %1401 = arith.mulf %1392, %1400 : vector<1x128xf32>
    %1402 = arith.addf %1362, %1401 : vector<1x128xf32>
    %c109 = arith.constant 109 : index
    %1403 = memref.load %arg1[%c109] : memref<186xf32, #tpu.memory_space<smem>>
    %1404 = vector.broadcast %1403 : f32 to vector<1x128xf32>
    %1405 = arith.mulf %1392, %1404 : vector<1x128xf32>
    %1406 = arith.addf %1366, %1405 : vector<1x128xf32>
    %c145 = arith.constant 145 : index
    %1407 = memref.load %arg1[%c145] : memref<186xf32, #tpu.memory_space<smem>>
    %1408 = vector.broadcast %1407 : f32 to vector<1x128xf32>
    %1409 = arith.mulf %1392, %1408 : vector<1x128xf32>
    %1410 = arith.addf %1370, %1409 : vector<1x128xf32>
    %c181 = arith.constant 181 : index
    %1411 = memref.load %arg1[%c181] : memref<186xf32, #tpu.memory_space<smem>>
    %1412 = vector.broadcast %1411 : f32 to vector<1x128xf32>
    %1413 = arith.mulf %1392, %1412 : vector<1x128xf32>
    %1414 = arith.addf %1374, %1413 : vector<1x128xf32>
    %c72_210 = arith.constant 72 : index
    %1415 = memref.load %arg1[%c72_210] : memref<186xf32, #tpu.memory_space<smem>>
    %1416 = vector.broadcast %1415 : f32 to vector<1x128xf32>
    %1417 = arith.mulf %1394, %1416 : vector<1x128xf32>
    %1418 = arith.addf %1378, %1417 : vector<1x128xf32>
    %c109_211 = arith.constant 109 : index
    %1419 = memref.load %arg1[%c109_211] : memref<186xf32, #tpu.memory_space<smem>>
    %1420 = vector.broadcast %1419 : f32 to vector<1x128xf32>
    %1421 = arith.mulf %1394, %1420 : vector<1x128xf32>
    %1422 = arith.addf %1382, %1421 : vector<1x128xf32>
    %c145_212 = arith.constant 145 : index
    %1423 = memref.load %arg1[%c145_212] : memref<186xf32, #tpu.memory_space<smem>>
    %1424 = vector.broadcast %1423 : f32 to vector<1x128xf32>
    %1425 = arith.mulf %1394, %1424 : vector<1x128xf32>
    %1426 = arith.addf %1386, %1425 : vector<1x128xf32>
    %c181_213 = arith.constant 181 : index
    %1427 = memref.load %arg1[%c181_213] : memref<186xf32, #tpu.memory_space<smem>>
    %1428 = vector.broadcast %1427 : f32 to vector<1x128xf32>
    %1429 = arith.mulf %1394, %1428 : vector<1x128xf32>
    %1430 = arith.addf %1390, %1429 : vector<1x128xf32>
    %c236_i32_214 = arith.constant 236 : i32
    %1431 = tpu.dynamic_rotate %1111 by %c236_i32_214 dim 1 : vector<1x256xf32>, i32 -> vector<1x256xf32>
    %1432 = vector.extract_strided_slice %1431 {offsets = [0, 0], sizes = [1, 128], strides = [1, 1]} : vector<1x256xf32> to vector<1x128xf32>
    %c236_i32_215 = arith.constant 236 : i32
    %1433 = tpu.dynamic_rotate %1112 by %c236_i32_215 dim 1 : vector<1x256xf32>, i32 -> vector<1x256xf32>
    %1434 = vector.extract_strided_slice %1433 {offsets = [0, 0], sizes = [1, 128], strides = [1, 1]} : vector<1x256xf32> to vector<1x128xf32>
    %c35 = arith.constant 35 : index
    %1435 = memref.load %arg1[%c35] : memref<186xf32, #tpu.memory_space<smem>>
    %1436 = vector.broadcast %1435 : f32 to vector<1x128xf32>
    %1437 = arith.mulf %1432, %1436 : vector<1x128xf32>
    %1438 = arith.addf %1398, %1437 : vector<1x128xf32>
    %c73 = arith.constant 73 : index
    %1439 = memref.load %arg1[%c73] : memref<186xf32, #tpu.memory_space<smem>>
    %1440 = vector.broadcast %1439 : f32 to vector<1x128xf32>
    %1441 = arith.mulf %1432, %1440 : vector<1x128xf32>
    %1442 = arith.addf %1402, %1441 : vector<1x128xf32>
    %c110 = arith.constant 110 : index
    %1443 = memref.load %arg1[%c110] : memref<186xf32, #tpu.memory_space<smem>>
    %1444 = vector.broadcast %1443 : f32 to vector<1x128xf32>
    %1445 = arith.mulf %1432, %1444 : vector<1x128xf32>
    %1446 = arith.addf %1406, %1445 : vector<1x128xf32>
    %c146 = arith.constant 146 : index
    %1447 = memref.load %arg1[%c146] : memref<186xf32, #tpu.memory_space<smem>>
    %1448 = vector.broadcast %1447 : f32 to vector<1x128xf32>
    %1449 = arith.mulf %1432, %1448 : vector<1x128xf32>
    %1450 = arith.addf %1410, %1449 : vector<1x128xf32>
    %c182 = arith.constant 182 : index
    %1451 = memref.load %arg1[%c182] : memref<186xf32, #tpu.memory_space<smem>>
    %1452 = vector.broadcast %1451 : f32 to vector<1x128xf32>
    %1453 = arith.mulf %1432, %1452 : vector<1x128xf32>
    %1454 = arith.addf %1414, %1453 : vector<1x128xf32>
    %c73_216 = arith.constant 73 : index
    %1455 = memref.load %arg1[%c73_216] : memref<186xf32, #tpu.memory_space<smem>>
    %1456 = vector.broadcast %1455 : f32 to vector<1x128xf32>
    %1457 = arith.mulf %1434, %1456 : vector<1x128xf32>
    %1458 = arith.addf %1418, %1457 : vector<1x128xf32>
    %c110_217 = arith.constant 110 : index
    %1459 = memref.load %arg1[%c110_217] : memref<186xf32, #tpu.memory_space<smem>>
    %1460 = vector.broadcast %1459 : f32 to vector<1x128xf32>
    %1461 = arith.mulf %1434, %1460 : vector<1x128xf32>
    %1462 = arith.addf %1422, %1461 : vector<1x128xf32>
    %c146_218 = arith.constant 146 : index
    %1463 = memref.load %arg1[%c146_218] : memref<186xf32, #tpu.memory_space<smem>>
    %1464 = vector.broadcast %1463 : f32 to vector<1x128xf32>
    %1465 = arith.mulf %1434, %1464 : vector<1x128xf32>
    %1466 = arith.addf %1426, %1465 : vector<1x128xf32>
    %c182_219 = arith.constant 182 : index
    %1467 = memref.load %arg1[%c182_219] : memref<186xf32, #tpu.memory_space<smem>>
    %1468 = vector.broadcast %1467 : f32 to vector<1x128xf32>
    %1469 = arith.mulf %1434, %1468 : vector<1x128xf32>
    %1470 = arith.addf %1430, %1469 : vector<1x128xf32>
    %c0_220 = arith.constant 0 : index
    %c0_221 = arith.constant 0 : index
    %1471 = vector.load %arg2[%c0_220, %c0_221] : memref<10x128xf32, #tpu.memory_space<vmem>>, vector<1x128xf32>
    tpu.vector_store %arg2[%c0_220, %c0_221], %718 {strides = array<i32>} : memref<10x128xf32, #tpu.memory_space<vmem>>, vector<1x128xf32>,
    %c1_222 = arith.constant 1 : index
    %c0_223 = arith.constant 0 : index
    %1472 = vector.load %arg2[%c1_222, %c0_223] : memref<10x128xf32, #tpu.memory_space<vmem>>, vector<1x128xf32>
    tpu.vector_store %arg2[%c1_222, %c0_223], %1438 {strides = array<i32>} : memref<10x128xf32, #tpu.memory_space<vmem>>, vector<1x128xf32>,
    %c2_224 = arith.constant 2 : index
    %c0_225 = arith.constant 0 : index
    %1473 = vector.load %arg2[%c2_224, %c0_225] : memref<10x128xf32, #tpu.memory_space<vmem>>, vector<1x128xf32>
    tpu.vector_store %arg2[%c2_224, %c0_225], %1442 {strides = array<i32>} : memref<10x128xf32, #tpu.memory_space<vmem>>, vector<1x128xf32>,
    %c3_226 = arith.constant 3 : index
    %c0_227 = arith.constant 0 : index
    %1474 = vector.load %arg2[%c3_226, %c0_227] : memref<10x128xf32, #tpu.memory_space<vmem>>, vector<1x128xf32>
    tpu.vector_store %arg2[%c3_226, %c0_227], %1458 {strides = array<i32>} : memref<10x128xf32, #tpu.memory_space<vmem>>, vector<1x128xf32>,
    %c4_228 = arith.constant 4 : index
    %c0_229 = arith.constant 0 : index
    %1475 = vector.load %arg2[%c4_228, %c0_229] : memref<10x128xf32, #tpu.memory_space<vmem>>, vector<1x128xf32>
    tpu.vector_store %arg2[%c4_228, %c0_229], %1446 {strides = array<i32>} : memref<10x128xf32, #tpu.memory_space<vmem>>, vector<1x128xf32>,
    %c5_230 = arith.constant 5 : index
    %c0_231 = arith.constant 0 : index
    %1476 = vector.load %arg2[%c5_230, %c0_231] : memref<10x128xf32, #tpu.memory_space<vmem>>, vector<1x128xf32>
    tpu.vector_store %arg2[%c5_230, %c0_231], %1450 {strides = array<i32>} : memref<10x128xf32, #tpu.memory_space<vmem>>, vector<1x128xf32>,
    %c6_232 = arith.constant 6 : index
    %c0_233 = arith.constant 0 : index
    %1477 = vector.load %arg2[%c6_232, %c0_233] : memref<10x128xf32, #tpu.memory_space<vmem>>, vector<1x128xf32>
    tpu.vector_store %arg2[%c6_232, %c0_233], %1454 {strides = array<i32>} : memref<10x128xf32, #tpu.memory_space<vmem>>, vector<1x128xf32>,
    %c7_234 = arith.constant 7 : index
    %c0_235 = arith.constant 0 : index
    %1478 = vector.load %arg2[%c7_234, %c0_235] : memref<10x128xf32, #tpu.memory_space<vmem>>, vector<1x128xf32>
    tpu.vector_store %arg2[%c7_234, %c0_235], %1462 {strides = array<i32>} : memref<10x128xf32, #tpu.memory_space<vmem>>, vector<1x128xf32>,
    %c8_236 = arith.constant 8 : index
    %c0_237 = arith.constant 0 : index
    %1479 = vector.load %arg2[%c8_236, %c0_237] : memref<10x128xf32, #tpu.memory_space<vmem>>, vector<1x128xf32>
    tpu.vector_store %arg2[%c8_236, %c0_237], %1466 {strides = array<i32>} : memref<10x128xf32, #tpu.memory_space<vmem>>, vector<1x128xf32>,
    %c9_238 = arith.constant 9 : index
    %c0_239 = arith.constant 0 : index
    %1480 = vector.load %arg2[%c9_238, %c0_239] : memref<10x128xf32, #tpu.memory_space<vmem>>, vector<1x128xf32>
    tpu.vector_store %arg2[%c9_238, %c0_239], %1470 {strides = array<i32>} : memref<10x128xf32, #tpu.memory_space<vmem>>, vector<1x128xf32>,
    return
  }
}

</mosaic_0001>

<llo_original>
// kernel: model_forward.1
$region0: #{model_forward.1}
  #allocation0 [shape = 'u32[]', space=smem, size = 0x4, offset = 0x4, fixed_abs, tag = 'smem constant byte address 0x4 - core index']
  #allocation1 [shape = 'u32[144,128]{1,0:T(1,128)}', space=vmem, size = 0x12000, scoped, tag = 'internal scratch']
  %s0 = inlined_call_operand.vmem [shape: f32[8,256], index: 0, kind: input, shape index: {}]
  %s1 = inlined_call_operand.vmem [shape: f32[186], index: 1, kind: input, shape index: {}]
  %s2 = inlined_call_operand.vmem [shape: f32[10,128], index: 2, kind: output, shape index: {}]
  %s3 = sld [smem:[#allocation0]]
  $region22: #{model_forward.1} parent=0
    _
  %s5 = ssub.s32 1, %s3
  %s6 = scalar_select 0, %s5, %s3
  $region1: #{model_forward.1} parent=0
    #allocation2 [shape = 'u8[1024]{0}', space=smem, size = 0x400, scoped, tag = 'input window, operand 1, single buffered']
    #allocation3 [shape = 's32[1]{0}', space=sflag, size = 0x4, scoped, tag = 'scoped memory for model_forward.1']
    %7 = vsyncpa [#allocation3], 0
    // Predicated region
    $region2: #{model_forward.1} parent=1 // pred_check
      _
    $region3: #{model_forward.1} parent=1 // pred_check_branch
      %9 = sbr.rel (0) target = $region5
    $region4: #{model_forward.1} parent=1 // pred_region
      _
    $region5: #{model_forward.1} parent=1 // pred_fallthru
      _
    // Predicated region
    $region6: #{model_forward.1} parent=1 // pred_check
      _
    $region7: #{model_forward.1} parent=1 // pred_check_branch
      %11 = sbr.rel (0) target = $region9
    $region8: #{model_forward.1} parent=1 // pred_region
      %s13 = ssub.s32 32, 32
      %14 = vsyncadd [#allocation3], %s13
      %s16 = sshll.u32 %s1, 4
      %s17 = int_to_ptr.vmem [resolvable:$true] %s16
      %19 = dma.vmem_to_smem %s17, 32, [#allocation2], [#allocation3]
    $region9: #{model_forward.1} parent=1 // pred_fallthru
      _
    // Predicated region
    $region10: #{model_forward.1} parent=1 // pred_check
      _
    $region11: #{model_forward.1} parent=1 // pred_check_branch
      %21 = sbr.rel (0) target = $region13
    $region12: #{model_forward.1} parent=1 // pred_region
      %22 = dma.done [#allocation3], 32
    $region13: #{model_forward.1} parent=1 // pred_fallthru
      _
    %23 = sfence
    %s24 = sld [smem:[#allocation2 + $0x24]]
    %v25 = vstv %s24
    %v26 = vadd.f32 %v25, 0.0
    %s27 = sld [smem:[#allocation2 + $0x25]]
    %v28 = vstv %s27
    %v29 = vadd.f32 %v28, 0.0
    %s30 = sld [smem:[#allocation2 + $0x4a]]
    %v31 = vstv %s30
    %v32 = vadd.f32 %v31, 0.0
    %s33 = sld [smem:[#allocation2 + $0xb7]]
    %v34 = vstv %s33
    %v35 = vadd.f32 %v34, 0.0
    %s36 = sld [smem:[#allocation2 + $0xb8]]
    %v37 = vstv %s36
    %v38 = vadd.f32 %v37, 0.0
    %s39 = sld [smem:[#allocation2 + $0xb9]]
    %v40 = vstv %s39
    %v41 = vadd.f32 %v40, 0.0
    %v42 = vld [vmem:[%s0] ss:$8 sm:$0x3]
    %s43 = scalar_lea.vmem %s0, 4
    %v44 = vld [vmem:[%s43] ss:$8 sm:$0x3]
    %s45 = sld [smem:[#allocation2]]
    %v46 = vstv %s45
    %v47 = vmul.f32 %v42, %v46
    %v48 = vadd.f32 %v26, %v47
    %s49 = sld [smem:[#allocation2 + $0x26]]
    %v50 = vstv %s49
    %v51 = vmul.f32 %v42, %v50
    %v52 = vadd.f32 %v32, %v51
    %s53 = sld [smem:[#allocation2 + $0x4b]]
    %v54 = vstv %s53
    %v55 = vmul.f32 %v42, %v54
    %v56 = vadd.f32 %v35, %v55
    %s57 = sld [smem:[#allocation2 + $0x6f]]
    %v58 = vstv %s57
    %v59 = vmul.f32 %v42, %v58
    %v60 = vadd.f32 %v38, %v59
    %s61 = sld [smem:[#allocation2 + $0x93]]
    %v62 = vstv %s61
    %v63 = vmul.f32 %v42, %v62
    %v64 = vadd.f32 %v41, %v63
    %v65 = vmul.f32 %v44, %v50
    %v66 = vadd.f32 %v32, %v65
    %v67 = vmul.f32 %v44, %v54
    %v68 = vadd.f32 %v35, %v67
    %v69 = vmul.f32 %v44, %v58
    %v70 = vadd.f32 %v38, %v69
    %v71 = vmul.f32 %v44, %v62
    %v72 = vadd.f32 %v41, %v71
    %v74 = vlaneseq
    %v75 = vshrl.u32 %v74, 7
    %v76 = vsub.s32 0, %v75
    %v77 = vrot.slane %v42, %v76
    %v78 = vlaneseq
    %v79 = vshrl.u32 %v78, 7
    %v80 = vsub.s32 1, %v79
    %v81 = vrot.slane %v42, %v80
    %84 = vrot.lane.b32.xlu0 %v77, 127
    %v85 = vpop.permute.xlu0 %84
    %86 = vrot.lane.b32.xlu0 %v81, 127
    %v87 = vpop.permute.xlu0 %86
    %v88 = vlaneseq
    %v89 = vand.u32 %v88, 127
    %vm90 = vcmp.lt.s32.totalorder %v89, 127
    %v91 = vsel %vm90, %v85, %v87
    %v93 = vlaneseq
    %v94 = vshrl.u32 %v93, 7
    %v95 = vsub.s32 0, %v94
    %v96 = vrot.slane %v44, %v95
    %v97 = vlaneseq
    %v98 = vshrl.u32 %v97, 7
    %v99 = vsub.s32 1, %v98
    %v100 = vrot.slane %v44, %v99
    %103 = vrot.lane.b32.xlu0 %v96, 127
    %v104 = vpop.permute.xlu0 %103
    %105 = vrot.lane.b32.xlu0 %v100, 127
    %v106 = vpop.permute.xlu0 %105
    %v107 = vsel %vm90, %v104, %v106
    %s108 = sld [smem:[#allocation2 + $0x1]]
    %v109 = vstv %s108
    %v110 = vmul.f32 %v91, %v109
    %v111 = vadd.f32 %v48, %v110
    %s112 = sld [smem:[#allocation2 + $0x27]]
    %v113 = vstv %s112
    %v114 = vmul.f32 %v91, %v113
    %v115 = vadd.f32 %v52, %v114
    %s116 = sld [smem:[#allocation2 + $0x4c]]
    %v117 = vstv %s116
    %v118 = vmul.f32 %v91, %v117
    %v119 = vadd.f32 %v56, %v118
    %s120 = sld [smem:[#allocation2 + $0x70]]
    %v121 = vstv %s120
    %v122 = vmul.f32 %v91, %v121
    %v123 = vadd.f32 %v60, %v122
    %s124 = sld [smem:[#allocation2 + $0x94]]
    %v125 = vstv %s124
    %v126 = vmul.f32 %v91, %v125
    %v127 = vadd.f32 %v64, %v126
    %v128 = vmul.f32 %v107, %v113
    %v129 = vadd.f32 %v66, %v128
    %v130 = vmul.f32 %v107, %v117
    %v131 = vadd.f32 %v68, %v130
    %v132 = vmul.f32 %v107, %v121
    %v133 = vadd.f32 %v70, %v132
    %v134 = vmul.f32 %v107, %v125
    %v135 = vadd.f32 %v72, %v134
    %136 = vrot.lane.b32.xlu0 %v77, 126
    %v137 = vpop.permute.xlu0 %136
    %138 = vrot.lane.b32.xlu0 %v81, 126
    %v139 = vpop.permute.xlu0 %138
    %vm140 = vcmp.lt.s32.totalorder %v89, 126
    %v141 = vsel %vm140, %v137, %v139
    %142 = vrot.lane.b32.xlu0 %v96, 126
    %v143 = vpop.permute.xlu0 %142
    %144 = vrot.lane.b32.xlu0 %v100, 126
    %v145 = vpop.permute.xlu0 %144
    %v146 = vsel %vm140, %v143, %v145
    %s147 = sld [smem:[#allocation2 + $0x2]]
    %v148 = vstv %s147
    %v149 = vmul.f32 %v141, %v148
    %v150 = vadd.f32 %v111, %v149
    %s151 = sld [smem:[#allocation2 + $0x28]]
    %v152 = vstv %s151
    %v153 = vmul.f32 %v141, %v152
    %v154 = vadd.f32 %v115, %v153
    %s155 = sld [smem:[#allocation2 + $0x4d]]
    %v156 = vstv %s155
    %v157 = vmul.f32 %v141, %v156
    %v158 = vadd.f32 %v119, %v157
    %s159 = sld [smem:[#allocation2 + $0x71]]
    %v160 = vstv %s159
    %v161 = vmul.f32 %v141, %v160
    %v162 = vadd.f32 %v123, %v161
    %s163 = sld [smem:[#allocation2 + $0x95]]
    %v164 = vstv %s163
    %v165 = vmul.f32 %v141, %v164
    %v166 = vadd.f32 %v127, %v165
    %v167 = vmul.f32 %v146, %v152
    %v168 = vadd.f32 %v129, %v167
    %v169 = vmul.f32 %v146, %v156
    %v170 = vadd.f32 %v131, %v169
    %v171 = vmul.f32 %v146, %v160
    %v172 = vadd.f32 %v133, %v171
    %v173 = vmul.f32 %v146, %v164
    %v174 = vadd.f32 %v135, %v173
    %175 = vrot.lane.b32.xlu0 %v77, 119
    %v176 = vpop.permute.xlu0 %175
    %177 = vrot.lane.b32.xlu0 %v81, 119
    %v178 = vpop.permute.xlu0 %177
    %vm179 = vcmp.lt.s32.totalorder %v89, 119
    %v180 = vsel %vm179, %v176, %v178
    %181 = vrot.lane.b32.xlu0 %v96, 119
    %v182 = vpop.permute.xlu0 %181
    %183 = vrot.lane.b32.xlu0 %v100, 119
    %v184 = vpop.permute.xlu0 %183
    %v185 = vsel %vm179, %v182, %v184
    %s186 = sld [smem:[#allocation2 + $0x3]]
    %v187 = vstv %s186
    %v188 = vmul.f32 %v180, %v187
    %v189 = vadd.f32 %v150, %v188
    %s190 = sld [smem:[#allocation2 + $0x29]]
    %v191 = vstv %s190
    %v192 = vmul.f32 %v180, %v191
    %v193 = vadd.f32 %v154, %v192
    %s194 = sld [smem:[#allocation2 + $0x4e]]
    %v195 = vstv %s194
    %v196 = vmul.f32 %v180, %v195
    %v197 = vadd.f32 %v158, %v196
    %s198 = sld [smem:[#allocation2 + $0x72]]
    %v199 = vstv %s198
    %v200 = vmul.f32 %v180, %v199
    %v201 = vadd.f32 %v162, %v200
    %s202 = sld [smem:[#allocation2 + $0x96]]
    %v203 = vstv %s202
    %v204 = vmul.f32 %v180, %v203
    %v205 = vadd.f32 %v166, %v204
    %v206 = vmul.f32 %v185, %v191
    %v207 = vadd.f32 %v168, %v206
    %v208 = vmul.f32 %v185, %v195
    %v209 = vadd.f32 %v170, %v208
    %v210 = vmul.f32 %v185, %v199
    %v211 = vadd.f32 %v172, %v210
    %v212 = vmul.f32 %v185, %v203
    %v213 = vadd.f32 %v174, %v212
    %214 = vrot.lane.b32.xlu0 %v77, 118
    %v215 = vpop.permute.xlu0 %214
    %216 = vrot.lane.b32.xlu0 %v81, 118
    %v217 = vpop.permute.xlu0 %216
    %vm218 = vcmp.lt.s32.totalorder %v89, 118
    %v219 = vsel %vm218, %v215, %v217
    %220 = vrot.lane.b32.xlu0 %v96, 118
    %v221 = vpop.permute.xlu0 %220
    %222 = vrot.lane.b32.xlu0 %v100, 118
    %v223 = vpop.permute.xlu0 %222
    %v224 = vsel %vm218, %v221, %v223
    %s225 = sld [smem:[#allocation2 + $0x4]]
    %v226 = vstv %s225
    %v227 = vmul.f32 %v219, %v226
    %v228 = vadd.f32 %v189, %v227
    %s229 = sld [smem:[#allocation2 + $0x2a]]
    %v230 = vstv %s229
    %v231 = vmul.f32 %v219, %v230
    %v232 = vadd.f32 %v193, %v231
    %s233 = sld [smem:[#allocation2 + $0x4f]]
    %v234 = vstv %s233
    %v235 = vmul.f32 %v219, %v234
    %v236 = vadd.f32 %v197, %v235
    %s237 = sld [smem:[#allocation2 + $0x73]]
    %v238 = vstv %s237
    %v239 = vmul.f32 %v219, %v238
    %v240 = vadd.f32 %v201, %v239
    %s241 = sld [smem:[#allocation2 + $0x97]]
    %v242 = vstv %s241
    %v243 = vmul.f32 %v219, %v242
    %v244 = vadd.f32 %v205, %v243
    %v245 = vmul.f32 %v224, %v230
    %v246 = vadd.f32 %v207, %v245
    %v247 = vmul.f32 %v224, %v234
    %v248 = vadd.f32 %v209, %v247
    %v249 = vmul.f32 %v224, %v238
    %v250 = vadd.f32 %v211, %v249
    %v251 = vmul.f32 %v224, %v242
    %v252 = vadd.f32 %v213, %v251
    %253 = vrot.lane.b32.xlu0 %v77, 117
    %v254 = vpop.permute.xlu0 %253
    %255 = vrot.lane.b32.xlu0 %v81, 117
    %v256 = vpop.permute.xlu0 %255
    %vm257 = vcmp.lt.s32.totalorder %v89, 117
    %v258 = vsel %vm257, %v254, %v256
    %259 = vrot.lane.b32.xlu0 %v96, 117
    %v260 = vpop.permute.xlu0 %259
    %261 = vrot.lane.b32.xlu0 %v100, 117
    %v262 = vpop.permute.xlu0 %261
    %v263 = vsel %vm257, %v260, %v262
    %s264 = sld [smem:[#allocation2 + $0x5]]
    %v265 = vstv %s264
    %v266 = vmul.f32 %v258, %v265
    %v267 = vadd.f32 %v228, %v266
    %s268 = sld [smem:[#allocation2 + $0x2b]]
    %v269 = vstv %s268
    %v270 = vmul.f32 %v258, %v269
    %v271 = vadd.f32 %v232, %v270
    %s272 = sld [smem:[#allocation2 + $0x50]]
    %v273 = vstv %s272
    %v274 = vmul.f32 %v258, %v273
    %v275 = vadd.f32 %v236, %v274
    %s276 = sld [smem:[#allocation2 + $0x74]]
    %v277 = vstv %s276
    %v278 = vmul.f32 %v258, %v277
    %v279 = vadd.f32 %v240, %v278
    %s280 = sld [smem:[#allocation2 + $0x98]]
    %v281 = vstv %s280
    %v282 = vmul.f32 %v258, %v281
    %v283 = vadd.f32 %v244, %v282
    %v284 = vmul.f32 %v263, %v269
    %v285 = vadd.f32 %v246, %v284
    %v286 = vmul.f32 %v263, %v273
    %v287 = vadd.f32 %v248, %v286
    %v288 = vmul.f32 %v263, %v277
    %v289 = vadd.f32 %v250, %v288
    %v290 = vmul.f32 %v263, %v281
    %v291 = vadd.f32 %v252, %v290
    %292 = vrot.lane.b32.xlu0 %v77, 110
    %v293 = vpop.permute.xlu0 %292
    %294 = vrot.lane.b32.xlu0 %v81, 110
    %v295 = vpop.permute.xlu0 %294
    %vm296 = vcmp.lt.s32.totalorder %v89, 110
    %v297 = vsel %vm296, %v293, %v295
    %298 = vrot.lane.b32.xlu0 %v96, 110
    %v299 = vpop.permute.xlu0 %298
    %300 = vrot.lane.b32.xlu0 %v100, 110
    %v301 = vpop.permute.xlu0 %300
    %v302 = vsel %vm296, %v299, %v301
    %s303 = sld [smem:[#allocation2 + $0x6]]
    %v304 = vstv %s303
    %v305 = vmul.f32 %v297, %v304
    %v306 = vadd.f32 %v267, %v305
    %s307 = sld [smem:[#allocation2 + $0x2c]]
    %v308 = vstv %s307
    %v309 = vmul.f32 %v297, %v308
    %v310 = vadd.f32 %v271, %v309
    %s311 = sld [smem:[#allocation2 + $0x51]]
    %v312 = vstv %s311
    %v313 = vmul.f32 %v297, %v312
    %v314 = vadd.f32 %v275, %v313
    %s315 = sld [smem:[#allocation2 + $0x75]]
    %v316 = vstv %s315
    %v317 = vmul.f32 %v297, %v316
    %v318 = vadd.f32 %v279, %v317
    %s319 = sld [smem:[#allocation2 + $0x99]]
    %v320 = vstv %s319
    %v321 = vmul.f32 %v297, %v320
    %v322 = vadd.f32 %v283, %v321
    %v323 = vmul.f32 %v302, %v308
    %v324 = vadd.f32 %v285, %v323
    %v325 = vmul.f32 %v302, %v312
    %v326 = vadd.f32 %v287, %v325
    %v327 = vmul.f32 %v302, %v316
    %v328 = vadd.f32 %v289, %v327
    %v329 = vmul.f32 %v302, %v320
    %v330 = vadd.f32 %v291, %v329
    %331 = vrot.lane.b32.xlu0 %v77, 109
    %v332 = vpop.permute.xlu0 %331
    %333 = vrot.lane.b32.xlu0 %v81, 109
    %v334 = vpop.permute.xlu0 %333
    %vm335 = vcmp.lt.s32.totalorder %v89, 109
    %v336 = vsel %vm335, %v332, %v334
    %337 = vrot.lane.b32.xlu0 %v96, 109
    %v338 = vpop.permute.xlu0 %337
    %339 = vrot.lane.b32.xlu0 %v100, 109
    %v340 = vpop.permute.xlu0 %339
    %v341 = vsel %vm335, %v338, %v340
    %s342 = sld [smem:[#allocation2 + $0x7]]
    %v343 = vstv %s342
    %v344 = vmul.f32 %v336, %v343
    %v345 = vadd.f32 %v306, %v344
    %s346 = sld [smem:[#allocation2 + $0x2d]]
    %v347 = vstv %s346
    %v348 = vmul.f32 %v336, %v347
    %v349 = vadd.f32 %v310, %v348
    %s350 = sld [smem:[#allocation2 + $0x52]]
    %v351 = vstv %s350
    %v352 = vmul.f32 %v336, %v351
    %v353 = vadd.f32 %v314, %v352
    %s354 = sld [smem:[#allocation2 + $0x76]]
    %v355 = vstv %s354
    %v356 = vmul.f32 %v336, %v355
    %v357 = vadd.f32 %v318, %v356
    %s358 = sld [smem:[#allocation2 + $0x9a]]
    %v359 = vstv %s358
    %v360 = vmul.f32 %v336, %v359
    %v361 = vadd.f32 %v322, %v360
    %v362 = vmul.f32 %v341, %v347
    %v363 = vadd.f32 %v324, %v362
    %v364 = vmul.f32 %v341, %v351
    %v365 = vadd.f32 %v326, %v364
    %v366 = vmul.f32 %v341, %v355
    %v367 = vadd.f32 %v328, %v366
    %v368 = vmul.f32 %v341, %v359
    %v369 = vadd.f32 %v330, %v368
    %370 = vrot.lane.b32.xlu0 %v77, 108
    %v371 = vpop.permute.xlu0 %370
    %372 = vrot.lane.b32.xlu0 %v81, 108
    %v373 = vpop.permute.xlu0 %372
    %vm374 = vcmp.lt.s32.totalorder %v89, 108
    %v375 = vsel %vm374, %v371, %v373
    %376 = vrot.lane.b32.xlu0 %v96, 108
    %v377 = vpop.permute.xlu0 %376
    %378 = vrot.lane.b32.xlu0 %v100, 108
    %v379 = vpop.permute.xlu0 %378
    %v380 = vsel %vm374, %v377, %v379
    %s381 = sld [smem:[#allocation2 + $0x8]]
    %v382 = vstv %s381
    %v383 = vmul.f32 %v375, %v382
    %v384 = vadd.f32 %v345, %v383
    %s385 = sld [smem:[#allocation2 + $0x2e]]
    %v386 = vstv %s385
    %v387 = vmul.f32 %v375, %v386
    %v388 = vadd.f32 %v349, %v387
    %s389 = sld [smem:[#allocation2 + $0x53]]
    %v390 = vstv %s389
    %v391 = vmul.f32 %v375, %v390
    %v392 = vadd.f32 %v353, %v391
    %s393 = sld [smem:[#allocation2 + $0x77]]
    %v394 = vstv %s393
    %v395 = vmul.f32 %v375, %v394
    %v396 = vadd.f32 %v357, %v395
    %s397 = sld [smem:[#allocation2 + $0x9b]]
    %v398 = vstv %s397
    %v399 = vmul.f32 %v375, %v398
    %v400 = vadd.f32 %v361, %v399
    %v401 = vmul.f32 %v380, %v386
    %v402 = vadd.f32 %v363, %v401
    %v403 = vmul.f32 %v380, %v390
    %v404 = vadd.f32 %v365, %v403
    %v405 = vmul.f32 %v380, %v394
    %v406 = vadd.f32 %v367, %v405
    %v407 = vmul.f32 %v380, %v398
    %v408 = vadd.f32 %v369, %v407
    %s409 = scalar_lea.vmem %s0, 1
    %v410 = vld [vmem:[%s409] ss:$8 sm:$0x3]
    %s411 = scalar_lea.vmem %s0, 5
    %v412 = vld [vmem:[%s411] ss:$8 sm:$0x3]
    %s413 = sld [smem:[#allocation2 + $0x9]]
    %v414 = vstv %s413
    %v415 = vmul.f32 %v410, %v414
    %v416 = vadd.f32 %v384, %v415
    %s417 = sld [smem:[#allocation2 + $0x2f]]
    %v418 = vstv %s417
    %v419 = vmul.f32 %v410, %v418
    %v420 = vadd.f32 %v388, %v419
    %s421 = sld [smem:[#allocation2 + $0x54]]
    %v422 = vstv %s421
    %v423 = vmul.f32 %v410, %v422
    %v424 = vadd.f32 %v392, %v423
    %s425 = sld [smem:[#allocation2 + $0x78]]
    %v426 = vstv %s425
    %v427 = vmul.f32 %v410, %v426
    %v428 = vadd.f32 %v396, %v427
    %s429 = sld [smem:[#allocation2 + $0x9c]]
    %v430 = vstv %s429
    %v431 = vmul.f32 %v410, %v430
    %v432 = vadd.f32 %v400, %v431
    %v433 = vmul.f32 %v412, %v418
    %v434 = vadd.f32 %v402, %v433
    %v435 = vmul.f32 %v412, %v422
    %v436 = vadd.f32 %v404, %v435
    %v437 = vmul.f32 %v412, %v426
    %v438 = vadd.f32 %v406, %v437
    %v439 = vmul.f32 %v412, %v430
    %v440 = vadd.f32 %v408, %v439
    %v442 = vlaneseq
    %v443 = vshrl.u32 %v442, 7
    %v444 = vsub.s32 0, %v443
    %v445 = vrot.slane %v410, %v444
    %v446 = vlaneseq
    %v447 = vshrl.u32 %v446, 7
    %v448 = vsub.s32 1, %v447
    %v449 = vrot.slane %v410, %v448
    %452 = vrot.lane.b32.xlu0 %v445, 127
    %v453 = vpop.permute.xlu0 %452
    %454 = vrot.lane.b32.xlu0 %v449, 127
    %v455 = vpop.permute.xlu0 %454
    %v456 = vsel %vm90, %v453, %v455
    %v458 = vlaneseq
    %v459 = vshrl.u32 %v458, 7
    %v460 = vsub.s32 0, %v459
    %v461 = vrot.slane %v412, %v460
    %v462 = vlaneseq
    %v463 = vshrl.u32 %v462, 7
    %v464 = vsub.s32 1, %v463
    %v465 = vrot.slane %v412, %v464
    %468 = vrot.lane.b32.xlu0 %v461, 127
    %v469 = vpop.permute.xlu0 %468
    %470 = vrot.lane.b32.xlu0 %v465, 127
    %v471 = vpop.permute.xlu0 %470
    %v472 = vsel %vm90, %v469, %v471
    %s473 = sld [smem:[#allocation2 + $0xa]]
    %v474 = vstv %s473
    %v475 = vmul.f32 %v456, %v474
    %v476 = vadd.f32 %v416, %v475
    %s477 = sld [smem:[#allocation2 + $0x30]]
    %v478 = vstv %s477
    %v479 = vmul.f32 %v456, %v478
    %v480 = vadd.f32 %v420, %v479
    %s481 = sld [smem:[#allocation2 + $0x55]]
    %v482 = vstv %s481
    %v483 = vmul.f32 %v456, %v482
    %v484 = vadd.f32 %v424, %v483
    %s485 = sld [smem:[#allocation2 + $0x79]]
    %v486 = vstv %s485
    %v487 = vmul.f32 %v456, %v486
    %v488 = vadd.f32 %v428, %v487
    %s489 = sld [smem:[#allocation2 + $0x9d]]
    %v490 = vstv %s489
    %v491 = vmul.f32 %v456, %v490
    %v492 = vadd.f32 %v432, %v491
    %v493 = vmul.f32 %v472, %v478
    %v494 = vadd.f32 %v434, %v493
    %v495 = vmul.f32 %v472, %v482
    %v496 = vadd.f32 %v436, %v495
    %v497 = vmul.f32 %v472, %v486
    %v498 = vadd.f32 %v438, %v497
    %v499 = vmul.f32 %v472, %v490
    %v500 = vadd.f32 %v440, %v499
    %501 = vrot.lane.b32.xlu0 %v445, 126
    %v502 = vpop.permute.xlu0 %501
    %503 = vrot.lane.b32.xlu0 %v449, 126
    %v504 = vpop.permute.xlu0 %503
    %v505 = vsel %vm140, %v502, %v504
    %506 = vrot.lane.b32.xlu0 %v461, 126
    %v507 = vpop.permute.xlu0 %506
    %508 = vrot.lane.b32.xlu0 %v465, 126
    %v509 = vpop.permute.xlu0 %508
    %v510 = vsel %vm140, %v507, %v509
    %s511 = sld [smem:[#allocation2 + $0xb]]
    %v512 = vstv %s511
    %v513 = vmul.f32 %v505, %v512
    %v514 = vadd.f32 %v476, %v513
    %s515 = sld [smem:[#allocation2 + $0x31]]
    %v516 = vstv %s515
    %v517 = vmul.f32 %v505, %v516
    %v518 = vadd.f32 %v480, %v517
    %s519 = sld [smem:[#allocation2 + $0x56]]
    %v520 = vstv %s519
    %v521 = vmul.f32 %v505, %v520
    %v522 = vadd.f32 %v484, %v521
    %s523 = sld [smem:[#allocation2 + $0x7a]]
    %v524 = vstv %s523
    %v525 = vmul.f32 %v505, %v524
    %v526 = vadd.f32 %v488, %v525
    %s527 = sld [smem:[#allocation2 + $0x9e]]
    %v528 = vstv %s527
    %v529 = vmul.f32 %v505, %v528
    %v530 = vadd.f32 %v492, %v529
    %v531 = vmul.f32 %v510, %v516
    %v532 = vadd.f32 %v494, %v531
    %v533 = vmul.f32 %v510, %v520
    %v534 = vadd.f32 %v496, %v533
    %v535 = vmul.f32 %v510, %v524
    %v536 = vadd.f32 %v498, %v535
    %v537 = vmul.f32 %v510, %v528
    %v538 = vadd.f32 %v500, %v537
    %539 = vrot.lane.b32.xlu0 %v445, 119
    %v540 = vpop.permute.xlu0 %539
    %541 = vrot.lane.b32.xlu0 %v449, 119
    %v542 = vpop.permute.xlu0 %541
    %v543 = vsel %vm179, %v540, %v542
    %544 = vrot.lane.b32.xlu0 %v461, 119
    %v545 = vpop.permute.xlu0 %544
    %546 = vrot.lane.b32.xlu0 %v465, 119
    %v547 = vpop.permute.xlu0 %546
    %v548 = vsel %vm179, %v545, %v547
    %s549 = sld [smem:[#allocation2 + $0xc]]
    %v550 = vstv %s549
    %v551 = vmul.f32 %v543, %v550
    %v552 = vadd.f32 %v514, %v551
    %s553 = sld [smem:[#allocation2 + $0x32]]
    %v554 = vstv %s553
    %v555 = vmul.f32 %v543, %v554
    %v556 = vadd.f32 %v518, %v555
    %s557 = sld [smem:[#allocation2 + $0x57]]
    %v558 = vstv %s557
    %v559 = vmul.f32 %v543, %v558
    %v560 = vadd.f32 %v522, %v559
    %s561 = sld [smem:[#allocation2 + $0x7b]]
    %v562 = vstv %s561
    %v563 = vmul.f32 %v543, %v562
    %v564 = vadd.f32 %v526, %v563
    %s565 = sld [smem:[#allocation2 + $0x9f]]
    %v566 = vstv %s565
    %v567 = vmul.f32 %v543, %v566
    %v568 = vadd.f32 %v530, %v567
    %v569 = vmul.f32 %v548, %v554
    %v570 = vadd.f32 %v532, %v569
    %v571 = vmul.f32 %v548, %v558
    %v572 = vadd.f32 %v534, %v571
    %v573 = vmul.f32 %v548, %v562
    %v574 = vadd.f32 %v536, %v573
    %v575 = vmul.f32 %v548, %v566
    %v576 = vadd.f32 %v538, %v575
    %577 = vrot.lane.b32.xlu0 %v445, 118
    %v578 = vpop.permute.xlu0 %577
    %579 = vrot.lane.b32.xlu0 %v449, 118
    %v580 = vpop.permute.xlu0 %579
    %v581 = vsel %vm218, %v578, %v580
    %582 = vrot.lane.b32.xlu0 %v461, 118
    %v583 = vpop.permute.xlu0 %582
    %584 = vrot.lane.b32.xlu0 %v465, 118
    %v585 = vpop.permute.xlu0 %584
    %v586 = vsel %vm218, %v583, %v585
    %s587 = sld [smem:[#allocation2 + $0xd]]
    %v588 = vstv %s587
    %v589 = vmul.f32 %v581, %v588
    %v590 = vadd.f32 %v552, %v589
    %s591 = sld [smem:[#allocation2 + $0x33]]
    %v592 = vstv %s591
    %v593 = vmul.f32 %v581, %v592
    %v594 = vadd.f32 %v556, %v593
    %s595 = sld [smem:[#allocation2 + $0x58]]
    %v596 = vstv %s595
    %v597 = vmul.f32 %v581, %v596
    %v598 = vadd.f32 %v560, %v597
    %s599 = sld [smem:[#allocation2 + $0x7c]]
    %v600 = vstv %s599
    %v601 = vmul.f32 %v581, %v600
    %v602 = vadd.f32 %v564, %v601
    %s603 = sld [smem:[#allocation2 + $0xa0]]
    %v604 = vstv %s603
    %v605 = vmul.f32 %v581, %v604
    %v606 = vadd.f32 %v568, %v605
    %v607 = vmul.f32 %v586, %v592
    %v608 = vadd.f32 %v570, %v607
    %v609 = vmul.f32 %v586, %v596
    %v610 = vadd.f32 %v572, %v609
    %v611 = vmul.f32 %v586, %v600
    %v612 = vadd.f32 %v574, %v611
    %v613 = vmul.f32 %v586, %v604
    %v614 = vadd.f32 %v576, %v613
    %615 = vrot.lane.b32.xlu0 %v445, 117
    %v616 = vpop.permute.xlu0 %615
    %617 = vrot.lane.b32.xlu0 %v449, 117
    %v618 = vpop.permute.xlu0 %617
    %v619 = vsel %vm257, %v616, %v618
    %620 = vrot.lane.b32.xlu0 %v461, 117
    %v621 = vpop.permute.xlu0 %620
    %622 = vrot.lane.b32.xlu0 %v465, 117
    %v623 = vpop.permute.xlu0 %622
    %v624 = vsel %vm257, %v621, %v623
    %s625 = sld [smem:[#allocation2 + $0xe]]
    %v626 = vstv %s625
    %v627 = vmul.f32 %v619, %v626
    %v628 = vadd.f32 %v590, %v627
    %s629 = sld [smem:[#allocation2 + $0x34]]
    %v630 = vstv %s629
    %v631 = vmul.f32 %v619, %v630
    %v632 = vadd.f32 %v594, %v631
    %s633 = sld [smem:[#allocation2 + $0x59]]
    %v634 = vstv %s633
    %v635 = vmul.f32 %v619, %v634
    %v636 = vadd.f32 %v598, %v635
    %s637 = sld [smem:[#allocation2 + $0x7d]]
    %v638 = vstv %s637
    %v639 = vmul.f32 %v619, %v638
    %v640 = vadd.f32 %v602, %v639
    %s641 = sld [smem:[#allocation2 + $0xa1]]
    %v642 = vstv %s641
    %v643 = vmul.f32 %v619, %v642
    %v644 = vadd.f32 %v606, %v643
    %v645 = vmul.f32 %v624, %v630
    %v646 = vadd.f32 %v608, %v645
    %v647 = vmul.f32 %v624, %v634
    %v648 = vadd.f32 %v610, %v647
    %v649 = vmul.f32 %v624, %v638
    %v650 = vadd.f32 %v612, %v649
    %v651 = vmul.f32 %v624, %v642
    %v652 = vadd.f32 %v614, %v651
    %653 = vrot.lane.b32.xlu0 %v445, 110
    %v654 = vpop.permute.xlu0 %653
    %655 = vrot.lane.b32.xlu0 %v449, 110
    %v656 = vpop.permute.xlu0 %655
    %v657 = vsel %vm296, %v654, %v656
    %658 = vrot.lane.b32.xlu0 %v461, 110
    %v659 = vpop.permute.xlu0 %658
    %660 = vrot.lane.b32.xlu0 %v465, 110
    %v661 = vpop.permute.xlu0 %660
    %v662 = vsel %vm296, %v659, %v661
    %s663 = sld [smem:[#allocation2 + $0xf]]
    %v664 = vstv %s663
    %v665 = vmul.f32 %v657, %v664
    %v666 = vadd.f32 %v628, %v665
    %s667 = sld [smem:[#allocation2 + $0x35]]
    %v668 = vstv %s667
    %v669 = vmul.f32 %v657, %v668
    %v670 = vadd.f32 %v632, %v669
    %s671 = sld [smem:[#allocation2 + $0x5a]]
    %v672 = vstv %s671
    %v673 = vmul.f32 %v657, %v672
    %v674 = vadd.f32 %v636, %v673
    %s675 = sld [smem:[#allocation2 + $0x7e]]
    %v676 = vstv %s675
    %v677 = vmul.f32 %v657, %v676
    %v678 = vadd.f32 %v640, %v677
    %s679 = sld [smem:[#allocation2 + $0xa2]]
    %v680 = vstv %s679
    %v681 = vmul.f32 %v657, %v680
    %v682 = vadd.f32 %v644, %v681
    %v683 = vmul.f32 %v662, %v668
    %v684 = vadd.f32 %v646, %v683
    %v685 = vmul.f32 %v662, %v672
    %v686 = vadd.f32 %v648, %v685
    %v687 = vmul.f32 %v662, %v676
    %v688 = vadd.f32 %v650, %v687
    %v689 = vmul.f32 %v662, %v680
    %v690 = vadd.f32 %v652, %v689
    %691 = vrot.lane.b32.xlu0 %v445, 109
    %v692 = vpop.permute.xlu0 %691
    %693 = vrot.lane.b32.xlu0 %v449, 109
    %v694 = vpop.permute.xlu0 %693
    %v695 = vsel %vm335, %v692, %v694
    %696 = vrot.lane.b32.xlu0 %v461, 109
    %v697 = vpop.permute.xlu0 %696
    %698 = vrot.lane.b32.xlu0 %v465, 109
    %v699 = vpop.permute.xlu0 %698
    %v700 = vsel %vm335, %v697, %v699
    %s701 = sld [smem:[#allocation2 + $0x10]]
    %v702 = vstv %s701
    %v703 = vmul.f32 %v695, %v702
    %v704 = vadd.f32 %v666, %v703
    %s705 = sld [smem:[#allocation2 + $0x36]]
    %v706 = vstv %s705
    %v707 = vmul.f32 %v695, %v706
    %v708 = vadd.f32 %v670, %v707
    %s709 = sld [smem:[#allocation2 + $0x5b]]
    %v710 = vstv %s709
    %v711 = vmul.f32 %v695, %v710
    %v712 = vadd.f32 %v674, %v711
    %s713 = sld [smem:[#allocation2 + $0x7f]]
    %v714 = vstv %s713
    %v715 = vmul.f32 %v695, %v714
    %v716 = vadd.f32 %v678, %v715
    %s717 = sld [smem:[#allocation2 + $0xa3]]
    %v718 = vstv %s717
    %v719 = vmul.f32 %v695, %v718
    %v720 = vadd.f32 %v682, %v719
    %v721 = vmul.f32 %v700, %v706
    %v722 = vadd.f32 %v684, %v721
    %v723 = vmul.f32 %v700, %v710
    %v724 = vadd.f32 %v686, %v723
    %v725 = vmul.f32 %v700, %v714
    %v726 = vadd.f32 %v688, %v725
    %v727 = vmul.f32 %v700, %v718
    %v728 = vadd.f32 %v690, %v727
    %729 = vrot.lane.b32.xlu0 %v445, 108
    %v730 = vpop.permute.xlu0 %729
    %731 = vrot.lane.b32.xlu0 %v449, 108
    %v732 = vpop.permute.xlu0 %731
    %v733 = vsel %vm374, %v730, %v732
    %734 = vrot.lane.b32.xlu0 %v461, 108
    %v735 = vpop.permute.xlu0 %734
    %736 = vrot.lane.b32.xlu0 %v465, 108
    %v737 = vpop.permute.xlu0 %736
    %v738 = vsel %vm374, %v735, %v737
    %s739 = sld [smem:[#allocation2 + $0x11]]
    %v740 = vstv %s739
    %v741 = vmul.f32 %v733, %v740
    %v742 = vadd.f32 %v704, %v741
    %s743 = sld [smem:[#allocation2 + $0x37]]
    %v744 = vstv %s743
    %v745 = vmul.f32 %v733, %v744
    %v746 = vadd.f32 %v708, %v745
    %s747 = sld [smem:[#allocation2 + $0x5c]]
    %v748 = vstv %s747
    %v749 = vmul.f32 %v733, %v748
    %v750 = vadd.f32 %v712, %v749
    %s751 = sld [smem:[#allocation2 + $0x80]]
    %v752 = vstv %s751
    %v753 = vmul.f32 %v733, %v752
    %v754 = vadd.f32 %v716, %v753
    %s755 = sld [smem:[#allocation2 + $0xa4]]
    %v756 = vstv %s755
    %v757 = vmul.f32 %v733, %v756
    %v758 = vadd.f32 %v720, %v757
    %v759 = vmul.f32 %v738, %v744
    %v760 = vadd.f32 %v722, %v759
    %v761 = vmul.f32 %v738, %v748
    %v762 = vadd.f32 %v724, %v761
    %v763 = vmul.f32 %v738, %v752
    %v764 = vadd.f32 %v726, %v763
    %v765 = vmul.f32 %v738, %v756
    %v766 = vadd.f32 %v728, %v765
    %s767 = scalar_lea.vmem %s0, 2
    %v768 = vld [vmem:[%s767] ss:$8 sm:$0x3]
    %s769 = scalar_lea.vmem %s0, 6
    %v770 = vld [vmem:[%s769] ss:$8 sm:$0x3]
    %s771 = sld [smem:[#allocation2 + $0x12]]
    %v772 = vstv %s771
    %v773 = vmul.f32 %v768, %v772
    %v774 = vadd.f32 %v29, %v773
    %s775 = sld [smem:[#allocation2 + $0x38]]
    %v776 = vstv %s775
    %v777 = vmul.f32 %v768, %v776
    %v778 = vadd.f32 %v746, %v777
    %s779 = sld [smem:[#allocation2 + $0x5d]]
    %v780 = vstv %s779
    %v781 = vmul.f32 %v768, %v780
    %v782 = vadd.f32 %v750, %v781
    %s783 = sld [smem:[#allocation2 + $0x81]]
    %v784 = vstv %s783
    %v785 = vmul.f32 %v768, %v784
    %v786 = vadd.f32 %v754, %v785
    %s787 = sld [smem:[#allocation2 + $0xa5]]
    %v788 = vstv %s787
    %v789 = vmul.f32 %v768, %v788
    %v790 = vadd.f32 %v758, %v789
    %v791 = vmul.f32 %v770, %v776
    %v792 = vadd.f32 %v760, %v791
    %v793 = vmul.f32 %v770, %v780
    %v794 = vadd.f32 %v762, %v793
    %v795 = vmul.f32 %v770, %v784
    %v796 = vadd.f32 %v764, %v795
    %v797 = vmul.f32 %v770, %v788
    %v798 = vadd.f32 %v766, %v797
    %v800 = vlaneseq
    %v801 = vshrl.u32 %v800, 7
    %v802 = vsub.s32 0, %v801
    %v803 = vrot.slane %v768, %v802
    %v804 = vlaneseq
    %v805 = vshrl.u32 %v804, 7
    %v806 = vsub.s32 1, %v805
    %v807 = vrot.slane %v768, %v806
    %810 = vrot.lane.b32.xlu0 %v803, 127
    %v811 = vpop.permute.xlu0 %810
    %812 = vrot.lane.b32.xlu0 %v807, 127
    %v813 = vpop.permute.xlu0 %812
    %v814 = vsel %vm90, %v811, %v813
    %v816 = vlaneseq
    %v817 = vshrl.u32 %v816, 7
    %v818 = vsub.s32 0, %v817
    %v819 = vrot.slane %v770, %v818
    %v820 = vlaneseq
    %v821 = vshrl.u32 %v820, 7
    %v822 = vsub.s32 1, %v821
    %v823 = vrot.slane %v770, %v822
    %826 = vrot.lane.b32.xlu0 %v819, 127
    %v827 = vpop.permute.xlu0 %826
    %828 = vrot.lane.b32.xlu0 %v823, 127
    %v829 = vpop.permute.xlu0 %828
    %v830 = vsel %vm90, %v827, %v829
    %s831 = sld [smem:[#allocation2 + $0x13]]
    %v832 = vstv %s831
    %v833 = vmul.f32 %v814, %v832
    %v834 = vadd.f32 %v774, %v833
    %s835 = sld [smem:[#allocation2 + $0x39]]
    %v836 = vstv %s835
    %v837 = vmul.f32 %v814, %v836
    %v838 = vadd.f32 %v778, %v837
    %s839 = sld [smem:[#allocation2 + $0x5e]]
    %v840 = vstv %s839
    %v841 = vmul.f32 %v814, %v840
    %v842 = vadd.f32 %v782, %v841
    %s843 = sld [smem:[#allocation2 + $0x82]]
    %v844 = vstv %s843
    %v845 = vmul.f32 %v814, %v844
    %v846 = vadd.f32 %v786, %v845
    %s847 = sld [smem:[#allocation2 + $0xa6]]
    %v848 = vstv %s847
    %v849 = vmul.f32 %v814, %v848
    %v850 = vadd.f32 %v790, %v849
    %v851 = vmul.f32 %v830, %v836
    %v852 = vadd.f32 %v792, %v851
    %v853 = vmul.f32 %v830, %v840
    %v854 = vadd.f32 %v794, %v853
    %v855 = vmul.f32 %v830, %v844
    %v856 = vadd.f32 %v796, %v855
    %v857 = vmul.f32 %v830, %v848
    %v858 = vadd.f32 %v798, %v857
    %859 = vrot.lane.b32.xlu0 %v803, 126
    %v860 = vpop.permute.xlu0 %859
    %861 = vrot.lane.b32.xlu0 %v807, 126
    %v862 = vpop.permute.xlu0 %861
    %v863 = vsel %vm140, %v860, %v862
    %864 = vrot.lane.b32.xlu0 %v819, 126
    %v865 = vpop.permute.xlu0 %864
    %866 = vrot.lane.b32.xlu0 %v823, 126
    %v867 = vpop.permute.xlu0 %866
    %v868 = vsel %vm140, %v865, %v867
    %s869 = sld [smem:[#allocation2 + $0x14]]
    %v870 = vstv %s869
    %v871 = vmul.f32 %v863, %v870
    %v872 = vadd.f32 %v834, %v871
    %s873 = sld [smem:[#allocation2 + $0x3a]]
    %v874 = vstv %s873
    %v875 = vmul.f32 %v863, %v874
    %v876 = vadd.f32 %v838, %v875
    %s877 = sld [smem:[#allocation2 + $0x5f]]
    %v878 = vstv %s877
    %v879 = vmul.f32 %v863, %v878
    %v880 = vadd.f32 %v842, %v879
    %s881 = sld [smem:[#allocation2 + $0x83]]
    %v882 = vstv %s881
    %v883 = vmul.f32 %v863, %v882
    %v884 = vadd.f32 %v846, %v883
    %s885 = sld [smem:[#allocation2 + $0xa7]]
    %v886 = vstv %s885
    %v887 = vmul.f32 %v863, %v886
    %v888 = vadd.f32 %v850, %v887
    %v889 = vmul.f32 %v868, %v874
    %v890 = vadd.f32 %v852, %v889
    %v891 = vmul.f32 %v868, %v878
    %v892 = vadd.f32 %v854, %v891
    %v893 = vmul.f32 %v868, %v882
    %v894 = vadd.f32 %v856, %v893
    %v895 = vmul.f32 %v868, %v886
    %v896 = vadd.f32 %v858, %v895
    %897 = vrot.lane.b32.xlu0 %v803, 119
    %v898 = vpop.permute.xlu0 %897
    %899 = vrot.lane.b32.xlu0 %v807, 119
    %v900 = vpop.permute.xlu0 %899
    %v901 = vsel %vm179, %v898, %v900
    %902 = vrot.lane.b32.xlu0 %v819, 119
    %v903 = vpop.permute.xlu0 %902
    %904 = vrot.lane.b32.xlu0 %v823, 119
    %v905 = vpop.permute.xlu0 %904
    %v906 = vsel %vm179, %v903, %v905
    %s907 = sld [smem:[#allocation2 + $0x15]]
    %v908 = vstv %s907
    %v909 = vmul.f32 %v901, %v908
    %v910 = vadd.f32 %v872, %v909
    %s911 = sld [smem:[#allocation2 + $0x3b]]
    %v912 = vstv %s911
    %v913 = vmul.f32 %v901, %v912
    %v914 = vadd.f32 %v876, %v913
    %s915 = sld [smem:[#allocation2 + $0x60]]
    %v916 = vstv %s915
    %v917 = vmul.f32 %v901, %v916
    %v918 = vadd.f32 %v880, %v917
    %s919 = sld [smem:[#allocation2 + $0x84]]
    %v920 = vstv %s919
    %v921 = vmul.f32 %v901, %v920
    %v922 = vadd.f32 %v884, %v921
    %s923 = sld [smem:[#allocation2 + $0xa8]]
    %v924 = vstv %s923
    %v925 = vmul.f32 %v901, %v924
    %v926 = vadd.f32 %v888, %v925
    %v927 = vmul.f32 %v906, %v912
    %v928 = vadd.f32 %v890, %v927
    %v929 = vmul.f32 %v906, %v916
    %v930 = vadd.f32 %v892, %v929
    %v931 = vmul.f32 %v906, %v920
    %v932 = vadd.f32 %v894, %v931
    %v933 = vmul.f32 %v906, %v924
    %v934 = vadd.f32 %v896, %v933
    %935 = vrot.lane.b32.xlu0 %v803, 118
    %v936 = vpop.permute.xlu0 %935
    %937 = vrot.lane.b32.xlu0 %v807, 118
    %v938 = vpop.permute.xlu0 %937
    %v939 = vsel %vm218, %v936, %v938
    %940 = vrot.lane.b32.xlu0 %v819, 118
    %v941 = vpop.permute.xlu0 %940
    %942 = vrot.lane.b32.xlu0 %v823, 118
    %v943 = vpop.permute.xlu0 %942
    %v944 = vsel %vm218, %v941, %v943
    %s945 = sld [smem:[#allocation2 + $0x16]]
    %v946 = vstv %s945
    %v947 = vmul.f32 %v939, %v946
    %v948 = vadd.f32 %v910, %v947
    %s949 = sld [smem:[#allocation2 + $0x3c]]
    %v950 = vstv %s949
    %v951 = vmul.f32 %v939, %v950
    %v952 = vadd.f32 %v914, %v951
    %s953 = sld [smem:[#allocation2 + $0x61]]
    %v954 = vstv %s953
    %v955 = vmul.f32 %v939, %v954
    %v956 = vadd.f32 %v918, %v955
    %s957 = sld [smem:[#allocation2 + $0x85]]
    %v958 = vstv %s957
    %v959 = vmul.f32 %v939, %v958
    %v960 = vadd.f32 %v922, %v959
    %s961 = sld [smem:[#allocation2 + $0xa9]]
    %v962 = vstv %s961
    %v963 = vmul.f32 %v939, %v962
    %v964 = vadd.f32 %v926, %v963
    %v965 = vmul.f32 %v944, %v950
    %v966 = vadd.f32 %v928, %v965
    %v967 = vmul.f32 %v944, %v954
    %v968 = vadd.f32 %v930, %v967
    %v969 = vmul.f32 %v944, %v958
    %v970 = vadd.f32 %v932, %v969
    %v971 = vmul.f32 %v944, %v962
    %v972 = vadd.f32 %v934, %v971
    %973 = vrot.lane.b32.xlu0 %v803, 117
    %v974 = vpop.permute.xlu0 %973
    %975 = vrot.lane.b32.xlu0 %v807, 117
    %v976 = vpop.permute.xlu0 %975
    %v977 = vsel %vm257, %v974, %v976
    %978 = vrot.lane.b32.xlu0 %v819, 117
    %v979 = vpop.permute.xlu0 %978
    %980 = vrot.lane.b32.xlu0 %v823, 117
    %v981 = vpop.permute.xlu0 %980
    %v982 = vsel %vm257, %v979, %v981
    %s983 = sld [smem:[#allocation2 + $0x17]]
    %v984 = vstv %s983
    %v985 = vmul.f32 %v977, %v984
    %v986 = vadd.f32 %v948, %v985
    %s987 = sld [smem:[#allocation2 + $0x3d]]
    %v988 = vstv %s987
    %v989 = vmul.f32 %v977, %v988
    %v990 = vadd.f32 %v952, %v989
    %s991 = sld [smem:[#allocation2 + $0x62]]
    %v992 = vstv %s991
    %v993 = vmul.f32 %v977, %v992
    %v994 = vadd.f32 %v956, %v993
    %s995 = sld [smem:[#allocation2 + $0x86]]
    %v996 = vstv %s995
    %v997 = vmul.f32 %v977, %v996
    %v998 = vadd.f32 %v960, %v997
    %s999 = sld [smem:[#allocation2 + $0xaa]]
    %v1000 = vstv %s999
    %v1001 = vmul.f32 %v977, %v1000
    %v1002 = vadd.f32 %v964, %v1001
    %v1003 = vmul.f32 %v982, %v988
    %v1004 = vadd.f32 %v966, %v1003
    %v1005 = vmul.f32 %v982, %v992
    %v1006 = vadd.f32 %v968, %v1005
    %v1007 = vmul.f32 %v982, %v996
    %v1008 = vadd.f32 %v970, %v1007
    %v1009 = vmul.f32 %v982, %v1000
    %v1010 = vadd.f32 %v972, %v1009
    %1011 = vrot.lane.b32.xlu0 %v803, 110
    %v1012 = vpop.permute.xlu0 %1011
    %1013 = vrot.lane.b32.xlu0 %v807, 110
    %v1014 = vpop.permute.xlu0 %1013
    %v1015 = vsel %vm296, %v1012, %v1014
    %1016 = vrot.lane.b32.xlu0 %v819, 110
    %v1017 = vpop.permute.xlu0 %1016
    %1018 = vrot.lane.b32.xlu0 %v823, 110
    %v1019 = vpop.permute.xlu0 %1018
    %v1020 = vsel %vm296, %v1017, %v1019
    %s1021 = sld [smem:[#allocation2 + $0x18]]
    %v1022 = vstv %s1021
    %v1023 = vmul.f32 %v1015, %v1022
    %v1024 = vadd.f32 %v986, %v1023
    %s1025 = sld [smem:[#allocation2 + $0x3e]]
    %v1026 = vstv %s1025
    %v1027 = vmul.f32 %v1015, %v1026
    %v1028 = vadd.f32 %v990, %v1027
    %s1029 = sld [smem:[#allocation2 + $0x63]]
    %v1030 = vstv %s1029
    %v1031 = vmul.f32 %v1015, %v1030
    %v1032 = vadd.f32 %v994, %v1031
    %s1033 = sld [smem:[#allocation2 + $0x87]]
    %v1034 = vstv %s1033
    %v1035 = vmul.f32 %v1015, %v1034
    %v1036 = vadd.f32 %v998, %v1035
    %s1037 = sld [smem:[#allocation2 + $0xab]]
    %v1038 = vstv %s1037
    %v1039 = vmul.f32 %v1015, %v1038
    %v1040 = vadd.f32 %v1002, %v1039
    %v1041 = vmul.f32 %v1020, %v1026
    %v1042 = vadd.f32 %v1004, %v1041
    %v1043 = vmul.f32 %v1020, %v1030
    %v1044 = vadd.f32 %v1006, %v1043
    %v1045 = vmul.f32 %v1020, %v1034
    %v1046 = vadd.f32 %v1008, %v1045
    %v1047 = vmul.f32 %v1020, %v1038
    %v1048 = vadd.f32 %v1010, %v1047
    %1049 = vrot.lane.b32.xlu0 %v803, 109
    %v1050 = vpop.permute.xlu0 %1049
    %1051 = vrot.lane.b32.xlu0 %v807, 109
    %v1052 = vpop.permute.xlu0 %1051
    %v1053 = vsel %vm335, %v1050, %v1052
    %1054 = vrot.lane.b32.xlu0 %v819, 109
    %v1055 = vpop.permute.xlu0 %1054
    %1056 = vrot.lane.b32.xlu0 %v823, 109
    %v1057 = vpop.permute.xlu0 %1056
    %v1058 = vsel %vm335, %v1055, %v1057
    %s1059 = sld [smem:[#allocation2 + $0x19]]
    %v1060 = vstv %s1059
    %v1061 = vmul.f32 %v1053, %v1060
    %v1062 = vadd.f32 %v1024, %v1061
    %s1063 = sld [smem:[#allocation2 + $0x3f]]
    %v1064 = vstv %s1063
    %v1065 = vmul.f32 %v1053, %v1064
    %v1066 = vadd.f32 %v1028, %v1065
    %s1067 = sld [smem:[#allocation2 + $0x64]]
    %v1068 = vstv %s1067
    %v1069 = vmul.f32 %v1053, %v1068
    %v1070 = vadd.f32 %v1032, %v1069
    %s1071 = sld [smem:[#allocation2 + $0x88]]
    %v1072 = vstv %s1071
    %v1073 = vmul.f32 %v1053, %v1072
    %v1074 = vadd.f32 %v1036, %v1073
    %s1075 = sld [smem:[#allocation2 + $0xac]]
    %v1076 = vstv %s1075
    %v1077 = vmul.f32 %v1053, %v1076
    %v1078 = vadd.f32 %v1040, %v1077
    %v1079 = vmul.f32 %v1058, %v1064
    %v1080 = vadd.f32 %v1042, %v1079
    %v1081 = vmul.f32 %v1058, %v1068
    %v1082 = vadd.f32 %v1044, %v1081
    %v1083 = vmul.f32 %v1058, %v1072
    %v1084 = vadd.f32 %v1046, %v1083
    %v1085 = vmul.f32 %v1058, %v1076
    %v1086 = vadd.f32 %v1048, %v1085
    %1087 = vrot.lane.b32.xlu0 %v803, 108
    %v1088 = vpop.permute.xlu0 %1087
    %1089 = vrot.lane.b32.xlu0 %v807, 108
    %v1090 = vpop.permute.xlu0 %1089
    %v1091 = vsel %vm374, %v1088, %v1090
    %1092 = vrot.lane.b32.xlu0 %v819, 108
    %v1093 = vpop.permute.xlu0 %1092
    %1094 = vrot.lane.b32.xlu0 %v823, 108
    %v1095 = vpop.permute.xlu0 %1094
    %v1096 = vsel %vm374, %v1093, %v1095
    %s1097 = sld [smem:[#allocation2 + $0x1a]]
    %v1098 = vstv %s1097
    %v1099 = vmul.f32 %v1091, %v1098
    %v1100 = vadd.f32 %v1062, %v1099
    %s1101 = sld [smem:[#allocation2 + $0x40]]
    %v1102 = vstv %s1101
    %v1103 = vmul.f32 %v1091, %v1102
    %v1104 = vadd.f32 %v1066, %v1103
    %s1105 = sld [smem:[#allocation2 + $0x65]]
    %v1106 = vstv %s1105
    %v1107 = vmul.f32 %v1091, %v1106
    %v1108 = vadd.f32 %v1070, %v1107
    %s1109 = sld [smem:[#allocation2 + $0x89]]
    %v1110 = vstv %s1109
    %v1111 = vmul.f32 %v1091, %v1110
    %v1112 = vadd.f32 %v1074, %v1111
    %s1113 = sld [smem:[#allocation2 + $0xad]]
    %v1114 = vstv %s1113
    %v1115 = vmul.f32 %v1091, %v1114
    %v1116 = vadd.f32 %v1078, %v1115
    %v1117 = vmul.f32 %v1096, %v1102
    %v1118 = vadd.f32 %v1080, %v1117
    %v1119 = vmul.f32 %v1096, %v1106
    %v1120 = vadd.f32 %v1082, %v1119
    %v1121 = vmul.f32 %v1096, %v1110
    %v1122 = vadd.f32 %v1084, %v1121
    %v1123 = vmul.f32 %v1096, %v1114
    %v1124 = vadd.f32 %v1086, %v1123
    %s1125 = scalar_lea.vmem %s0, 3
    %v1126 = vld [vmem:[%s1125] ss:$8 sm:$0x3]
    %s1127 = scalar_lea.vmem %s0, 7
    %v1128 = vld [vmem:[%s1127] ss:$8 sm:$0x3]
    %s1129 = sld [smem:[#allocation2 + $0x1b]]
    %v1130 = vstv %s1129
    %v1131 = vmul.f32 %v1126, %v1130
    %v1132 = vadd.f32 %v1100, %v1131
    %s1133 = sld [smem:[#allocation2 + $0x41]]
    %v1134 = vstv %s1133
    %v1135 = vmul.f32 %v1126, %v1134
    %v1136 = vadd.f32 %v1104, %v1135
    %s1137 = sld [smem:[#allocation2 + $0x66]]
    %v1138 = vstv %s1137
    %v1139 = vmul.f32 %v1126, %v1138
    %v1140 = vadd.f32 %v1108, %v1139
    %s1141 = sld [smem:[#allocation2 + $0x8a]]
    %v1142 = vstv %s1141
    %v1143 = vmul.f32 %v1126, %v1142
    %v1144 = vadd.f32 %v1112, %v1143
    %s1145 = sld [smem:[#allocation2 + $0xae]]
    %v1146 = vstv %s1145
    %v1147 = vmul.f32 %v1126, %v1146
    %v1148 = vadd.f32 %v1116, %v1147
    %v1149 = vmul.f32 %v1128, %v1134
    %v1150 = vadd.f32 %v1118, %v1149
    %v1151 = vmul.f32 %v1128, %v1138
    %v1152 = vadd.f32 %v1120, %v1151
    %v1153 = vmul.f32 %v1128, %v1142
    %v1154 = vadd.f32 %v1122, %v1153
    %v1155 = vmul.f32 %v1128, %v1146
    %v1156 = vadd.f32 %v1124, %v1155
    %v1158 = vlaneseq
    %v1159 = vshrl.u32 %v1158, 7
    %v1160 = vsub.s32 0, %v1159
    %v1161 = vrot.slane %v1126, %v1160
    %v1162 = vlaneseq
    %v1163 = vshrl.u32 %v1162, 7
    %v1164 = vsub.s32 1, %v1163
    %v1165 = vrot.slane %v1126, %v1164
    %1168 = vrot.lane.b32.xlu0 %v1161, 127
    %v1169 = vpop.permute.xlu0 %1168
    %1170 = vrot.lane.b32.xlu0 %v1165, 127
    %v1171 = vpop.permute.xlu0 %1170
    %v1172 = vsel %vm90, %v1169, %v1171
    %v1174 = vlaneseq
    %v1175 = vshrl.u32 %v1174, 7
    %v1176 = vsub.s32 0, %v1175
    %v1177 = vrot.slane %v1128, %v1176
    %v1178 = vlaneseq
    %v1179 = vshrl.u32 %v1178, 7
    %v1180 = vsub.s32 1, %v1179
    %v1181 = vrot.slane %v1128, %v1180
    %1184 = vrot.lane.b32.xlu0 %v1177, 127
    %v1185 = vpop.permute.xlu0 %1184
    %1186 = vrot.lane.b32.xlu0 %v1181, 127
    %v1187 = vpop.permute.xlu0 %1186
    %v1188 = vsel %vm90, %v1185, %v1187
    %s1189 = sld [smem:[#allocation2 + $0x1c]]
    %v1190 = vstv %s1189
    %v1191 = vmul.f32 %v1172, %v1190
    %v1192 = vadd.f32 %v1132, %v1191
    %s1193 = sld [smem:[#allocation2 + $0x42]]
    %v1194 = vstv %s1193
    %v1195 = vmul.f32 %v1172, %v1194
    %v1196 = vadd.f32 %v1136, %v1195
    %s1197 = sld [smem:[#allocation2 + $0x67]]
    %v1198 = vstv %s1197
    %v1199 = vmul.f32 %v1172, %v1198
    %v1200 = vadd.f32 %v1140, %v1199
    %s1201 = sld [smem:[#allocation2 + $0x8b]]
    %v1202 = vstv %s1201
    %v1203 = vmul.f32 %v1172, %v1202
    %v1204 = vadd.f32 %v1144, %v1203
    %s1205 = sld [smem:[#allocation2 + $0xaf]]
    %v1206 = vstv %s1205
    %v1207 = vmul.f32 %v1172, %v1206
    %v1208 = vadd.f32 %v1148, %v1207
    %v1209 = vmul.f32 %v1188, %v1194
    %v1210 = vadd.f32 %v1150, %v1209
    %v1211 = vmul.f32 %v1188, %v1198
    %v1212 = vadd.f32 %v1152, %v1211
    %v1213 = vmul.f32 %v1188, %v1202
    %v1214 = vadd.f32 %v1154, %v1213
    %v1215 = vmul.f32 %v1188, %v1206
    %v1216 = vadd.f32 %v1156, %v1215
    %1217 = vrot.lane.b32.xlu0 %v1161, 126
    %v1218 = vpop.permute.xlu0 %1217
    %1219 = vrot.lane.b32.xlu0 %v1165, 126
    %v1220 = vpop.permute.xlu0 %1219
    %v1221 = vsel %vm140, %v1218, %v1220
    %1222 = vrot.lane.b32.xlu0 %v1177, 126
    %v1223 = vpop.permute.xlu0 %1222
    %1224 = vrot.lane.b32.xlu0 %v1181, 126
    %v1225 = vpop.permute.xlu0 %1224
    %v1226 = vsel %vm140, %v1223, %v1225
    %s1227 = sld [smem:[#allocation2 + $0x1d]]
    %v1228 = vstv %s1227
    %v1229 = vmul.f32 %v1221, %v1228
    %v1230 = vadd.f32 %v1192, %v1229
    %s1231 = sld [smem:[#allocation2 + $0x43]]
    %v1232 = vstv %s1231
    %v1233 = vmul.f32 %v1221, %v1232
    %v1234 = vadd.f32 %v1196, %v1233
    %s1235 = sld [smem:[#allocation2 + $0x68]]
    %v1236 = vstv %s1235
    %v1237 = vmul.f32 %v1221, %v1236
    %v1238 = vadd.f32 %v1200, %v1237
    %s1239 = sld [smem:[#allocation2 + $0x8c]]
    %v1240 = vstv %s1239
    %v1241 = vmul.f32 %v1221, %v1240
    %v1242 = vadd.f32 %v1204, %v1241
    %s1243 = sld [smem:[#allocation2 + $0xb0]]
    %v1244 = vstv %s1243
    %v1245 = vmul.f32 %v1221, %v1244
    %v1246 = vadd.f32 %v1208, %v1245
    %v1247 = vmul.f32 %v1226, %v1232
    %v1248 = vadd.f32 %v1210, %v1247
    %v1249 = vmul.f32 %v1226, %v1236
    %v1250 = vadd.f32 %v1212, %v1249
    %v1251 = vmul.f32 %v1226, %v1240
    %v1252 = vadd.f32 %v1214, %v1251
    %v1253 = vmul.f32 %v1226, %v1244
    %v1254 = vadd.f32 %v1216, %v1253
    %1255 = vrot.lane.b32.xlu0 %v1161, 119
    %v1256 = vpop.permute.xlu0 %1255
    %1257 = vrot.lane.b32.xlu0 %v1165, 119
    %v1258 = vpop.permute.xlu0 %1257
    %v1259 = vsel %vm179, %v1256, %v1258
    %1260 = vrot.lane.b32.xlu0 %v1177, 119
    %v1261 = vpop.permute.xlu0 %1260
    %1262 = vrot.lane.b32.xlu0 %v1181, 119
    %v1263 = vpop.permute.xlu0 %1262
    %v1264 = vsel %vm179, %v1261, %v1263
    %s1265 = sld [smem:[#allocation2 + $0x1e]]
    %v1266 = vstv %s1265
    %v1267 = vmul.f32 %v1259, %v1266
    %v1268 = vadd.f32 %v1230, %v1267
    %s1269 = sld [smem:[#allocation2 + $0x44]]
    %v1270 = vstv %s1269
    %v1271 = vmul.f32 %v1259, %v1270
    %v1272 = vadd.f32 %v1234, %v1271
    %s1273 = sld [smem:[#allocation2 + $0x69]]
    %v1274 = vstv %s1273
    %v1275 = vmul.f32 %v1259, %v1274
    %v1276 = vadd.f32 %v1238, %v1275
    %s1277 = sld [smem:[#allocation2 + $0x8d]]
    %v1278 = vstv %s1277
    %v1279 = vmul.f32 %v1259, %v1278
    %v1280 = vadd.f32 %v1242, %v1279
    %s1281 = sld [smem:[#allocation2 + $0xb1]]
    %v1282 = vstv %s1281
    %v1283 = vmul.f32 %v1259, %v1282
    %v1284 = vadd.f32 %v1246, %v1283
    %v1285 = vmul.f32 %v1264, %v1270
    %v1286 = vadd.f32 %v1248, %v1285
    %v1287 = vmul.f32 %v1264, %v1274
    %v1288 = vadd.f32 %v1250, %v1287
    %v1289 = vmul.f32 %v1264, %v1278
    %v1290 = vadd.f32 %v1252, %v1289
    %v1291 = vmul.f32 %v1264, %v1282
    %v1292 = vadd.f32 %v1254, %v1291
    %1293 = vrot.lane.b32.xlu0 %v1161, 118
    %v1294 = vpop.permute.xlu0 %1293
    %1295 = vrot.lane.b32.xlu0 %v1165, 118
    %v1296 = vpop.permute.xlu0 %1295
    %v1297 = vsel %vm218, %v1294, %v1296
    %1298 = vrot.lane.b32.xlu0 %v1177, 118
    %v1299 = vpop.permute.xlu0 %1298
    %1300 = vrot.lane.b32.xlu0 %v1181, 118
    %v1301 = vpop.permute.xlu0 %1300
    %v1302 = vsel %vm218, %v1299, %v1301
    %s1303 = sld [smem:[#allocation2 + $0x1f]]
    %v1304 = vstv %s1303
    %v1305 = vmul.f32 %v1297, %v1304
    %v1306 = vadd.f32 %v1268, %v1305
    %s1307 = sld [smem:[#allocation2 + $0x45]]
    %v1308 = vstv %s1307
    %v1309 = vmul.f32 %v1297, %v1308
    %v1310 = vadd.f32 %v1272, %v1309
    %s1311 = sld [smem:[#allocation2 + $0x6a]]
    %v1312 = vstv %s1311
    %v1313 = vmul.f32 %v1297, %v1312
    %v1314 = vadd.f32 %v1276, %v1313
    %s1315 = sld [smem:[#allocation2 + $0x8e]]
    %v1316 = vstv %s1315
    %v1317 = vmul.f32 %v1297, %v1316
    %v1318 = vadd.f32 %v1280, %v1317
    %s1319 = sld [smem:[#allocation2 + $0xb2]]
    %v1320 = vstv %s1319
    %v1321 = vmul.f32 %v1297, %v1320
    %v1322 = vadd.f32 %v1284, %v1321
    %v1323 = vmul.f32 %v1302, %v1308
    %v1324 = vadd.f32 %v1286, %v1323
    %v1325 = vmul.f32 %v1302, %v1312
    %v1326 = vadd.f32 %v1288, %v1325
    %v1327 = vmul.f32 %v1302, %v1316
    %v1328 = vadd.f32 %v1290, %v1327
    %v1329 = vmul.f32 %v1302, %v1320
    %v1330 = vadd.f32 %v1292, %v1329
    %1331 = vrot.lane.b32.xlu0 %v1161, 117
    %v1332 = vpop.permute.xlu0 %1331
    %1333 = vrot.lane.b32.xlu0 %v1165, 117
    %v1334 = vpop.permute.xlu0 %1333
    %v1335 = vsel %vm257, %v1332, %v1334
    %1336 = vrot.lane.b32.xlu0 %v1177, 117
    %v1337 = vpop.permute.xlu0 %1336
    %1338 = vrot.lane.b32.xlu0 %v1181, 117
    %v1339 = vpop.permute.xlu0 %1338
    %v1340 = vsel %vm257, %v1337, %v1339
    %s1341 = sld [smem:[#allocation2 + $0x20]]
    %v1342 = vstv %s1341
    %v1343 = vmul.f32 %v1335, %v1342
    %v1344 = vadd.f32 %v1306, %v1343
    %s1345 = sld [smem:[#allocation2 + $0x46]]
    %v1346 = vstv %s1345
    %v1347 = vmul.f32 %v1335, %v1346
    %v1348 = vadd.f32 %v1310, %v1347
    %s1349 = sld [smem:[#allocation2 + $0x6b]]
    %v1350 = vstv %s1349
    %v1351 = vmul.f32 %v1335, %v1350
    %v1352 = vadd.f32 %v1314, %v1351
    %s1353 = sld [smem:[#allocation2 + $0x8f]]
    %v1354 = vstv %s1353
    %v1355 = vmul.f32 %v1335, %v1354
    %v1356 = vadd.f32 %v1318, %v1355
    %s1357 = sld [smem:[#allocation2 + $0xb3]]
    %v1358 = vstv %s1357
    %v1359 = vmul.f32 %v1335, %v1358
    %v1360 = vadd.f32 %v1322, %v1359
    %v1361 = vmul.f32 %v1340, %v1346
    %v1362 = vadd.f32 %v1324, %v1361
    %v1363 = vmul.f32 %v1340, %v1350
    %v1364 = vadd.f32 %v1326, %v1363
    %v1365 = vmul.f32 %v1340, %v1354
    %v1366 = vadd.f32 %v1328, %v1365
    %v1367 = vmul.f32 %v1340, %v1358
    %v1368 = vadd.f32 %v1330, %v1367
    %1369 = vrot.lane.b32.xlu0 %v1161, 110
    %v1370 = vpop.permute.xlu0 %1369
    %1371 = vrot.lane.b32.xlu0 %v1165, 110
    %v1372 = vpop.permute.xlu0 %1371
    %v1373 = vsel %vm296, %v1370, %v1372
    %1374 = vrot.lane.b32.xlu0 %v1177, 110
    %v1375 = vpop.permute.xlu0 %1374
    %1376 = vrot.lane.b32.xlu0 %v1181, 110
    %v1377 = vpop.permute.xlu0 %1376
    %v1378 = vsel %vm296, %v1375, %v1377
    %s1379 = sld [smem:[#allocation2 + $0x21]]
    %v1380 = vstv %s1379
    %v1381 = vmul.f32 %v1373, %v1380
    %v1382 = vadd.f32 %v1344, %v1381
    %s1383 = sld [smem:[#allocation2 + $0x47]]
    %v1384 = vstv %s1383
    %v1385 = vmul.f32 %v1373, %v1384
    %v1386 = vadd.f32 %v1348, %v1385
    %s1387 = sld [smem:[#allocation2 + $0x6c]]
    %v1388 = vstv %s1387
    %v1389 = vmul.f32 %v1373, %v1388
    %v1390 = vadd.f32 %v1352, %v1389
    %s1391 = sld [smem:[#allocation2 + $0x90]]
    %v1392 = vstv %s1391
    %v1393 = vmul.f32 %v1373, %v1392
    %v1394 = vadd.f32 %v1356, %v1393
    %s1395 = sld [smem:[#allocation2 + $0xb4]]
    %v1396 = vstv %s1395
    %v1397 = vmul.f32 %v1373, %v1396
    %v1398 = vadd.f32 %v1360, %v1397
    %v1399 = vmul.f32 %v1378, %v1384
    %v1400 = vadd.f32 %v1362, %v1399
    %v1401 = vmul.f32 %v1378, %v1388
    %v1402 = vadd.f32 %v1364, %v1401
    %v1403 = vmul.f32 %v1378, %v1392
    %v1404 = vadd.f32 %v1366, %v1403
    %v1405 = vmul.f32 %v1378, %v1396
    %v1406 = vadd.f32 %v1368, %v1405
    %1407 = vrot.lane.b32.xlu0 %v1161, 109
    %v1408 = vpop.permute.xlu0 %1407
    %1409 = vrot.lane.b32.xlu0 %v1165, 109
    %v1410 = vpop.permute.xlu0 %1409
    %v1411 = vsel %vm335, %v1408, %v1410
    %1412 = vrot.lane.b32.xlu0 %v1177, 109
    %v1413 = vpop.permute.xlu0 %1412
    %1414 = vrot.lane.b32.xlu0 %v1181, 109
    %v1415 = vpop.permute.xlu0 %1414
    %v1416 = vsel %vm335, %v1413, %v1415
    %s1417 = sld [smem:[#allocation2 + $0x22]]
    %v1418 = vstv %s1417
    %v1419 = vmul.f32 %v1411, %v1418
    %v1420 = vadd.f32 %v1382, %v1419
    %s1421 = sld [smem:[#allocation2 + $0x48]]
    %v1422 = vstv %s1421
    %v1423 = vmul.f32 %v1411, %v1422
    %v1424 = vadd.f32 %v1386, %v1423
    %s1425 = sld [smem:[#allocation2 + $0x6d]]
    %v1426 = vstv %s1425
    %v1427 = vmul.f32 %v1411, %v1426
    %v1428 = vadd.f32 %v1390, %v1427
    %s1429 = sld [smem:[#allocation2 + $0x91]]
    %v1430 = vstv %s1429
    %v1431 = vmul.f32 %v1411, %v1430
    %v1432 = vadd.f32 %v1394, %v1431
    %s1433 = sld [smem:[#allocation2 + $0xb5]]
    %v1434 = vstv %s1433
    %v1435 = vmul.f32 %v1411, %v1434
    %v1436 = vadd.f32 %v1398, %v1435
    %v1437 = vmul.f32 %v1416, %v1422
    %v1438 = vadd.f32 %v1400, %v1437
    %v1439 = vmul.f32 %v1416, %v1426
    %v1440 = vadd.f32 %v1402, %v1439
    %v1441 = vmul.f32 %v1416, %v1430
    %v1442 = vadd.f32 %v1404, %v1441
    %v1443 = vmul.f32 %v1416, %v1434
    %v1444 = vadd.f32 %v1406, %v1443
    %1445 = vrot.lane.b32.xlu0 %v1161, 108
    %v1446 = vpop.permute.xlu0 %1445
    %1447 = vrot.lane.b32.xlu0 %v1165, 108
    %v1448 = vpop.permute.xlu0 %1447
    %v1449 = vsel %vm374, %v1446, %v1448
    %1450 = vrot.lane.b32.xlu0 %v1177, 108
    %v1451 = vpop.permute.xlu0 %1450
    %1452 = vrot.lane.b32.xlu0 %v1181, 108
    %v1453 = vpop.permute.xlu0 %1452
    %v1454 = vsel %vm374, %v1451, %v1453
    %s1455 = sld [smem:[#allocation2 + $0x23]]
    %v1456 = vstv %s1455
    %v1457 = vmul.f32 %v1449, %v1456
    %v1458 = vadd.f32 %v1420, %v1457
    %s1459 = sld [smem:[#allocation2 + $0x49]]
    %v1460 = vstv %s1459
    %v1461 = vmul.f32 %v1449, %v1460
    %v1462 = vadd.f32 %v1424, %v1461
    %s1463 = sld [smem:[#allocation2 + $0x6e]]
    %v1464 = vstv %s1463
    %v1465 = vmul.f32 %v1449, %v1464
    %v1466 = vadd.f32 %v1428, %v1465
    %s1467 = sld [smem:[#allocation2 + $0x92]]
    %v1468 = vstv %s1467
    %v1469 = vmul.f32 %v1449, %v1468
    %v1470 = vadd.f32 %v1432, %v1469
    %s1471 = sld [smem:[#allocation2 + $0xb6]]
    %v1472 = vstv %s1471
    %v1473 = vmul.f32 %v1449, %v1472
    %v1474 = vadd.f32 %v1436, %v1473
    %v1475 = vmul.f32 %v1454, %v1460
    %v1476 = vadd.f32 %v1438, %v1475
    %v1477 = vmul.f32 %v1454, %v1464
    %v1478 = vadd.f32 %v1440, %v1477
    %v1479 = vmul.f32 %v1454, %v1468
    %v1480 = vadd.f32 %v1442, %v1479
    %v1481 = vmul.f32 %v1454, %v1472
    %v1482 = vadd.f32 %v1444, %v1481
    %1483 = vst [vmem:[%s2] sm:$0x1] %v742
    %1484 = vst [vmem:[%s2 + $0x1] sm:$0x1] %v1458
    %1485 = vst [vmem:[%s2 + $0x2] sm:$0x1] %v1462
    %1486 = vst [vmem:[%s2 + $0x3] sm:$0x1] %v1476
    %1487 = vst [vmem:[%s2 + $0x4] sm:$0x1] %v1466
    %1488 = vst [vmem:[%s2 + $0x5] sm:$0x1] %v1470
    %1489 = vst [vmem:[%s2 + $0x6] sm:$0x1] %v1474
    %1490 = vst [vmem:[%s2 + $0x7] sm:$0x1] %v1478
    %1491 = vst [vmem:[%s2 + $0x8] sm:$0x1] %v1480
    %1492 = vst [vmem:[%s2 + $0x9] sm:$0x1] %v1482
    // Predicated region
    $region14: #{model_forward.1} parent=1 // pred_check
      _
    $region15: #{model_forward.1} parent=1 // pred_check_branch
      %1494 = sbr.rel (0) target = $region17
    $region16: #{model_forward.1} parent=1 // pred_region
      _
    $region17: #{model_forward.1} parent=1 // pred_fallthru
      _
    // Predicated region
    $region18: #{model_forward.1} parent=1 // pred_check
      _
    $region19: #{model_forward.1} parent=1 // pred_check_branch
      %1496 = sbr.rel (0) target = $region21
    $region20: #{model_forward.1} parent=1 // pred_region
      _
    $region21: #{model_forward.1} parent=1 // pred_fallthru
      _
    %1497 = vsyncpa [#allocation3], 1

</llo_original>
